<compile_context>
chip_gen: v5e
topology: v5e:2x2
jax: 0.10.0
libtpu: 0.0.40
codegen_flags: <defaults>
</compile_context>

<pallas_src>
import math
import jax
import jax.numpy as jnp
from jax.experimental import pallas as pl
from jax.experimental.pallas import tpu as pltpu

# ---------------- config (small synthetic BERT) ----------------
VOCAB = 50
VOCAB_PAD = 64          # padded vocab for the in-kernel one-hot gather
MAX_POS = 16
TYPE_VOCAB = 2
HIDDEN = 32
N_HEADS = 2
HEAD_DIM = HIDDEN // N_HEADS
FFN = 64
N_LAYERS = 2
LN_EPS = 1e-12
MASK_NEG = -1e9


def _layernorm(x, gamma, beta):
    mean = jnp.mean(x, axis=-1, keepdims=True)
    var = jnp.mean((x - mean) ** 2, axis=-1, keepdims=True)
    return (x - mean) * jax.lax.rsqrt(var + LN_EPS) * gamma + beta


def _full_spec(shape):
    nd = len(shape)
    return pl.BlockSpec(shape, lambda *_: (0,) * nd)


# -------- fused kernel: embeddings + emb-LN + 2 encoder layers + classifier --------
def fused_bert_kernel(ids_ref, mask_ref, wemb_ref, pos_type_ref, embln_ref,
                      wqkv_ref, bqkv_ref, wo_ref, hvec_ref,
                      w1_ref, b1_ref, w2_ref, cls_w_ref, cls_b_ref,
                      out_ref):
    bn, L = mask_ref.shape
    rows = bn * L
    H = wemb_ref.shape[1]
    scale = 1.0 / math.sqrt(HEAD_DIM)

    # ---- fused embedding gather: one-hot (rows, VOCAB_PAD) @ table on the MXU ----
    ids = ids_ref[...]                                                 # (rows, 1) int32
    vocab_iota = jax.lax.broadcasted_iota(jnp.int32, (rows, VOCAB_PAD), 1)
    onehot = (ids == vocab_iota).astype(jnp.float32)
    x = jnp.dot(onehot, wemb_ref[...], preferred_element_type=jnp.float32)
    x = x + pos_type_ref[...]                                          # + position + token-type-0
    x = _layernorm(x, embln_ref[0:1, :], embln_ref[1:2, :])            # (rows, H) f32

    # Attention-mask bias, broadcast ONCE and reused by every head / layer.
    bias3 = jnp.broadcast_to(((1.0 - mask_ref[...]) * MASK_NEG)[:, None, :],
                             (bn, L, L))

    for layer in range(N_LAYERS):
        hv = hvec_ref[layer]               # (6, H): bo, ln1_g, ln1_b, b2, ln2_g, ln2_b

        # Fused QKV projection: one (rows, H) @ (H, 3H) MXU matmul, f32 accumulate.
        qkv = jnp.dot(x.astype(jnp.bfloat16), wqkv_ref[layer],
                      preferred_element_type=jnp.float32) + bqkv_ref[layer]
        qkv3 = qkv.reshape(bn, L, 3 * H)   # L == sublane tile (8): layout-preserving
        q3 = (qkv3[:, :, 0 * H:1 * H] * scale).astype(jnp.bfloat16)    # scale folded once
        k3 = qkv3[:, :, 1 * H:2 * H].astype(jnp.bfloat16)
        v3 = qkv3[:, :, 2 * H:3 * H].astype(jnp.bfloat16)

        # TODO(synk): heads remain a 2-iteration Python loop; a fully head-batched
        #             einsum needs a (bn,L,NH,HD)->(bn,NH,L,HD) transpose whose
        #             Mosaic lowering is not guaranteed at these tiny shapes.
        ctx_heads = []
        for h in range(N_HEADS):
            lo, hi = h * HEAD_DIM, (h + 1) * HEAD_DIM
            s = jnp.einsum("bqd,bkd->bqk", q3[:, :, lo:hi], k3[:, :, lo:hi],
                           preferred_element_type=jnp.float32) + bias3
            s = s - jnp.max(s, axis=-1, keepdims=True)
            p = jnp.exp(s)
            p = p * pl.reciprocal(jnp.sum(p, axis=-1, keepdims=True), approx=True)
            ctx_heads.append(
                jnp.einsum("bqk,bkd->bqd", p.astype(jnp.bfloat16), v3[:, :, lo:hi],
                           preferred_element_type=jnp.float32))
        ctx = jnp.concatenate(ctx_heads, axis=-1)                       # (bn, L, H)

        # Single K=H output projection (replaces per-head K=HEAD_DIM matmuls).
        attn = jnp.dot(ctx.reshape(rows, H).astype(jnp.bfloat16), wo_ref[layer],
                       preferred_element_type=jnp.float32) + hv[0:1, :]

        h1 = _layernorm(x + attn, hv[1:2, :], hv[2:3, :])

        # TODO(synk): HF bert-base uses exact erf GELU; tanh approximation used
        #             here (erf has no guaranteed Mosaic lowering).
        ff = jax.nn.gelu(
            jnp.dot(h1.astype(jnp.bfloat16), w1_ref[layer],
                    preferred_element_type=jnp.float32) + b1_ref[layer],
            approximate=True)
        ff = jnp.dot(ff.astype(jnp.bfloat16), w2_ref[layer],
                     preferred_element_type=jnp.float32) + hv[3:4, :]
        x = _layernorm(h1 + ff, hv[4:5, :], hv[5:6, :])

    # Classifier head on the [CLS] row (position 0) of every sequence.
    cls = x.reshape(bn, L, H)[:, 0, :]                                  # (bn, H)
    logits = jnp.sum(cls * cls_w_ref[...], axis=-1, keepdims=True) + cls_b_ref[...]
    # Full-sublane, lane-dense store; wrapper reads lane 0.
    out_ref[...] = jnp.broadcast_to(logits, out_ref.shape)


# ---------------- parameters (deterministic synthetic init) ----------------
def init_params(key):
    keys = iter(jax.random.split(key, 64))

    def nrm(shape):
        return 0.02 * jax.random.normal(next(keys), shape, jnp.float32)

    word = jnp.zeros((VOCAB_PAD, HIDDEN), jnp.float32).at[:VOCAB].set(nrm((VOCAB, HIDDEN)))
    params = {
        "word_emb": word,                                              # (VOCAB_PAD, H) f32
        "pos_emb": nrm((MAX_POS, HIDDEN)),
        "type_emb": nrm((TYPE_VOCAB, HIDDEN)),
        "emb_ln": jnp.stack([jnp.ones((HIDDEN,), jnp.float32),
                             jnp.zeros((HIDDEN,), jnp.float32)]),      # (2, H)
        "cls_w": nrm((1, HIDDEN)),
        "cls_b": jnp.zeros((1, 1), jnp.float32),
    }
    wqkv, bqkv, wo, hvec, w1, b1, w2 = [], [], [], [], [], [], []
    for _ in range(N_LAYERS):
        wqkv.append(jnp.concatenate([nrm((HIDDEN, HIDDEN)) for _ in range(3)], axis=1))
        bqkv.append(jnp.zeros((1, 3 * HIDDEN), jnp.float32))
        wo.append(nrm((HIDDEN, HIDDEN)))
        hvec.append(jnp.stack([
            jnp.zeros((HIDDEN,), jnp.float32),   # bo
            jnp.ones((HIDDEN,), jnp.float32),    # ln1_g
            jnp.zeros((HIDDEN,), jnp.float32),   # ln1_b
            jnp.zeros((HIDDEN,), jnp.float32),   # b2
            jnp.ones((HIDDEN,), jnp.float32),    # ln2_g
            jnp.zeros((HIDDEN,), jnp.float32),   # ln2_b
        ]))
        w1.append(nrm((HIDDEN, FFN)))
        b1.append(jnp.zeros((1, FFN), jnp.float32))
        w2.append(nrm((FFN, HIDDEN)))

    # Matmul weights in bf16 (MXU inputs); biases / LN params stay f32.
    params["wqkv"] = jnp.stack(wqkv).astype(jnp.bfloat16)   # (NL, H, 3H)
    params["bqkv"] = jnp.stack(bqkv)                        # (NL, 1, 3H)
    params["wo"] = jnp.stack(wo).astype(jnp.bfloat16)       # (NL, H, H)
    params["hvec"] = jnp.stack(hvec)                        # (NL, 6, H)
    params["w1"] = jnp.stack(w1).astype(jnp.bfloat16)       # (NL, H, FFN)
    params["b1"] = jnp.stack(b1)                            # (NL, 1, FFN)
    params["w2"] = jnp.stack(w2).astype(jnp.bfloat16)       # (NL, FFN, H)
    return params


# ---------------- full forward (mirrors BERTMCQClassifier.forward) ----------------
def bert_mcq_forward(params, input_ids, attention_mask):
    B, N, L = input_ids.shape
    BN = B * N
    BN_pad = ((BN + 7) // 8) * 8          # full-sublane activations / unmasked out store
    ids = input_ids.reshape(BN, L).astype(jnp.int32)
    mask = attention_mask.reshape(BN, L).astype(jnp.float32)
    if BN_pad != BN:
        ids = jnp.concatenate([ids, jnp.zeros((BN_pad - BN, L), jnp.int32)], axis=0)
        mask = jnp.concatenate([mask, jnp.ones((BN_pad - BN, L), jnp.float32)], axis=0)
    rows = BN_pad * L

    ids_col = ids.reshape(rows, 1)
    # position + token-type-0 embeddings, pre-tiled to the flat row layout (tiny, constant).
    pos_type = jnp.tile(params["pos_emb"][:L, :] + params["type_emb"][0:1, :], (BN_pad, 1))

    args = (ids_col, mask, params["word_emb"], pos_type, params["emb_ln"],
            params["wqkv"], params["bqkv"], params["wo"], params["hvec"],
            params["w1"], params["b1"], params["w2"], params["cls_w"], params["cls_b"])

    out = pl.pallas_call(
        fused_bert_kernel,
        out_shape=jax.ShapeDtypeStruct((BN_pad, 128), jnp.float32),
        grid=(1,),                                   # single grid step (one TC is plenty here)
        in_specs=[_full_spec(a.shape) for a in args],
        out_specs=pl.BlockSpec((BN_pad, 128), lambda *_: (0, 0)),
        compiler_params=pltpu.CompilerParams(dimension_semantics=("arbitrary",)),
    )(*args)

    return out[:BN, 0].reshape(B, N)


if __name__ == "__main__":
    B, N, L = 2, 4, 8
    key = jax.random.PRNGKey(0)
    k_ids, k_len, k_params = jax.random.split(key, 3)

    input_ids = jax.random.randint(k_ids, (B, N, L), 0, VOCAB, dtype=jnp.int32)
    lengths = jax.random.randint(k_len, (B, N), 3, L + 1)
    attention_mask = (jnp.arange(L)[None, None, :] < lengths[:, :, None]).astype(jnp.int32)

    params = init_params(k_params)

    logits = jax.jit(lambda i, m: bert_mcq_forward(params, i, m))(input_ids, attention_mask)
    logits = jax.block_until_ready(logits)

    assert logits.shape == (B, N), logits.shape
    assert bool(jnp.all(jnp.isfinite(logits)))
    print("KERNEL_OK")
</pallas_src>

<mosaic_0001>
module attributes {stable_mosaic.version = 11 : i64} {
  func.func @fused_bert_kernel(%arg0: i32, %arg1: memref<64x1xi32, #tpu.memory_space<vmem>>, %arg2: memref<8x8xf32, #tpu.memory_space<vmem>>, %arg3: memref<64x32xf32, #tpu.memory_space<vmem>>, %arg4: memref<64x32xf32, #tpu.memory_space<vmem>>, %arg5: memref<2x32xf32, #tpu.memory_space<vmem>>, %arg6: memref<2x32x96xbf16, #tpu.memory_space<vmem>>, %arg7: memref<2x1x96xf32, #tpu.memory_space<vmem>>, %arg8: memref<2x32x32xbf16, #tpu.memory_space<vmem>>, %arg9: memref<2x6x32xf32, #tpu.memory_space<vmem>>, %arg10: memref<2x32x64xbf16, #tpu.memory_space<vmem>>, %arg11: memref<2x1x64xf32, #tpu.memory_space<vmem>>, %arg12: memref<2x64x32xbf16, #tpu.memory_space<vmem>>, %arg13: memref<1x32xf32, #tpu.memory_space<vmem>>, %arg14: memref<1x1xf32, #tpu.memory_space<vmem>>, %arg15: memref<8x128xf32, #tpu.memory_space<vmem>>) attributes {dimension_semantics = [#tpu.dimension_semantics<arbitrary>], iteration_bounds = array<i64: 1>, scalar_prefetch = 0 : i64, scratch_operands = 0 : i64, tpu.core_type = #tpu.core_type<tc>, window_params = [{pipeline_mode = #tpu.pipeline_mode<synchronous>, transform_indices = @transform_0, window_bounds = array<i64: 64, 1>}, {pipeline_mode = #tpu.pipeline_mode<synchronous>, transform_indices = @transform_1, window_bounds = array<i64: 8, 8>}, {pipeline_mode = #tpu.pipeline_mode<synchronous>, transform_indices = @transform_2, window_bounds = array<i64: 64, 32>}, {pipeline_mode = #tpu.pipeline_mode<synchronous>, transform_indices = @transform_3, window_bounds = array<i64: 64, 32>}, {pipeline_mode = #tpu.pipeline_mode<synchronous>, transform_indices = @transform_4, window_bounds = array<i64: 2, 32>}, {pipeline_mode = #tpu.pipeline_mode<synchronous>, transform_indices = @transform_5, window_bounds = array<i64: 2, 32, 96>}, {pipeline_mode = #tpu.pipeline_mode<synchronous>, transform_indices = @transform_6, window_bounds = array<i64: 2, 1, 96>}, {pipeline_mode = #tpu.pipeline_mode<synchronous>, transform_indices = @transform_7, window_bounds = array<i64: 2, 32, 32>}, {pipeline_mode = #tpu.pipeline_mode<synchronous>, transform_indices = @transform_8, window_bounds = array<i64: 2, 6, 32>}, {pipeline_mode = #tpu.pipeline_mode<synchronous>, transform_indices = @transform_9, window_bounds = array<i64: 2, 32, 64>}, {pipeline_mode = #tpu.pipeline_mode<synchronous>, transform_indices = @transform_10, window_bounds = array<i64: 2, 1, 64>}, {pipeline_mode = #tpu.pipeline_mode<synchronous>, transform_indices = @transform_11, window_bounds = array<i64: 2, 64, 32>}, {pipeline_mode = #tpu.pipeline_mode<synchronous>, transform_indices = @transform_12, window_bounds = array<i64: 1, 32>}, {pipeline_mode = #tpu.pipeline_mode<synchronous>, transform_indices = @transform_13, window_bounds = array<i64: 1, 1>}, {pipeline_mode = #tpu.pipeline_mode<synchronous>, transform_indices = @transform_14, window_bounds = array<i64: 8, 128>}]} {
    %c0 = arith.constant 0 : index
    %c0_0 = arith.constant 0 : index
    %0 = vector.load %arg1[%c0, %c0_0] : memref<64x1xi32, #tpu.memory_space<vmem>>, vector<64x1xi32>
    %1 = tpu.iota {dimensions = array<i32: 1>} : vector<64x64xi32>
    %2 = vector.broadcast %0 : vector<64x1xi32> to vector<64x64xi32>
    %3 = arith.cmpi eq, %2, %1 : vector<64x64xi32>
    %4 = arith.extui %3 : vector<64x64xi1> to vector<64x64xi32>
    %5 = arith.sitofp %4 : vector<64x64xi32> to vector<64x64xf32>
    %c0_1 = arith.constant 0 : index
    %c0_2 = arith.constant 0 : index
    %6 = vector.load %arg3[%c0_1, %c0_2] : memref<64x32xf32, #tpu.memory_space<vmem>>, vector<64x32xf32>
    %cst = arith.constant dense<0.000000e+00> : vector<64x32xf32>
    %7 = tpu.matmul %5, %6, %cst {dimension_numbers = #tpu.dot_dimension_numbers<[1], [0], [0], [1], [0, 0, 1, 1], [], []>} : vector<64x64xf32>, vector<64x32xf32>, vector<64x32xf32> -> vector<64x32xf32>
    %c0_3 = arith.constant 0 : index
    %c0_4 = arith.constant 0 : index
    %8 = vector.load %arg4[%c0_3, %c0_4] : memref<64x32xf32, #tpu.memory_space<vmem>>, vector<64x32xf32>
    %9 = arith.addf %7, %8 : vector<64x32xf32>
    %c0_5 = arith.constant 0 : index
    %c0_6 = arith.constant 0 : index
    %10 = vector.load %arg5[%c0_5, %c0_6] : memref<2x32xf32, #tpu.memory_space<vmem>>, vector<1x32xf32>
    %c1 = arith.constant 1 : index
    %c0_7 = arith.constant 0 : index
    %11 = vector.load %arg5[%c1, %c0_7] : memref<2x32xf32, #tpu.memory_space<vmem>>, vector<1x32xf32>
    %cst_8 = arith.constant dense<0.000000e+00> : vector<64xf32>
    %12 = vector.multi_reduction <add>, %9, %cst_8 [1] : vector<64x32xf32> to vector<64xf32>
    %13 = vector.shape_cast %12 : vector<64xf32> to vector<64x1xf32>
    %cst_9 = arith.constant 3.200000e+01 : f32
    %14 = vector.broadcast %cst_9 : f32 to vector<64x1xf32>
    %15 = arith.divf %13, %14 : vector<64x1xf32>
    %16 = vector.broadcast %15 : vector<64x1xf32> to vector<64x32xf32>
    %17 = arith.subf %9, %16 : vector<64x32xf32>
    %18 = arith.mulf %17, %17 : vector<64x32xf32>
    %cst_10 = arith.constant dense<0.000000e+00> : vector<64xf32>
    %19 = vector.multi_reduction <add>, %18, %cst_10 [1] : vector<64x32xf32> to vector<64xf32>
    %20 = vector.shape_cast %19 : vector<64xf32> to vector<64x1xf32>
    %cst_11 = arith.constant 3.200000e+01 : f32
    %21 = vector.broadcast %cst_11 : f32 to vector<64x1xf32>
    %22 = arith.divf %20, %21 : vector<64x1xf32>
    %23 = vector.broadcast %15 : vector<64x1xf32> to vector<64x32xf32>
    %24 = arith.subf %9, %23 : vector<64x32xf32>
    %cst_12 = arith.constant 9.99999996E-13 : f32
    %25 = vector.broadcast %cst_12 : f32 to vector<64x1xf32>
    %26 = arith.addf %22, %25 : vector<64x1xf32>
    %27 = math.rsqrt %26 : vector<64x1xf32>
    %28 = vector.broadcast %27 : vector<64x1xf32> to vector<64x32xf32>
    %29 = arith.mulf %24, %28 : vector<64x32xf32>
    %30 = vector.broadcast %10 : vector<1x32xf32> to vector<64x32xf32>
    %31 = arith.mulf %29, %30 : vector<64x32xf32>
    %32 = vector.broadcast %11 : vector<1x32xf32> to vector<64x32xf32>
    %33 = arith.addf %31, %32 : vector<64x32xf32>
    %c0_13 = arith.constant 0 : index
    %c0_14 = arith.constant 0 : index
    %34 = vector.load %arg2[%c0_13, %c0_14] : memref<8x8xf32, #tpu.memory_space<vmem>>, vector<8x8xf32>
    %cst_15 = arith.constant 1.000000e+00 : f32
    %35 = vector.broadcast %cst_15 : f32 to vector<8x8xf32>
    %36 = arith.subf %35, %34 : vector<8x8xf32>
    %cst_16 = arith.constant -1.000000e+09 : f32
    %37 = vector.broadcast %cst_16 : f32 to vector<8x8xf32>
    %38 = arith.mulf %36, %37 : vector<8x8xf32>
    %39 = vector.shape_cast %38 : vector<8x8xf32> to vector<8x1x8xf32>
    %40 = vector.shape_cast %39 : vector<8x1x8xf32> to vector<8x1x8xf32>
    %41 = vector.broadcast %40 : vector<8x1x8xf32> to vector<8x8x8xf32>
    %c0_17 = arith.constant 0 : index
    %c0_18 = arith.constant 0 : index
    %c0_19 = arith.constant 0 : index
    %42 = vector.load %arg9[%c0_17, %c0_18, %c0_19] : memref<2x6x32xf32, #tpu.memory_space<vmem>>, vector<1x6x32xf32>
    %43 = vector.shape_cast %42 : vector<1x6x32xf32> to vector<6x32xf32>
    %44 = arith.truncf %33 : vector<64x32xf32> to vector<64x32xbf16>
    %c0_20 = arith.constant 0 : index
    %c0_21 = arith.constant 0 : index
    %c0_22 = arith.constant 0 : index
    %45 = vector.load %arg6[%c0_20, %c0_21, %c0_22] : memref<2x32x96xbf16, #tpu.memory_space<vmem>>, vector<1x32x96xbf16>
    %46 = vector.shape_cast %45 : vector<1x32x96xbf16> to vector<32x96xbf16>
    %cst_23 = arith.constant dense<0.000000e+00> : vector<64x96xf32>
    %47 = tpu.matmul %44, %46, %cst_23 {dimension_numbers = #tpu.dot_dimension_numbers<[1], [0], [0], [1], [0, 0, 1, 1], [], []>} : vector<64x32xbf16>, vector<32x96xbf16>, vector<64x96xf32> -> vector<64x96xf32>
    %c0_24 = arith.constant 0 : index
    %c0_25 = arith.constant 0 : index
    %c0_26 = arith.constant 0 : index
    %48 = vector.load %arg7[%c0_24, %c0_25, %c0_26] : memref<2x1x96xf32, #tpu.memory_space<vmem>>, vector<1x1x96xf32>
    %49 = vector.shape_cast %48 : vector<1x1x96xf32> to vector<1x96xf32>
    %50 = vector.broadcast %49 : vector<1x96xf32> to vector<64x96xf32>
    %51 = arith.addf %47, %50 : vector<64x96xf32>
    %52 = vector.shape_cast %51 : vector<64x96xf32> to vector<8x8x96xf32>
    %53 = vector.extract_strided_slice %52 {offsets = [0, 0, 0], sizes = [8, 8, 32], strides = [1, 1, 1]} : vector<8x8x96xf32> to vector<8x8x32xf32>
    %cst_27 = arith.constant 2.500000e-01 : f32
    %54 = vector.broadcast %cst_27 : f32 to vector<8x8x32xf32>
    %55 = arith.mulf %53, %54 : vector<8x8x32xf32>
    %56 = arith.truncf %55 : vector<8x8x32xf32> to vector<8x8x32xbf16>
    %57 = vector.extract_strided_slice %52 {offsets = [0, 0, 32], sizes = [8, 8, 32], strides = [1, 1, 1]} : vector<8x8x96xf32> to vector<8x8x32xf32>
    %58 = arith.truncf %57 : vector<8x8x32xf32> to vector<8x8x32xbf16>
    %59 = vector.extract_strided_slice %52 {offsets = [0, 0, 64], sizes = [8, 8, 32], strides = [1, 1, 1]} : vector<8x8x96xf32> to vector<8x8x32xf32>
    %60 = arith.truncf %59 : vector<8x8x32xf32> to vector<8x8x32xbf16>
    %61 = vector.extract_strided_slice %56 {offsets = [0, 0, 0], sizes = [8, 8, 16], strides = [1, 1, 1]} : vector<8x8x32xbf16> to vector<8x8x16xbf16>
    %62 = vector.extract_strided_slice %58 {offsets = [0, 0, 0], sizes = [8, 8, 16], strides = [1, 1, 1]} : vector<8x8x32xbf16> to vector<8x8x16xbf16>
    "tpu.trace_start"() <{level = 10 : i32, message = "bqd,bkd->bqk"}> : () -> ()
    %cst_28 = arith.constant dense<0.000000e+00> : vector<8x8x8xf32>
    %63 = tpu.matmul %61, %62, %cst_28 {dimension_numbers = #tpu.dot_dimension_numbers<[2], [2], [1], [1], [0, 0, 0, 1, 1, 1], [0], [0]>} : vector<8x8x16xbf16>, vector<8x8x16xbf16>, vector<8x8x8xf32> -> vector<8x8x8xf32>
    "tpu.trace_stop"() : () -> ()
    %64 = arith.addf %63, %41 : vector<8x8x8xf32>
    %cst_29 = arith.constant dense<0xFF800000> : vector<8x8xf32>
    %65 = vector.multi_reduction <maximumf>, %64, %cst_29 [2] : vector<8x8x8xf32> to vector<8x8xf32>
    %66 = vector.shape_cast %65 : vector<8x8xf32> to vector<8x8x1xf32>
    %67 = vector.broadcast %66 : vector<8x8x1xf32> to vector<8x8x8xf32>
    %68 = arith.subf %64, %67 : vector<8x8x8xf32>
    %69 = math.exp %68 : vector<8x8x8xf32>
    %cst_30 = arith.constant dense<0.000000e+00> : vector<8x8xf32>
    %70 = vector.multi_reduction <add>, %69, %cst_30 [2] : vector<8x8x8xf32> to vector<8x8xf32>
    %71 = vector.shape_cast %70 : vector<8x8xf32> to vector<8x8x1xf32>
    %72 = tpu.reciprocal %71 {approx = true} : vector<8x8x1xf32> -> vector<8x8x1xf32>
    %73 = vector.broadcast %72 : vector<8x8x1xf32> to vector<8x8x8xf32>
    %74 = arith.mulf %69, %73 : vector<8x8x8xf32>
    %75 = arith.truncf %74 : vector<8x8x8xf32> to vector<8x8x8xbf16>
    %76 = vector.extract_strided_slice %60 {offsets = [0, 0, 0], sizes = [8, 8, 16], strides = [1, 1, 1]} : vector<8x8x32xbf16> to vector<8x8x16xbf16>
    "tpu.trace_start"() <{level = 10 : i32, message = "bqk,bkd->bqd"}> : () -> ()
    %cst_31 = arith.constant dense<0.000000e+00> : vector<8x8x16xf32>
    %77 = tpu.matmul %75, %76, %cst_31 {dimension_numbers = #tpu.dot_dimension_numbers<[2], [1], [1], [2], [0, 0, 0, 1, 1, 2], [0], [0]>} : vector<8x8x8xbf16>, vector<8x8x16xbf16>, vector<8x8x16xf32> -> vector<8x8x16xf32>
    "tpu.trace_stop"() : () -> ()
    %78 = vector.extract_strided_slice %56 {offsets = [0, 0, 16], sizes = [8, 8, 16], strides = [1, 1, 1]} : vector<8x8x32xbf16> to vector<8x8x16xbf16>
    %79 = vector.extract_strided_slice %58 {offsets = [0, 0, 16], sizes = [8, 8, 16], strides = [1, 1, 1]} : vector<8x8x32xbf16> to vector<8x8x16xbf16>
    "tpu.trace_start"() <{level = 10 : i32, message = "bqd,bkd->bqk"}> : () -> ()
    %cst_32 = arith.constant dense<0.000000e+00> : vector<8x8x8xf32>
    %80 = tpu.matmul %78, %79, %cst_32 {dimension_numbers = #tpu.dot_dimension_numbers<[2], [2], [1], [1], [0, 0, 0, 1, 1, 1], [0], [0]>} : vector<8x8x16xbf16>, vector<8x8x16xbf16>, vector<8x8x8xf32> -> vector<8x8x8xf32>
    "tpu.trace_stop"() : () -> ()
    %81 = arith.addf %80, %41 : vector<8x8x8xf32>
    %cst_33 = arith.constant dense<0xFF800000> : vector<8x8xf32>
    %82 = vector.multi_reduction <maximumf>, %81, %cst_33 [2] : vector<8x8x8xf32> to vector<8x8xf32>
    %83 = vector.shape_cast %82 : vector<8x8xf32> to vector<8x8x1xf32>
    %84 = vector.broadcast %83 : vector<8x8x1xf32> to vector<8x8x8xf32>
    %85 = arith.subf %81, %84 : vector<8x8x8xf32>
    %86 = math.exp %85 : vector<8x8x8xf32>
    %cst_34 = arith.constant dense<0.000000e+00> : vector<8x8xf32>
    %87 = vector.multi_reduction <add>, %86, %cst_34 [2] : vector<8x8x8xf32> to vector<8x8xf32>
    %88 = vector.shape_cast %87 : vector<8x8xf32> to vector<8x8x1xf32>
    %89 = tpu.reciprocal %88 {approx = true} : vector<8x8x1xf32> -> vector<8x8x1xf32>
    %90 = vector.broadcast %89 : vector<8x8x1xf32> to vector<8x8x8xf32>
    %91 = arith.mulf %86, %90 : vector<8x8x8xf32>
    %92 = arith.truncf %91 : vector<8x8x8xf32> to vector<8x8x8xbf16>
    %93 = vector.extract_strided_slice %60 {offsets = [0, 0, 16], sizes = [8, 8, 16], strides = [1, 1, 1]} : vector<8x8x32xbf16> to vector<8x8x16xbf16>
    "tpu.trace_start"() <{level = 10 : i32, message = "bqk,bkd->bqd"}> : () -> ()
    %cst_35 = arith.constant dense<0.000000e+00> : vector<8x8x16xf32>
    %94 = tpu.matmul %92, %93, %cst_35 {dimension_numbers = #tpu.dot_dimension_numbers<[2], [1], [1], [2], [0, 0, 0, 1, 1, 2], [0], [0]>} : vector<8x8x8xbf16>, vector<8x8x16xbf16>, vector<8x8x16xf32> -> vector<8x8x16xf32>
    "tpu.trace_stop"() : () -> ()
    %95 = tpu.concatenate %77, %94 in 2 : vector<8x8x16xf32>, vector<8x8x16xf32> -> vector<8x8x32xf32>
    %96 = vector.shape_cast %95 : vector<8x8x32xf32> to vector<64x32xf32>
    %97 = arith.truncf %96 : vector<64x32xf32> to vector<64x32xbf16>
    %c0_36 = arith.constant 0 : index
    %c0_37 = arith.constant 0 : index
    %c0_38 = arith.constant 0 : index
    %98 = vector.load %arg8[%c0_36, %c0_37, %c0_38] : memref<2x32x32xbf16, #tpu.memory_space<vmem>>, vector<1x32x32xbf16>
    %99 = vector.shape_cast %98 : vector<1x32x32xbf16> to vector<32x32xbf16>
    %cst_39 = arith.constant dense<0.000000e+00> : vector<64x32xf32>
    %100 = tpu.matmul %97, %99, %cst_39 {dimension_numbers = #tpu.dot_dimension_numbers<[1], [0], [0], [1], [0, 0, 1, 1], [], []>} : vector<64x32xbf16>, vector<32x32xbf16>, vector<64x32xf32> -> vector<64x32xf32>
    %101 = vector.extract_strided_slice %43 {offsets = [0, 0], sizes = [1, 32], strides = [1, 1]} : vector<6x32xf32> to vector<1x32xf32>
    %102 = vector.broadcast %101 : vector<1x32xf32> to vector<64x32xf32>
    %103 = arith.addf %100, %102 : vector<64x32xf32>
    %104 = arith.addf %33, %103 : vector<64x32xf32>
    %105 = vector.extract_strided_slice %43 {offsets = [1, 0], sizes = [1, 32], strides = [1, 1]} : vector<6x32xf32> to vector<1x32xf32>
    %106 = vector.extract_strided_slice %43 {offsets = [2, 0], sizes = [1, 32], strides = [1, 1]} : vector<6x32xf32> to vector<1x32xf32>
    %cst_40 = arith.constant dense<0.000000e+00> : vector<64xf32>
    %107 = vector.multi_reduction <add>, %104, %cst_40 [1] : vector<64x32xf32> to vector<64xf32>
    %108 = vector.shape_cast %107 : vector<64xf32> to vector<64x1xf32>
    %cst_41 = arith.constant 3.200000e+01 : f32
    %109 = vector.broadcast %cst_41 : f32 to vector<64x1xf32>
    %110 = arith.divf %108, %109 : vector<64x1xf32>
    %111 = vector.broadcast %110 : vector<64x1xf32> to vector<64x32xf32>
    %112 = arith.subf %104, %111 : vector<64x32xf32>
    %113 = arith.mulf %112, %112 : vector<64x32xf32>
    %cst_42 = arith.constant dense<0.000000e+00> : vector<64xf32>
    %114 = vector.multi_reduction <add>, %113, %cst_42 [1] : vector<64x32xf32> to vector<64xf32>
    %115 = vector.shape_cast %114 : vector<64xf32> to vector<64x1xf32>
    %cst_43 = arith.constant 3.200000e+01 : f32
    %116 = vector.broadcast %cst_43 : f32 to vector<64x1xf32>
    %117 = arith.divf %115, %116 : vector<64x1xf32>
    %118 = vector.broadcast %110 : vector<64x1xf32> to vector<64x32xf32>
    %119 = arith.subf %104, %118 : vector<64x32xf32>
    %cst_44 = arith.constant 9.99999996E-13 : f32
    %120 = vector.broadcast %cst_44 : f32 to vector<64x1xf32>
    %121 = arith.addf %117, %120 : vector<64x1xf32>
    %122 = math.rsqrt %121 : vector<64x1xf32>
    %123 = vector.broadcast %122 : vector<64x1xf32> to vector<64x32xf32>
    %124 = arith.mulf %119, %123 : vector<64x32xf32>
    %125 = vector.broadcast %105 : vector<1x32xf32> to vector<64x32xf32>
    %126 = arith.mulf %124, %125 : vector<64x32xf32>
    %127 = vector.broadcast %106 : vector<1x32xf32> to vector<64x32xf32>
    %128 = arith.addf %126, %127 : vector<64x32xf32>
    %129 = arith.truncf %128 : vector<64x32xf32> to vector<64x32xbf16>
    %c0_45 = arith.constant 0 : index
    %c0_46 = arith.constant 0 : index
    %c0_47 = arith.constant 0 : index
    %130 = vector.load %arg10[%c0_45, %c0_46, %c0_47] : memref<2x32x64xbf16, #tpu.memory_space<vmem>>, vector<1x32x64xbf16>
    %131 = vector.shape_cast %130 : vector<1x32x64xbf16> to vector<32x64xbf16>
    %cst_48 = arith.constant dense<0.000000e+00> : vector<64x64xf32>
    %132 = tpu.matmul %129, %131, %cst_48 {dimension_numbers = #tpu.dot_dimension_numbers<[1], [0], [0], [1], [0, 0, 1, 1], [], []>} : vector<64x32xbf16>, vector<32x64xbf16>, vector<64x64xf32> -> vector<64x64xf32>
    %c0_49 = arith.constant 0 : index
    %c0_50 = arith.constant 0 : index
    %c0_51 = arith.constant 0 : index
    %133 = vector.load %arg11[%c0_49, %c0_50, %c0_51] : memref<2x1x64xf32, #tpu.memory_space<vmem>>, vector<1x1x64xf32>
    %134 = vector.shape_cast %133 : vector<1x1x64xf32> to vector<1x64xf32>
    %135 = vector.broadcast %134 : vector<1x64xf32> to vector<64x64xf32>
    %136 = arith.addf %132, %135 : vector<64x64xf32>
    %137 = arith.mulf %136, %136 : vector<64x64xf32>
    %138 = arith.mulf %136, %137 : vector<64x64xf32>
    %cst_52 = arith.constant 4.471500e-02 : f32
    %139 = vector.broadcast %cst_52 : f32 to vector<64x64xf32>
    %140 = arith.mulf %139, %138 : vector<64x64xf32>
    %141 = arith.addf %136, %140 : vector<64x64xf32>
    %cst_53 = arith.constant 0.797884583 : f32
    %142 = vector.broadcast %cst_53 : f32 to vector<64x64xf32>
    %143 = arith.mulf %142, %141 : vector<64x64xf32>
    %144 = math.tanh %143 : vector<64x64xf32>
    %cst_54 = arith.constant 1.000000e+00 : f32
    %145 = vector.broadcast %cst_54 : f32 to vector<64x64xf32>
    %146 = arith.addf %145, %144 : vector<64x64xf32>
    %cst_55 = arith.constant 5.000000e-01 : f32
    %147 = vector.broadcast %cst_55 : f32 to vector<64x64xf32>
    %148 = arith.mulf %147, %146 : vector<64x64xf32>
    %149 = arith.mulf %136, %148 : vector<64x64xf32>
    %150 = arith.truncf %149 : vector<64x64xf32> to vector<64x64xbf16>
    %c0_56 = arith.constant 0 : index
    %c0_57 = arith.constant 0 : index
    %c0_58 = arith.constant 0 : index
    %151 = vector.load %arg12[%c0_56, %c0_57, %c0_58] : memref<2x64x32xbf16, #tpu.memory_space<vmem>>, vector<1x64x32xbf16>
    %152 = vector.shape_cast %151 : vector<1x64x32xbf16> to vector<64x32xbf16>
    %cst_59 = arith.constant dense<0.000000e+00> : vector<64x32xf32>
    %153 = tpu.matmul %150, %152, %cst_59 {dimension_numbers = #tpu.dot_dimension_numbers<[1], [0], [0], [1], [0, 0, 1, 1], [], []>} : vector<64x64xbf16>, vector<64x32xbf16>, vector<64x32xf32> -> vector<64x32xf32>
    %154 = vector.extract_strided_slice %43 {offsets = [3, 0], sizes = [1, 32], strides = [1, 1]} : vector<6x32xf32> to vector<1x32xf32>
    %155 = vector.broadcast %154 : vector<1x32xf32> to vector<64x32xf32>
    %156 = arith.addf %153, %155 : vector<64x32xf32>
    %157 = arith.addf %128, %156 : vector<64x32xf32>
    %158 = vector.extract_strided_slice %43 {offsets = [4, 0], sizes = [1, 32], strides = [1, 1]} : vector<6x32xf32> to vector<1x32xf32>
    %159 = vector.extract_strided_slice %43 {offsets = [5, 0], sizes = [1, 32], strides = [1, 1]} : vector<6x32xf32> to vector<1x32xf32>
    %cst_60 = arith.constant dense<0.000000e+00> : vector<64xf32>
    %160 = vector.multi_reduction <add>, %157, %cst_60 [1] : vector<64x32xf32> to vector<64xf32>
    %161 = vector.shape_cast %160 : vector<64xf32> to vector<64x1xf32>
    %cst_61 = arith.constant 3.200000e+01 : f32
    %162 = vector.broadcast %cst_61 : f32 to vector<64x1xf32>
    %163 = arith.divf %161, %162 : vector<64x1xf32>
    %164 = vector.broadcast %163 : vector<64x1xf32> to vector<64x32xf32>
    %165 = arith.subf %157, %164 : vector<64x32xf32>
    %166 = arith.mulf %165, %165 : vector<64x32xf32>
    %cst_62 = arith.constant dense<0.000000e+00> : vector<64xf32>
    %167 = vector.multi_reduction <add>, %166, %cst_62 [1] : vector<64x32xf32> to vector<64xf32>
    %168 = vector.shape_cast %167 : vector<64xf32> to vector<64x1xf32>
    %cst_63 = arith.constant 3.200000e+01 : f32
    %169 = vector.broadcast %cst_63 : f32 to vector<64x1xf32>
    %170 = arith.divf %168, %169 : vector<64x1xf32>
    %171 = vector.broadcast %163 : vector<64x1xf32> to vector<64x32xf32>
    %172 = arith.subf %157, %171 : vector<64x32xf32>
    %cst_64 = arith.constant 9.99999996E-13 : f32
    %173 = vector.broadcast %cst_64 : f32 to vector<64x1xf32>
    %174 = arith.addf %170, %173 : vector<64x1xf32>
    %175 = math.rsqrt %174 : vector<64x1xf32>
    %176 = vector.broadcast %175 : vector<64x1xf32> to vector<64x32xf32>
    %177 = arith.mulf %172, %176 : vector<64x32xf32>
    %178 = vector.broadcast %158 : vector<1x32xf32> to vector<64x32xf32>
    %179 = arith.mulf %177, %178 : vector<64x32xf32>
    %180 = vector.broadcast %159 : vector<1x32xf32> to vector<64x32xf32>
    %181 = arith.addf %179, %180 : vector<64x32xf32>
    %c1_65 = arith.constant 1 : index
    %c0_66 = arith.constant 0 : index
    %c0_67 = arith.constant 0 : index
    %182 = vector.load %arg9[%c1_65, %c0_66, %c0_67] : memref<2x6x32xf32, #tpu.memory_space<vmem>>, vector<1x6x32xf32>
    %183 = vector.shape_cast %182 : vector<1x6x32xf32> to vector<6x32xf32>
    %184 = arith.truncf %181 : vector<64x32xf32> to vector<64x32xbf16>
    %c1_68 = arith.constant 1 : index
    %c0_69 = arith.constant 0 : index
    %c0_70 = arith.constant 0 : index
    %185 = vector.load %arg6[%c1_68, %c0_69, %c0_70] : memref<2x32x96xbf16, #tpu.memory_space<vmem>>, vector<1x32x96xbf16>
    %186 = vector.shape_cast %185 : vector<1x32x96xbf16> to vector<32x96xbf16>
    %cst_71 = arith.constant dense<0.000000e+00> : vector<64x96xf32>
    %187 = tpu.matmul %184, %186, %cst_71 {dimension_numbers = #tpu.dot_dimension_numbers<[1], [0], [0], [1], [0, 0, 1, 1], [], []>} : vector<64x32xbf16>, vector<32x96xbf16>, vector<64x96xf32> -> vector<64x96xf32>
    %c1_72 = arith.constant 1 : index
    %c0_73 = arith.constant 0 : index
    %c0_74 = arith.constant 0 : index
    %188 = vector.load %arg7[%c1_72, %c0_73, %c0_74] : memref<2x1x96xf32, #tpu.memory_space<vmem>>, vector<1x1x96xf32>
    %189 = vector.shape_cast %188 : vector<1x1x96xf32> to vector<1x96xf32>
    %190 = vector.broadcast %189 : vector<1x96xf32> to vector<64x96xf32>
    %191 = arith.addf %187, %190 : vector<64x96xf32>
    %192 = vector.shape_cast %191 : vector<64x96xf32> to vector<8x8x96xf32>
    %193 = vector.extract_strided_slice %192 {offsets = [0, 0, 0], sizes = [8, 8, 32], strides = [1, 1, 1]} : vector<8x8x96xf32> to vector<8x8x32xf32>
    %cst_75 = arith.constant 2.500000e-01 : f32
    %194 = vector.broadcast %cst_75 : f32 to vector<8x8x32xf32>
    %195 = arith.mulf %193, %194 : vector<8x8x32xf32>
    %196 = arith.truncf %195 : vector<8x8x32xf32> to vector<8x8x32xbf16>
    %197 = vector.extract_strided_slice %192 {offsets = [0, 0, 32], sizes = [8, 8, 32], strides = [1, 1, 1]} : vector<8x8x96xf32> to vector<8x8x32xf32>
    %198 = arith.truncf %197 : vector<8x8x32xf32> to vector<8x8x32xbf16>
    %199 = vector.extract_strided_slice %192 {offsets = [0, 0, 64], sizes = [8, 8, 32], strides = [1, 1, 1]} : vector<8x8x96xf32> to vector<8x8x32xf32>
    %200 = arith.truncf %199 : vector<8x8x32xf32> to vector<8x8x32xbf16>
    %201 = vector.extract_strided_slice %196 {offsets = [0, 0, 0], sizes = [8, 8, 16], strides = [1, 1, 1]} : vector<8x8x32xbf16> to vector<8x8x16xbf16>
    %202 = vector.extract_strided_slice %198 {offsets = [0, 0, 0], sizes = [8, 8, 16], strides = [1, 1, 1]} : vector<8x8x32xbf16> to vector<8x8x16xbf16>
    "tpu.trace_start"() <{level = 10 : i32, message = "bqd,bkd->bqk"}> : () -> ()
    %cst_76 = arith.constant dense<0.000000e+00> : vector<8x8x8xf32>
    %203 = tpu.matmul %201, %202, %cst_76 {dimension_numbers = #tpu.dot_dimension_numbers<[2], [2], [1], [1], [0, 0, 0, 1, 1, 1], [0], [0]>} : vector<8x8x16xbf16>, vector<8x8x16xbf16>, vector<8x8x8xf32> -> vector<8x8x8xf32>
    "tpu.trace_stop"() : () -> ()
    %204 = arith.addf %203, %41 : vector<8x8x8xf32>
    %cst_77 = arith.constant dense<0xFF800000> : vector<8x8xf32>
    %205 = vector.multi_reduction <maximumf>, %204, %cst_77 [2] : vector<8x8x8xf32> to vector<8x8xf32>
    %206 = vector.shape_cast %205 : vector<8x8xf32> to vector<8x8x1xf32>
    %207 = vector.broadcast %206 : vector<8x8x1xf32> to vector<8x8x8xf32>
    %208 = arith.subf %204, %207 : vector<8x8x8xf32>
    %209 = math.exp %208 : vector<8x8x8xf32>
    %cst_78 = arith.constant dense<0.000000e+00> : vector<8x8xf32>
    %210 = vector.multi_reduction <add>, %209, %cst_78 [2] : vector<8x8x8xf32> to vector<8x8xf32>
    %211 = vector.shape_cast %210 : vector<8x8xf32> to vector<8x8x1xf32>
    %212 = tpu.reciprocal %211 {approx = true} : vector<8x8x1xf32> -> vector<8x8x1xf32>
    %213 = vector.broadcast %212 : vector<8x8x1xf32> to vector<8x8x8xf32>
    %214 = arith.mulf %209, %213 : vector<8x8x8xf32>
    %215 = arith.truncf %214 : vector<8x8x8xf32> to vector<8x8x8xbf16>
    %216 = vector.extract_strided_slice %200 {offsets = [0, 0, 0], sizes = [8, 8, 16], strides = [1, 1, 1]} : vector<8x8x32xbf16> to vector<8x8x16xbf16>
    "tpu.trace_start"() <{level = 10 : i32, message = "bqk,bkd->bqd"}> : () -> ()
    %cst_79 = arith.constant dense<0.000000e+00> : vector<8x8x16xf32>
    %217 = tpu.matmul %215, %216, %cst_79 {dimension_numbers = #tpu.dot_dimension_numbers<[2], [1], [1], [2], [0, 0, 0, 1, 1, 2], [0], [0]>} : vector<8x8x8xbf16>, vector<8x8x16xbf16>, vector<8x8x16xf32> -> vector<8x8x16xf32>
    "tpu.trace_stop"() : () -> ()
    %218 = vector.extract_strided_slice %196 {offsets = [0, 0, 16], sizes = [8, 8, 16], strides = [1, 1, 1]} : vector<8x8x32xbf16> to vector<8x8x16xbf16>
    %219 = vector.extract_strided_slice %198 {offsets = [0, 0, 16], sizes = [8, 8, 16], strides = [1, 1, 1]} : vector<8x8x32xbf16> to vector<8x8x16xbf16>
    "tpu.trace_start"() <{level = 10 : i32, message = "bqd,bkd->bqk"}> : () -> ()
    %cst_80 = arith.constant dense<0.000000e+00> : vector<8x8x8xf32>
    %220 = tpu.matmul %218, %219, %cst_80 {dimension_numbers = #tpu.dot_dimension_numbers<[2], [2], [1], [1], [0, 0, 0, 1, 1, 1], [0], [0]>} : vector<8x8x16xbf16>, vector<8x8x16xbf16>, vector<8x8x8xf32> -> vector<8x8x8xf32>
    "tpu.trace_stop"() : () -> ()
    %221 = arith.addf %220, %41 : vector<8x8x8xf32>
    %cst_81 = arith.constant dense<0xFF800000> : vector<8x8xf32>
    %222 = vector.multi_reduction <maximumf>, %221, %cst_81 [2] : vector<8x8x8xf32> to vector<8x8xf32>
    %223 = vector.shape_cast %222 : vector<8x8xf32> to vector<8x8x1xf32>
    %224 = vector.broadcast %223 : vector<8x8x1xf32> to vector<8x8x8xf32>
    %225 = arith.subf %221, %224 : vector<8x8x8xf32>
    %226 = math.exp %225 : vector<8x8x8xf32>
    %cst_82 = arith.constant dense<0.000000e+00> : vector<8x8xf32>
    %227 = vector.multi_reduction <add>, %226, %cst_82 [2] : vector<8x8x8xf32> to vector<8x8xf32>
    %228 = vector.shape_cast %227 : vector<8x8xf32> to vector<8x8x1xf32>
    %229 = tpu.reciprocal %228 {approx = true} : vector<8x8x1xf32> -> vector<8x8x1xf32>
    %230 = vector.broadcast %229 : vector<8x8x1xf32> to vector<8x8x8xf32>
    %231 = arith.mulf %226, %230 : vector<8x8x8xf32>
    %232 = arith.truncf %231 : vector<8x8x8xf32> to vector<8x8x8xbf16>
    %233 = vector.extract_strided_slice %200 {offsets = [0, 0, 16], sizes = [8, 8, 16], strides = [1, 1, 1]} : vector<8x8x32xbf16> to vector<8x8x16xbf16>
    "tpu.trace_start"() <{level = 10 : i32, message = "bqk,bkd->bqd"}> : () -> ()
    %cst_83 = arith.constant dense<0.000000e+00> : vector<8x8x16xf32>
    %234 = tpu.matmul %232, %233, %cst_83 {dimension_numbers = #tpu.dot_dimension_numbers<[2], [1], [1], [2], [0, 0, 0, 1, 1, 2], [0], [0]>} : vector<8x8x8xbf16>, vector<8x8x16xbf16>, vector<8x8x16xf32> -> vector<8x8x16xf32>
    "tpu.trace_stop"() : () -> ()
    %235 = tpu.concatenate %217, %234 in 2 : vector<8x8x16xf32>, vector<8x8x16xf32> -> vector<8x8x32xf32>
    %236 = vector.shape_cast %235 : vector<8x8x32xf32> to vector<64x32xf32>
    %237 = arith.truncf %236 : vector<64x32xf32> to vector<64x32xbf16>
    %c1_84 = arith.constant 1 : index
    %c0_85 = arith.constant 0 : index
    %c0_86 = arith.constant 0 : index
    %238 = vector.load %arg8[%c1_84, %c0_85, %c0_86] : memref<2x32x32xbf16, #tpu.memory_space<vmem>>, vector<1x32x32xbf16>
    %239 = vector.shape_cast %238 : vector<1x32x32xbf16> to vector<32x32xbf16>
    %cst_87 = arith.constant dense<0.000000e+00> : vector<64x32xf32>
    %240 = tpu.matmul %237, %239, %cst_87 {dimension_numbers = #tpu.dot_dimension_numbers<[1], [0], [0], [1], [0, 0, 1, 1], [], []>} : vector<64x32xbf16>, vector<32x32xbf16>, vector<64x32xf32> -> vector<64x32xf32>
    %241 = vector.extract_strided_slice %183 {offsets = [0, 0], sizes = [1, 32], strides = [1, 1]} : vector<6x32xf32> to vector<1x32xf32>
    %242 = vector.broadcast %241 : vector<1x32xf32> to vector<64x32xf32>
    %243 = arith.addf %240, %242 : vector<64x32xf32>
    %244 = arith.addf %181, %243 : vector<64x32xf32>
    %245 = vector.extract_strided_slice %183 {offsets = [1, 0], sizes = [1, 32], strides = [1, 1]} : vector<6x32xf32> to vector<1x32xf32>
    %246 = vector.extract_strided_slice %183 {offsets = [2, 0], sizes = [1, 32], strides = [1, 1]} : vector<6x32xf32> to vector<1x32xf32>
    %cst_88 = arith.constant dense<0.000000e+00> : vector<64xf32>
    %247 = vector.multi_reduction <add>, %244, %cst_88 [1] : vector<64x32xf32> to vector<64xf32>
    %248 = vector.shape_cast %247 : vector<64xf32> to vector<64x1xf32>
    %cst_89 = arith.constant 3.200000e+01 : f32
    %249 = vector.broadcast %cst_89 : f32 to vector<64x1xf32>
    %250 = arith.divf %248, %249 : vector<64x1xf32>
    %251 = vector.broadcast %250 : vector<64x1xf32> to vector<64x32xf32>
    %252 = arith.subf %244, %251 : vector<64x32xf32>
    %253 = arith.mulf %252, %252 : vector<64x32xf32>
    %cst_90 = arith.constant dense<0.000000e+00> : vector<64xf32>
    %254 = vector.multi_reduction <add>, %253, %cst_90 [1] : vector<64x32xf32> to vector<64xf32>
    %255 = vector.shape_cast %254 : vector<64xf32> to vector<64x1xf32>
    %cst_91 = arith.constant 3.200000e+01 : f32
    %256 = vector.broadcast %cst_91 : f32 to vector<64x1xf32>
    %257 = arith.divf %255, %256 : vector<64x1xf32>
    %258 = vector.broadcast %250 : vector<64x1xf32> to vector<64x32xf32>
    %259 = arith.subf %244, %258 : vector<64x32xf32>
    %cst_92 = arith.constant 9.99999996E-13 : f32
    %260 = vector.broadcast %cst_92 : f32 to vector<64x1xf32>
    %261 = arith.addf %257, %260 : vector<64x1xf32>
    %262 = math.rsqrt %261 : vector<64x1xf32>
    %263 = vector.broadcast %262 : vector<64x1xf32> to vector<64x32xf32>
    %264 = arith.mulf %259, %263 : vector<64x32xf32>
    %265 = vector.broadcast %245 : vector<1x32xf32> to vector<64x32xf32>
    %266 = arith.mulf %264, %265 : vector<64x32xf32>
    %267 = vector.broadcast %246 : vector<1x32xf32> to vector<64x32xf32>
    %268 = arith.addf %266, %267 : vector<64x32xf32>
    %269 = arith.truncf %268 : vector<64x32xf32> to vector<64x32xbf16>
    %c1_93 = arith.constant 1 : index
    %c0_94 = arith.constant 0 : index
    %c0_95 = arith.constant 0 : index
    %270 = vector.load %arg10[%c1_93, %c0_94, %c0_95] : memref<2x32x64xbf16, #tpu.memory_space<vmem>>, vector<1x32x64xbf16>
    %271 = vector.shape_cast %270 : vector<1x32x64xbf16> to vector<32x64xbf16>
    %cst_96 = arith.constant dense<0.000000e+00> : vector<64x64xf32>
    %272 = tpu.matmul %269, %271, %cst_96 {dimension_numbers = #tpu.dot_dimension_numbers<[1], [0], [0], [1], [0, 0, 1, 1], [], []>} : vector<64x32xbf16>, vector<32x64xbf16>, vector<64x64xf32> -> vector<64x64xf32>
    %c1_97 = arith.constant 1 : index
    %c0_98 = arith.constant 0 : index
    %c0_99 = arith.constant 0 : index
    %273 = vector.load %arg11[%c1_97, %c0_98, %c0_99] : memref<2x1x64xf32, #tpu.memory_space<vmem>>, vector<1x1x64xf32>
    %274 = vector.shape_cast %273 : vector<1x1x64xf32> to vector<1x64xf32>
    %275 = vector.broadcast %274 : vector<1x64xf32> to vector<64x64xf32>
    %276 = arith.addf %272, %275 : vector<64x64xf32>
    %277 = arith.mulf %276, %276 : vector<64x64xf32>
    %278 = arith.mulf %276, %277 : vector<64x64xf32>
    %cst_100 = arith.constant 4.471500e-02 : f32
    %279 = vector.broadcast %cst_100 : f32 to vector<64x64xf32>
    %280 = arith.mulf %279, %278 : vector<64x64xf32>
    %281 = arith.addf %276, %280 : vector<64x64xf32>
    %cst_101 = arith.constant 0.797884583 : f32
    %282 = vector.broadcast %cst_101 : f32 to vector<64x64xf32>
    %283 = arith.mulf %282, %281 : vector<64x64xf32>
    %284 = math.tanh %283 : vector<64x64xf32>
    %cst_102 = arith.constant 1.000000e+00 : f32
    %285 = vector.broadcast %cst_102 : f32 to vector<64x64xf32>
    %286 = arith.addf %285, %284 : vector<64x64xf32>
    %cst_103 = arith.constant 5.000000e-01 : f32
    %287 = vector.broadcast %cst_103 : f32 to vector<64x64xf32>
    %288 = arith.mulf %287, %286 : vector<64x64xf32>
    %289 = arith.mulf %276, %288 : vector<64x64xf32>
    %290 = arith.truncf %289 : vector<64x64xf32> to vector<64x64xbf16>
    %c1_104 = arith.constant 1 : index
    %c0_105 = arith.constant 0 : index
    %c0_106 = arith.constant 0 : index
    %291 = vector.load %arg12[%c1_104, %c0_105, %c0_106] : memref<2x64x32xbf16, #tpu.memory_space<vmem>>, vector<1x64x32xbf16>
    %292 = vector.shape_cast %291 : vector<1x64x32xbf16> to vector<64x32xbf16>
    %cst_107 = arith.constant dense<0.000000e+00> : vector<64x32xf32>
    %293 = tpu.matmul %290, %292, %cst_107 {dimension_numbers = #tpu.dot_dimension_numbers<[1], [0], [0], [1], [0, 0, 1, 1], [], []>} : vector<64x64xbf16>, vector<64x32xbf16>, vector<64x32xf32> -> vector<64x32xf32>
    %294 = vector.extract_strided_slice %183 {offsets = [3, 0], sizes = [1, 32], strides = [1, 1]} : vector<6x32xf32> to vector<1x32xf32>
    %295 = vector.broadcast %294 : vector<1x32xf32> to vector<64x32xf32>
    %296 = arith.addf %293, %295 : vector<64x32xf32>
    %297 = arith.addf %268, %296 : vector<64x32xf32>
    %298 = vector.extract_strided_slice %183 {offsets = [4, 0], sizes = [1, 32], strides = [1, 1]} : vector<6x32xf32> to vector<1x32xf32>
    %299 = vector.extract_strided_slice %183 {offsets = [5, 0], sizes = [1, 32], strides = [1, 1]} : vector<6x32xf32> to vector<1x32xf32>
    %cst_108 = arith.constant dense<0.000000e+00> : vector<64xf32>
    %300 = vector.multi_reduction <add>, %297, %cst_108 [1] : vector<64x32xf32> to vector<64xf32>
    %301 = vector.shape_cast %300 : vector<64xf32> to vector<64x1xf32>
    %cst_109 = arith.constant 3.200000e+01 : f32
    %302 = vector.broadcast %cst_109 : f32 to vector<64x1xf32>
    %303 = arith.divf %301, %302 : vector<64x1xf32>
    %304 = vector.broadcast %303 : vector<64x1xf32> to vector<64x32xf32>
    %305 = arith.subf %297, %304 : vector<64x32xf32>
    %306 = arith.mulf %305, %305 : vector<64x32xf32>
    %cst_110 = arith.constant dense<0.000000e+00> : vector<64xf32>
    %307 = vector.multi_reduction <add>, %306, %cst_110 [1] : vector<64x32xf32> to vector<64xf32>
    %308 = vector.shape_cast %307 : vector<64xf32> to vector<64x1xf32>
    %cst_111 = arith.constant 3.200000e+01 : f32
    %309 = vector.broadcast %cst_111 : f32 to vector<64x1xf32>
    %310 = arith.divf %308, %309 : vector<64x1xf32>
    %311 = vector.broadcast %303 : vector<64x1xf32> to vector<64x32xf32>
    %312 = arith.subf %297, %311 : vector<64x32xf32>
    %cst_112 = arith.constant 9.99999996E-13 : f32
    %313 = vector.broadcast %cst_112 : f32 to vector<64x1xf32>
    %314 = arith.addf %310, %313 : vector<64x1xf32>
    %315 = math.rsqrt %314 : vector<64x1xf32>
    %316 = vector.broadcast %315 : vector<64x1xf32> to vector<64x32xf32>
    %317 = arith.mulf %312, %316 : vector<64x32xf32>
    %318 = vector.broadcast %298 : vector<1x32xf32> to vector<64x32xf32>
    %319 = arith.mulf %317, %318 : vector<64x32xf32>
    %320 = vector.broadcast %299 : vector<1x32xf32> to vector<64x32xf32>
    %321 = arith.addf %319, %320 : vector<64x32xf32>
    %322 = vector.shape_cast %321 : vector<64x32xf32> to vector<8x8x32xf32>
    %323 = vector.extract_strided_slice %322 {offsets = [0, 0, 0], sizes = [8, 1, 32], strides = [1, 1, 1]} : vector<8x8x32xf32> to vector<8x1x32xf32>
    %324 = vector.shape_cast %323 : vector<8x1x32xf32> to vector<8x32xf32>
    %c0_113 = arith.constant 0 : index
    %c0_114 = arith.constant 0 : index
    %325 = vector.load %arg13[%c0_113, %c0_114] : memref<1x32xf32, #tpu.memory_space<vmem>>, vector<1x32xf32>
    %326 = vector.broadcast %325 : vector<1x32xf32> to vector<8x32xf32>
    %327 = arith.mulf %324, %326 : vector<8x32xf32>
    %cst_115 = arith.constant dense<0.000000e+00> : vector<8xf32>
    %328 = vector.multi_reduction <add>, %327, %cst_115 [1] : vector<8x32xf32> to vector<8xf32>
    %329 = vector.shape_cast %328 : vector<8xf32> to vector<8x1xf32>
    %c0_116 = arith.constant 0 : index
    %c0_117 = arith.constant 0 : index
    %330 = vector.load %arg14[%c0_116, %c0_117] : memref<1x1xf32, #tpu.memory_space<vmem>>, vector<1x1xf32>
    %331 = vector.broadcast %330 : vector<1x1xf32> to vector<8x1xf32>
    %332 = arith.addf %329, %331 : vector<8x1xf32>
    %333 = vector.shape_cast %332 : vector<8x1xf32> to vector<8x1xf32>
    %334 = vector.broadcast %333 : vector<8x1xf32> to vector<8x128xf32>
    %c0_118 = arith.constant 0 : index
    %c0_119 = arith.constant 0 : index
    %335 = vector.load %arg15[%c0_118, %c0_119] : memref<8x128xf32, #tpu.memory_space<vmem>>, vector<8x128xf32>
    tpu.vector_store %arg15[%c0_118, %c0_119], %334 {strides = array<i32>} : memref<8x128xf32, #tpu.memory_space<vmem>>, vector<8x128xf32>,
    return
  }
  func.func @transform_0(%arg0: i32) -> (i32, i32) {
    %c0_i32 = arith.constant 0 : i32
    %c0_i32_0 = arith.constant 0 : i32
    %c0_i32_1 = arith.constant 0 : i32
    return %c0_i32, %c0_i32_0 : i32, i32
  }
  func.func @transform_1(%arg0: i32) -> (i32, i32) {
    %c0_i32 = arith.constant 0 : i32
    %c0_i32_0 = arith.constant 0 : i32
    %c0_i32_1 = arith.constant 0 : i32
    return %c0_i32, %c0_i32_0 : i32, i32
  }
  func.func @transform_2(%arg0: i32) -> (i32, i32) {
    %c0_i32 = arith.constant 0 : i32
    %c0_i32_0 = arith.constant 0 : i32
    %c0_i32_1 = arith.constant 0 : i32
    return %c0_i32, %c0_i32_0 : i32, i32
  }
  func.func @transform_3(%arg0: i32) -> (i32, i32) {
    %c0_i32 = arith.constant 0 : i32
    %c0_i32_0 = arith.constant 0 : i32
    %c0_i32_1 = arith.constant 0 : i32
    return %c0_i32, %c0_i32_0 : i32, i32
  }
  func.func @transform_4(%arg0: i32) -> (i32, i32) {
    %c0_i32 = arith.constant 0 : i32
    %c0_i32_0 = arith.constant 0 : i32
    %c0_i32_1 = arith.constant 0 : i32
    return %c0_i32, %c0_i32_0 : i32, i32
  }
  func.func @transform_5(%arg0: i32) -> (i32, i32, i32) {
    %c0_i32 = arith.constant 0 : i32
    %c0_i32_0 = arith.constant 0 : i32
    %c0_i32_1 = arith.constant 0 : i32
    %c0_i32_2 = arith.constant 0 : i32
    return %c0_i32, %c0_i32_0, %c0_i32_1 : i32, i32, i32
  }
  func.func @transform_6(%arg0: i32) -> (i32, i32, i32) {
    %c0_i32 = arith.constant 0 : i32
    %c0_i32_0 = arith.constant 0 : i32
    %c0_i32_1 = arith.constant 0 : i32
    %c0_i32_2 = arith.constant 0 : i32
    return %c0_i32, %c0_i32_0, %c0_i32_1 : i32, i32, i32
  }
  func.func @transform_7(%arg0: i32) -> (i32, i32, i32) {
    %c0_i32 = arith.constant 0 : i32
    %c0_i32_0 = arith.constant 0 : i32
    %c0_i32_1 = arith.constant 0 : i32
    %c0_i32_2 = arith.constant 0 : i32
    return %c0_i32, %c0_i32_0, %c0_i32_1 : i32, i32, i32
  }
  func.func @transform_8(%arg0: i32) -> (i32, i32, i32) {
    %c0_i32 = arith.constant 0 : i32
    %c0_i32_0 = arith.constant 0 : i32
    %c0_i32_1 = arith.constant 0 : i32
    %c0_i32_2 = arith.constant 0 : i32
    return %c0_i32, %c0_i32_0, %c0_i32_1 : i32, i32, i32
  }
  func.func @transform_9(%arg0: i32) -> (i32, i32, i32) {
    %c0_i32 = arith.constant 0 : i32
    %c0_i32_0 = arith.constant 0 : i32
    %c0_i32_1 = arith.constant 0 : i32
    %c0_i32_2 = arith.constant 0 : i32
    return %c0_i32, %c0_i32_0, %c0_i32_1 : i32, i32, i32
  }
  func.func @transform_10(%arg0: i32) -> (i32, i32, i32) {
    %c0_i32 = arith.constant 0 : i32
    %c0_i32_0 = arith.constant 0 : i32
    %c0_i32_1 = arith.constant 0 : i32
    %c0_i32_2 = arith.constant 0 : i32
    return %c0_i32, %c0_i32_0, %c0_i32_1 : i32, i32, i32
  }
  func.func @transform_11(%arg0: i32) -> (i32, i32, i32) {
    %c0_i32 = arith.constant 0 : i32
    %c0_i32_0 = arith.constant 0 : i32
    %c0_i32_1 = arith.constant 0 : i32
    %c0_i32_2 = arith.constant 0 : i32
    return %c0_i32, %c0_i32_0, %c0_i32_1 : i32, i32, i32
  }
  func.func @transform_12(%arg0: i32) -> (i32, i32) {
    %c0_i32 = arith.constant 0 : i32
    %c0_i32_0 = arith.constant 0 : i32
    %c0_i32_1 = arith.constant 0 : i32
    return %c0_i32, %c0_i32_0 : i32, i32
  }
  func.func @transform_13(%arg0: i32) -> (i32, i32) {
    %c0_i32 = arith.constant 0 : i32
    %c0_i32_0 = arith.constant 0 : i32
    %c0_i32_1 = arith.constant 0 : i32
    return %c0_i32, %c0_i32_0 : i32, i32
  }
  func.func @transform_14(%arg0: i32) -> (i32, i32) {
    %c0_i32 = arith.constant 0 : i32
    %c0_i32_0 = arith.constant 0 : i32
    %c0_i32_1 = arith.constant 0 : i32
    return %c0_i32, %c0_i32_0 : i32, i32
  }
}

</mosaic_0001>

<llo_original>
// kernel: squeeze.1
$region0: #{squeeze.1}
  %s0 = inlined_call_operand.vmem [shape: f32[8], index: 0, kind: input, shape index: {}]
  %s1 = inlined_call_operand.hbm [shape: f32[2,4], index: 1, kind: output, shape index: {}]
  $region1: #{squeeze.1} parent=0
    #allocation0 [shape = 'u8[1024]{0}', space=vmem, size = 0x400, scoped, tag = 'operand span for operand 1']
    #allocation1 [shape = 's32[1]{0}', space=sflag, size = 0x4, scoped, tag = 'scoped memory for squeeze.1']
    #allocation2 [shape = 'u8[4096]{0}', space=vmem, size = 0x1000, scoped, tag = 'scoped mem for output reshape']
    #allocation3 [shape = 'u8[4096]{0}', space=vmem, size = 0x1000, scoped, tag = 'scoped mem for input reshape']
    %2 = vsyncpa [#allocation1], 0
    %s4 = ssub.s32 2, 1
    %v5 = vld [vmem:[%s0] sm:%s4]
    %6 = vst [vmem:[#allocation3] sm:%s4] %v5
    %v7 = vld [vmem:[#allocation3] sm:$0x1]
    %vm8 = vcmask 31744
    %9 = vst.msk [vmem:[#allocation2] sm:$0x1] %vm8, %v7
    %v10 = vld [vmem:[#allocation3] sm:$0x1]
    %11 = vrot.lane.b32.xlu0 %v10, 124
    %v12 = vpop.permute.xlu0 %11
    %vm13 = vcmask 31744
    %s14 = scalar_lea.vmem [#allocation2], 1
    %15 = vst.msk [vmem:[%s14] sm:$0x1] %vm13, %v12
    %s17 = ssub.s32 4, 1
    %v18 = vld [vmem:[#allocation2] sm:%s17]
    %s20 = ssub.s32 4, 1
    %21 = vst [vmem:[#allocation0] sm:%s20] %v18
    %23 = vsyncadd [#allocation1], 0
    %s25 = sshll.u32 [#allocation0], 4
    %s26 = int_to_ptr.vmem [resolvable:$true] %s25
    %s27 = sshll.u32 %s1, 4
    %s28 = int_to_ptr.hbm [resolvable:$true] %s27
    %30 = dma.vmem_to_hbm [thread:$0]  %s26, 32, %s28, [#allocation1]
    %32 = dma.done [#allocation1], 32
    %33 = vsyncpa [#allocation1], 1

// kernel: _lambda_.1
$region0: #{_lambda_.1}
  #allocation0 [shape = 'u32[]', space=smem, size = 0x4, offset = 0x4, fixed_abs, tag = 'smem constant byte address 0x4 - core index']
  #allocation1 [shape = 'u32[72,128]{1,0:T(1,128)}', space=vmem, size = 0x9000, scoped, tag = 'internal scratch']
  #allocation2 [shape = 'f32[1,1]{1,0:T(1,128)S(1)}', space=vmem, size = 0x200, scoped, tag = 'scoped memory for _lambda_.1']
  %s0 = inlined_call_operand.vmem [shape: s32[64,1], index: 0, kind: input, shape index: {}]
  %s1 = inlined_call_operand.vmem [shape: f32[8,8], index: 1, kind: input, shape index: {}]
  %s2 = inlined_call_operand.vmem [shape: f32[64,32], index: 2, kind: input, shape index: {}]
  %s3 = inlined_call_operand.vmem [shape: f32[64,32], index: 3, kind: input, shape index: {}]
  %s4 = inlined_call_operand.vmem [shape: f32[2,32], index: 4, kind: input, shape index: {}]
  %s5 = inlined_call_operand.hbm [shape: bf16[2,32,96], index: 5, kind: input, shape index: {}]
  %s6 = inlined_call_operand.vmem [shape: f32[2,1,96], index: 6, kind: input, shape index: {}]
  %s7 = inlined_call_operand.hbm [shape: bf16[2,32,32], index: 7, kind: input, shape index: {}]
  %s8 = inlined_call_operand.vmem [shape: f32[2,6,32], index: 8, kind: input, shape index: {}]
  %s9 = inlined_call_operand.hbm [shape: bf16[2,32,64], index: 9, kind: input, shape index: {}]
  %s10 = inlined_call_operand.vmem [shape: f32[2,1,64], index: 10, kind: input, shape index: {}]
  %s11 = inlined_call_operand.vmem [shape: bf16[2,64,32], index: 11, kind: input, shape index: {}]
  %s12 = inlined_call_operand.vmem [shape: f32[1,32], index: 12, kind: input, shape index: {}]
  %s13 = inlined_call_operand.<no memory space> [shape: f32[1,1], index: 13, kind: input, shape index: {}]
  %s14 = inlined_call_operand.vmem [shape: f32[8,128], index: 14, kind: output, shape index: {}]
  %s15 = sld [smem:[#allocation0]]
  $region78: #{_lambda_.1} parent=0
    _
  %s17 = ssub.s32 1, %s15
  %s18 = scalar_select 0, %s17, %s15
  %v19 = vstv %s13
  %20 = vst [vmem:[#allocation2] sm:$0x1] %v19
  $region1: #{_lambda_.1} parent=0
    #allocation3 [shape = 'u8[16384]{0}', space=vmem, size = 0x4000, scoped, tag = 'input window, operand 5, single buffered']
    #allocation4 [shape = 's32[1]{0}', space=sflag, size = 0x4, scoped, tag = 'scoped memory for _lambda_.1']
    #allocation5 [shape = 'u8[16384]{0}', space=vmem, size = 0x4000, scoped, tag = 'input window, operand 7, single buffered']
    #allocation6 [shape = 's32[1]{0}', space=sflag, size = 0x4, scoped, tag = 'scoped memory for _lambda_.1']
    #allocation7 [shape = 'u8[16384]{0}', space=vmem, size = 0x4000, scoped, tag = 'input window, operand 9, single buffered']
    %21 = vsyncpa [#allocation4], 0
    %22 = vsyncpa [#allocation6], 0
    // Predicated region
    $region2: #{_lambda_.1} parent=1 // pred_check
      _
    $region3: #{_lambda_.1} parent=1 // pred_check_branch
      %24 = sbr.rel (0) target = $region5
    $region4: #{_lambda_.1} parent=1 // pred_region
      _
    $region5: #{_lambda_.1} parent=1 // pred_fallthru
      _
    // Predicated region
    $region6: #{_lambda_.1} parent=1 // pred_check
      _
    $region7: #{_lambda_.1} parent=1 // pred_check_branch
      %26 = sbr.rel (0) target = $region9
    $region8: #{_lambda_.1} parent=1 // pred_region
      _
    $region9: #{_lambda_.1} parent=1 // pred_fallthru
      _
    // Predicated region
    $region10: #{_lambda_.1} parent=1 // pred_check
      _
    $region11: #{_lambda_.1} parent=1 // pred_check_branch
      %28 = sbr.rel (0) target = $region13
    $region12: #{_lambda_.1} parent=1 // pred_region
      _
    $region13: #{_lambda_.1} parent=1 // pred_fallthru
      _
    // Predicated region
    $region14: #{_lambda_.1} parent=1 // pred_check
      _
    $region15: #{_lambda_.1} parent=1 // pred_check_branch
      %30 = sbr.rel (0) target = $region17
    $region16: #{_lambda_.1} parent=1 // pred_region
      _
    $region17: #{_lambda_.1} parent=1 // pred_fallthru
      _
    // Predicated region
    $region18: #{_lambda_.1} parent=1 // pred_check
      _
    $region19: #{_lambda_.1} parent=1 // pred_check_branch
      %32 = sbr.rel (0) target = $region21
    $region20: #{_lambda_.1} parent=1 // pred_region
      _
    $region21: #{_lambda_.1} parent=1 // pred_fallthru
      _
    // Predicated region
    $region22: #{_lambda_.1} parent=1 // pred_check
      _
    $region23: #{_lambda_.1} parent=1 // pred_check_branch
      %34 = sbr.rel (0) target = $region25
    $region24: #{_lambda_.1} parent=1 // pred_region
      %36 = vsyncadd [#allocation4], 0
      %s37 = sshll.u32 %s5, 4
      %s38 = int_to_ptr.hbm [resolvable:$true] %s37
      %s39 = sshll.u32 [#allocation3], 4
      %s40 = int_to_ptr.vmem [resolvable:$true] %s39
      %45 = dma.hbm_to_vmem [thread:$0]  %s38, 512, %s40, [#allocation4], 64, 64, 4
    $region25: #{_lambda_.1} parent=1 // pred_fallthru
      _
    // Predicated region
    $region26: #{_lambda_.1} parent=1 // pred_check
      _
    $region27: #{_lambda_.1} parent=1 // pred_check_branch
      %47 = sbr.rel (0) target = $region29
    $region28: #{_lambda_.1} parent=1 // pred_region
      _
    $region29: #{_lambda_.1} parent=1 // pred_fallthru
      _
    // Predicated region
    $region30: #{_lambda_.1} parent=1 // pred_check
      _
    $region31: #{_lambda_.1} parent=1 // pred_check_branch
      %49 = sbr.rel (0) target = $region33
    $region32: #{_lambda_.1} parent=1 // pred_region
      %51 = vsyncadd [#allocation6], 0
      %s52 = sshll.u32 %s7, 4
      %s53 = int_to_ptr.hbm [resolvable:$true] %s52
      %s54 = sshll.u32 [#allocation5], 4
      %s55 = int_to_ptr.vmem [resolvable:$true] %s54
      %60 = dma.hbm_to_vmem [thread:$0]  %s53, 512, %s55, [#allocation6], 64, 64, 4
    $region33: #{_lambda_.1} parent=1 // pred_fallthru
      _
    // Predicated region
    $region34: #{_lambda_.1} parent=1 // pred_check
      _
    $region35: #{_lambda_.1} parent=1 // pred_check_branch
      %62 = sbr.rel (0) target = $region37
    $region36: #{_lambda_.1} parent=1 // pred_region
      _
    $region37: #{_lambda_.1} parent=1 // pred_fallthru
      _
    // Predicated region
    $region38: #{_lambda_.1} parent=1 // pred_check
      _
    $region39: #{_lambda_.1} parent=1 // pred_check_branch
      %64 = sbr.rel (0) target = $region41
    $region40: #{_lambda_.1} parent=1 // pred_region
      %66 = vsyncadd [#allocation6], 0
      %s67 = sshll.u32 %s9, 4
      %s68 = int_to_ptr.hbm [resolvable:$true] %s67
      %s69 = sshll.u32 [#allocation7], 4
      %s70 = int_to_ptr.vmem [resolvable:$true] %s69
      %75 = dma.hbm_to_vmem [thread:$0]  %s68, 512, %s70, [#allocation6], 64, 64, 4
    $region41: #{_lambda_.1} parent=1 // pred_fallthru
      _
    // Predicated region
    $region42: #{_lambda_.1} parent=1 // pred_check
      _
    $region43: #{_lambda_.1} parent=1 // pred_check_branch
      %77 = sbr.rel (0) target = $region45
    $region44: #{_lambda_.1} parent=1 // pred_region
      _
    $region45: #{_lambda_.1} parent=1 // pred_fallthru
      _
    // Predicated region
    $region46: #{_lambda_.1} parent=1 // pred_check
      _
    $region47: #{_lambda_.1} parent=1 // pred_check_branch
      %79 = sbr.rel (0) target = $region49
    $region48: #{_lambda_.1} parent=1 // pred_region
      _
    $region49: #{_lambda_.1} parent=1 // pred_fallthru
      _
    // Predicated region
    $region50: #{_lambda_.1} parent=1 // pred_check
      _
    $region51: #{_lambda_.1} parent=1 // pred_check_branch
      %81 = sbr.rel (0) target = $region53
    $region52: #{_lambda_.1} parent=1 // pred_region
      _
    $region53: #{_lambda_.1} parent=1 // pred_fallthru
      _
    // Predicated region
    $region54: #{_lambda_.1} parent=1 // pred_check
      _
    $region55: #{_lambda_.1} parent=1 // pred_check_branch
      %83 = sbr.rel (0) target = $region57
    $region56: #{_lambda_.1} parent=1 // pred_region
      _
    $region57: #{_lambda_.1} parent=1 // pred_fallthru
      _
    // Predicated region
    $region58: #{_lambda_.1} parent=1 // pred_check
      _
    $region59: #{_lambda_.1} parent=1 // pred_check_branch
      %85 = sbr.rel (0) target = $region61
    $region60: #{_lambda_.1} parent=1 // pred_region
      %87 = dma.done [#allocation4], 512
    $region61: #{_lambda_.1} parent=1 // pred_fallthru
      _
    // Predicated region
    $region62: #{_lambda_.1} parent=1 // pred_check
      _
    $region63: #{_lambda_.1} parent=1 // pred_check_branch
      %89 = sbr.rel (0) target = $region65
    $region64: #{_lambda_.1} parent=1 // pred_region
      %91 = dma.done [#allocation6], 512
    $region65: #{_lambda_.1} parent=1 // pred_fallthru
      _
    // Predicated region
    $region66: #{_lambda_.1} parent=1 // pred_check
      _
    $region67: #{_lambda_.1} parent=1 // pred_check_branch
      %93 = sbr.rel (0) target = $region69
    $region68: #{_lambda_.1} parent=1 // pred_region
      %95 = dma.done [#allocation6], 512
    $region69: #{_lambda_.1} parent=1 // pred_fallthru
      _
    %v97 = vld [vmem:[%s0] sm:$0xff]
    %v98 = vld [vmem:[%s0 + $0x8] sm:$0xff]
    %v99 = vld [vmem:[%s0 + $0x10] sm:$0xff]
    %v100 = vld [vmem:[%s0 + $0x18] sm:$0xff]
    %v101 = vld [vmem:[%s0 + $0x20] sm:$0xff]
    %v102 = vld [vmem:[%s0 + $0x28] sm:$0xff]
    %v103 = vld [vmem:[%s0 + $0x30] sm:$0xff]
    %v104 = vld [vmem:[%s0 + $0x38] sm:$0xff]
    %v105 = vlaneseq
    %v106 = vand.u32 %v105, 127
    %107 = vset.pattern.permute.xlu0 0
    %108 = vperm.xlu0 %107, %v97
    %v109 = vpop.permute.xlu0 %108
    %110 = vset.pattern.permute.xlu0 0
    %111 = vperm.xlu0 %110, %v98
    %v112 = vpop.permute.xlu0 %111
    %113 = vset.pattern.permute.xlu0 0
    %114 = vperm.xlu0 %113, %v99
    %v115 = vpop.permute.xlu0 %114
    %116 = vset.pattern.permute.xlu0 0
    %117 = vperm.xlu0 %116, %v100
    %v118 = vpop.permute.xlu0 %117
    %119 = vset.pattern.permute.xlu0 0
    %120 = vperm.xlu0 %119, %v101
    %v121 = vpop.permute.xlu0 %120
    %122 = vset.pattern.permute.xlu0 0
    %123 = vperm.xlu0 %122, %v102
    %v124 = vpop.permute.xlu0 %123
    %125 = vset.pattern.permute.xlu0 0
    %126 = vperm.xlu0 %125, %v103
    %v127 = vpop.permute.xlu0 %126
    %128 = vset.pattern.permute.xlu0 0
    %129 = vperm.xlu0 %128, %v104
    %v130 = vpop.permute.xlu0 %129
    %vm131 = vcmp.eq.s32.totalorder %v109, %v106
    %vm132 = vcmp.eq.s32.totalorder %v112, %v106
    %vm133 = vcmp.eq.s32.totalorder %v115, %v106
    %vm134 = vcmp.eq.s32.totalorder %v118, %v106
    %vm135 = vcmp.eq.s32.totalorder %v121, %v106
    %vm136 = vcmp.eq.s32.totalorder %v124, %v106
    %vm137 = vcmp.eq.s32.totalorder %v127, %v106
    %vm138 = vcmp.eq.s32.totalorder %v130, %v106
    %v139 = vsel %vm131, 1, 0
    %v140 = vsel %vm132, 1, 0
    %v141 = vsel %vm133, 1, 0
    %v142 = vsel %vm134, 1, 0
    %v143 = vsel %vm135, 1, 0
    %v144 = vsel %vm136, 1, 0
    %v145 = vsel %vm137, 1, 0
    %v146 = vsel %vm138, 1, 0
    %v147 = vcvt.s32.f32 %v139
    %v148 = vcvt.s32.f32 %v140
    %v149 = vcvt.s32.f32 %v141
    %v150 = vcvt.s32.f32 %v142
    %v151 = vcvt.s32.f32 %v143
    %v152 = vcvt.s32.f32 %v144
    %v153 = vcvt.s32.f32 %v145
    %v154 = vcvt.s32.f32 %v146
    %v155 = vld [vmem:[%s2] sm:$0xff]
    %v156 = vld [vmem:[%s2 + $0x8] sm:$0xff]
    %v157 = vld [vmem:[%s2 + $0x10] sm:$0xff]
    %v158 = vld [vmem:[%s2 + $0x18] sm:$0xff]
    %v159 = vld [vmem:[%s2 + $0x20] sm:$0xff]
    %v160 = vld [vmem:[%s2 + $0x28] sm:$0xff]
    %v161 = vld [vmem:[%s2 + $0x30] sm:$0xff]
    %v162 = vld [vmem:[%s2 + $0x38] sm:$0xff]
    %v163 = vld [vmem:[%s3] sm:$0xff]
    %v164 = vld [vmem:[%s3 + $0x8] sm:$0xff]
    %v165 = vld [vmem:[%s3 + $0x10] sm:$0xff]
    %v166 = vld [vmem:[%s3 + $0x18] sm:$0xff]
    %v167 = vld [vmem:[%s3 + $0x20] sm:$0xff]
    %v168 = vld [vmem:[%s3 + $0x28] sm:$0xff]
    %v169 = vld [vmem:[%s3 + $0x30] sm:$0xff]
    %v170 = vld [vmem:[%s3 + $0x38] sm:$0xff]
    %vm171 = vcmask 523264
    %v173 = vsel %vm171, %v147, 0
    %v176 = vsel %vm171, %v148, 0
    %v179 = vsel %vm171, %v149, 0
    %v182 = vsel %vm171, %v150, 0
    %v185 = vsel %vm171, %v151, 0
    %v188 = vsel %vm171, %v152, 0
    %v191 = vsel %vm171, %v153, 0
    %v194 = vsel %vm171, %v154, 0
    %196 = vmatpush.msra.mxu0 0.0
    %197 = vmatpush.msra.mxu0 0.0
    %198 = vmatpush.msra.mxu0 0.0
    %199 = vmatpush.msra.mxu0 0.0
    %200 = vmatpush.msra.mxu0 0.0
    %201 = vmatpush.msra.mxu0 0.0
    %202 = vmatpush.msra.mxu0 0.0
    %203 = vmatpush.msra.mxu0 0.0
    %204 = vmatpush.msra.mxu0 %v162
    %205 = vmatpush.msra.mxu0 %v161
    %206 = vmatpush.msra.mxu0 %v160
    %207 = vmatpush.msra.mxu0 %v159
    %208 = vmatpush.msra.mxu0 %v158
    %209 = vmatpush.msra.mxu0 %v157
    %210 = vmatpush.msra.mxu0 %v156
    %211 = vmatpush.msra.mxu0 %v155
    %212 = vmatmul.f32.gmra.mxu0 %v173
    %v213 = vpop.f32.mrf.mxu0
    %v214 = vadd.f32 %v163, %v213
    %215 = vmatmul.f32.gmra.mxu0 %v176
    %v216 = vpop.f32.mrf.mxu0
    %v217 = vadd.f32 %v164, %v216
    %218 = vmatmul.f32.gmra.mxu0 %v179
    %v219 = vpop.f32.mrf.mxu0
    %v220 = vadd.f32 %v165, %v219
    %221 = vmatmul.f32.gmra.mxu0 %v182
    %v222 = vpop.f32.mrf.mxu0
    %v223 = vadd.f32 %v166, %v222
    %224 = vmatmul.f32.gmra.mxu0 %v185
    %v225 = vpop.f32.mrf.mxu0
    %v226 = vadd.f32 %v167, %v225
    %227 = vmatmul.f32.gmra.mxu0 %v188
    %v228 = vpop.f32.mrf.mxu0
    %v229 = vadd.f32 %v168, %v228
    %230 = vmatmul.f32.gmra.mxu0 %v191
    %v231 = vpop.f32.mrf.mxu0
    %v232 = vadd.f32 %v169, %v231
    %233 = vmatmul.f32.gmra.mxu0 %v194
    %v234 = vpop.f32.mrf.mxu0
    %v235 = vadd.f32 %v170, %v234
    %236 = vdwg.mxu0
    %v237 = vld [vmem:[%s4] sm:$0x1]
    %v238 = vld [vmem:[%s4 + $0x1] sm:$0x1]
    %vm239 = vcmask 261120
    %v240 = vsel %vm239, %v214, 0.0
    %241 = vadd.xlane.f32.xlu0 %v240
    %v242 = vpop.xlane.xlu0 %241
    %v243 = vsel %vm239, %v217, 0.0
    %244 = vadd.xlane.f32.xlu0 %v243
    %v245 = vpop.xlane.xlu0 %244
    %v246 = vsel %vm239, %v220, 0.0
    %247 = vadd.xlane.f32.xlu0 %v246
    %v248 = vpop.xlane.xlu0 %247
    %v249 = vsel %vm239, %v223, 0.0
    %250 = vadd.xlane.f32.xlu0 %v249
    %v251 = vpop.xlane.xlu0 %250
    %v252 = vsel %vm239, %v226, 0.0
    %253 = vadd.xlane.f32.xlu0 %v252
    %v254 = vpop.xlane.xlu0 %253
    %v255 = vsel %vm239, %v229, 0.0
    %256 = vadd.xlane.f32.xlu0 %v255
    %v257 = vpop.xlane.xlu0 %256
    %v258 = vsel %vm239, %v232, 0.0
    %259 = vadd.xlane.f32.xlu0 %v258
    %v260 = vpop.xlane.xlu0 %259
    %v261 = vsel %vm239, %v235, 0.0
    %262 = vadd.xlane.f32.xlu0 %v261
    %v263 = vpop.xlane.xlu0 %262
    %v264 = vrcp.pop 32.0
    %v265 = vmul.f32 32.0, %v264
    %v266 = vsub.f32 1.0, %v265
    %v267 = vmul.f32 %v264, %v266
    %v268 = vadd.f32 %v264, %v267
    %vm269 = vweird.f32 %v264
    %v270 = vsel %vm269, %v264, %v268
    %v271 = vmul.f32 %v242, %v270
    %v272 = vmul.f32 %v245, %v270
    %v273 = vmul.f32 %v248, %v270
    %v274 = vmul.f32 %v251, %v270
    %v275 = vmul.f32 %v254, %v270
    %v276 = vmul.f32 %v257, %v270
    %v277 = vmul.f32 %v260, %v270
    %v278 = vmul.f32 %v263, %v270
    %v279 = vsub.f32 %v214, %v271
    %v280 = vsub.f32 %v217, %v272
    %v281 = vsub.f32 %v220, %v273
    %v282 = vsub.f32 %v223, %v274
    %v283 = vsub.f32 %v226, %v275
    %v284 = vsub.f32 %v229, %v276
    %v285 = vsub.f32 %v232, %v277
    %v286 = vsub.f32 %v235, %v278
    %v287 = vmul.f32 %v279, %v279
    %v288 = vmul.f32 %v280, %v280
    %v289 = vmul.f32 %v281, %v281
    %v290 = vmul.f32 %v282, %v282
    %v291 = vmul.f32 %v283, %v283
    %v292 = vmul.f32 %v284, %v284
    %v293 = vmul.f32 %v285, %v285
    %v294 = vmul.f32 %v286, %v286
    %v295 = vsel %vm239, %v287, 0.0
    %296 = vadd.xlane.f32.xlu0 %v295
    %v297 = vpop.xlane.xlu0 %296
    %v298 = vsel %vm239, %v288, 0.0
    %299 = vadd.xlane.f32.xlu0 %v298
    %v300 = vpop.xlane.xlu0 %299
    %v301 = vsel %vm239, %v289, 0.0
    %302 = vadd.xlane.f32.xlu0 %v301
    %v303 = vpop.xlane.xlu0 %302
    %v304 = vsel %vm239, %v290, 0.0
    %305 = vadd.xlane.f32.xlu0 %v304
    %v306 = vpop.xlane.xlu0 %305
    %v307 = vsel %vm239, %v291, 0.0
    %308 = vadd.xlane.f32.xlu0 %v307
    %v309 = vpop.xlane.xlu0 %308
    %v310 = vsel %vm239, %v292, 0.0
    %311 = vadd.xlane.f32.xlu0 %v310
    %v312 = vpop.xlane.xlu0 %311
    %v313 = vsel %vm239, %v293, 0.0
    %314 = vadd.xlane.f32.xlu0 %v313
    %v315 = vpop.xlane.xlu0 %314
    %v316 = vsel %vm239, %v294, 0.0
    %317 = vadd.xlane.f32.xlu0 %v316
    %v318 = vpop.xlane.xlu0 %317
    %v319 = vmul.f32 %v297, %v270
    %v320 = vmul.f32 %v300, %v270
    %v321 = vmul.f32 %v303, %v270
    %v322 = vmul.f32 %v306, %v270
    %v323 = vmul.f32 %v309, %v270
    %v324 = vmul.f32 %v312, %v270
    %v325 = vmul.f32 %v315, %v270
    %v326 = vmul.f32 %v318, %v270
    %v327 = vadd.f32 %v319, 1e-12
    %v328 = vadd.f32 %v320, 1e-12
    %v329 = vadd.f32 %v321, 1e-12
    %v330 = vadd.f32 %v322, 1e-12
    %v331 = vadd.f32 %v323, 1e-12
    %v332 = vadd.f32 %v324, 1e-12
    %v333 = vadd.f32 %v325, 1e-12
    %v334 = vadd.f32 %v326, 1e-12
    %v335 = vrsqrt.pop %v327
    %v336 = vmul.f32 %v335, %v327
    %v337 = vmul.f32 %v336, %v335
    %v338 = vmul.f32 0.5, %v337
    %v339 = vsub.f32 1.5, %v338
    %v340 = vmul.f32 %v335, %v339
    %vm341 = vweird.f32 %v327
    %vm342 = vweird.f32 %v335
    %vm343 = vmor %vm341, %vm342
    %v344 = vsel %vm343, %v335, %v340
    %v345 = vrsqrt.pop %v328
    %v346 = vmul.f32 %v345, %v328
    %v347 = vmul.f32 %v346, %v345
    %v348 = vmul.f32 0.5, %v347
    %v349 = vsub.f32 1.5, %v348
    %v350 = vmul.f32 %v345, %v349
    %vm351 = vweird.f32 %v328
    %vm352 = vweird.f32 %v345
    %vm353 = vmor %vm351, %vm352
    %v354 = vsel %vm353, %v345, %v350
    %v355 = vrsqrt.pop %v329
    %v356 = vmul.f32 %v355, %v329
    %v357 = vmul.f32 %v356, %v355
    %v358 = vmul.f32 0.5, %v357
    %v359 = vsub.f32 1.5, %v358
    %v360 = vmul.f32 %v355, %v359
    %vm361 = vweird.f32 %v329
    %vm362 = vweird.f32 %v355
    %vm363 = vmor %vm361, %vm362
    %v364 = vsel %vm363, %v355, %v360
    %v365 = vrsqrt.pop %v330
    %v366 = vmul.f32 %v365, %v330
    %v367 = vmul.f32 %v366, %v365
    %v368 = vmul.f32 0.5, %v367
    %v369 = vsub.f32 1.5, %v368
    %v370 = vmul.f32 %v365, %v369
    %vm371 = vweird.f32 %v330
    %vm372 = vweird.f32 %v365
    %vm373 = vmor %vm371, %vm372
    %v374 = vsel %vm373, %v365, %v370
    %v375 = vrsqrt.pop %v331
    %v376 = vmul.f32 %v375, %v331
    %v377 = vmul.f32 %v376, %v375
    %v378 = vmul.f32 0.5, %v377
    %v379 = vsub.f32 1.5, %v378
    %v380 = vmul.f32 %v375, %v379
    %vm381 = vweird.f32 %v331
    %vm382 = vweird.f32 %v375
    %vm383 = vmor %vm381, %vm382
    %v384 = vsel %vm383, %v375, %v380
    %v385 = vrsqrt.pop %v332
    %v386 = vmul.f32 %v385, %v332
    %v387 = vmul.f32 %v386, %v385
    %v388 = vmul.f32 0.5, %v387
    %v389 = vsub.f32 1.5, %v388
    %v390 = vmul.f32 %v385, %v389
    %vm391 = vweird.f32 %v332
    %vm392 = vweird.f32 %v385
    %vm393 = vmor %vm391, %vm392
    %v394 = vsel %vm393, %v385, %v390
    %v395 = vrsqrt.pop %v333
    %v396 = vmul.f32 %v395, %v333
    %v397 = vmul.f32 %v396, %v395
    %v398 = vmul.f32 0.5, %v397
    %v399 = vsub.f32 1.5, %v398
    %v400 = vmul.f32 %v395, %v399
    %vm401 = vweird.f32 %v333
    %vm402 = vweird.f32 %v395
    %vm403 = vmor %vm401, %vm402
    %v404 = vsel %vm403, %v395, %v400
    %v405 = vrsqrt.pop %v334
    %v406 = vmul.f32 %v405, %v334
    %v407 = vmul.f32 %v406, %v405
    %v408 = vmul.f32 0.5, %v407
    %v409 = vsub.f32 1.5, %v408
    %v410 = vmul.f32 %v405, %v409
    %vm411 = vweird.f32 %v334
    %vm412 = vweird.f32 %v405
    %vm413 = vmor %vm411, %vm412
    %v414 = vsel %vm413, %v405, %v410
    %v415 = vmul.f32 %v279, %v344
    %v416 = vmul.f32 %v280, %v354
    %v417 = vmul.f32 %v281, %v364
    %v418 = vmul.f32 %v282, %v374
    %v419 = vmul.f32 %v283, %v384
    %v420 = vmul.f32 %v284, %v394
    %v421 = vmul.f32 %v285, %v404
    %v422 = vmul.f32 %v286, %v414
    %v423 = vperm.slane %v237, 0
    %v424 = vmul.f32 %v415, %v423
    %v425 = vmul.f32 %v416, %v423
    %v426 = vmul.f32 %v417, %v423
    %v427 = vmul.f32 %v418, %v423
    %v428 = vmul.f32 %v419, %v423
    %v429 = vmul.f32 %v420, %v423
    %v430 = vmul.f32 %v421, %v423
    %v431 = vmul.f32 %v422, %v423
    %v432 = vperm.slane %v238, 0
    %v433 = vadd.f32 %v424, %v432
    %v434 = vadd.f32 %v425, %v432
    %v435 = vadd.f32 %v426, %v432
    %v436 = vadd.f32 %v427, %v432
    %v437 = vadd.f32 %v428, %v432
    %v438 = vadd.f32 %v429, %v432
    %v439 = vadd.f32 %v430, %v432
    %v440 = vadd.f32 %v431, %v432
    %v441 = vld [vmem:[%s1] sm:$0xff]
    %v442 = vsub.f32 1.0, %v441
    %v443 = vmul.f32 %v442, -1e+09
    %v445 = vrot.slane %v443, 1
    %v446 = vrot.slane %v443, 2
    %v447 = vrot.slane %v443, 3
    %v448 = vrot.slane %v443, 4
    %v449 = vrot.slane %v443, 5
    %v450 = vrot.slane %v443, 6
    %v451 = vrot.slane %v443, 7
    %v452 = vperm.slane %v443, 0
    %v453 = vperm.slane %v445, 0
    %v454 = vperm.slane %v446, 0
    %v455 = vperm.slane %v447, 0
    %v456 = vperm.slane %v448, 0
    %v457 = vperm.slane %v449, 0
    %v458 = vperm.slane %v450, 0
    %v459 = vperm.slane %v451, 0
    %v468 = vld [vmem:[%s8] sm:$0x3f]
    %v469 = vpack.c.bf16 %v434, %v433
    %v470 = vpack.c.bf16 %v436, %v435
    %v471 = vpack.c.bf16 %v438, %v437
    %v472 = vpack.c.bf16 %v440, %v439
    %v473 = vld [vmem:[#allocation3] sm:$0xf]
    %v474 = vld [vmem:[#allocation3 + $0x4] sm:$0xf]
    %v475 = vld [vmem:[#allocation3 + $0x8] sm:$0xf]
    %v476 = vld [vmem:[#allocation3 + $0xc] sm:$0xf]
    %v477 = vld [vmem:[%s6] sm:$0x1]
    %v479 = vperm.slane %v477, 0
    %v485 = vunpack.c.l.b16 %v473
    %v486 = vunpack.c.l.b16 %v474
    %v487 = vunpack.c.l.b16 %v475
    %v488 = vunpack.c.l.b16 %v476
    %v489 = vpack.c.b16 %v486, %v485
    %v490 = vpack.c.b16 %v488, %v487
    %v494 = vsel %vm239, %v469, 0
    %v497 = vsel %vm239, %v470, 0
    %v500 = vsel %vm239, %v471, 0
    %v503 = vsel %vm239, %v472, 0
    %505 = vmatpush.bf16.msra.mxu0 0
    %506 = vmatpush.bf16.msra.mxu0 0
    %507 = vmatpush.bf16.msra.mxu0 0
    %508 = vmatpush.bf16.msra.mxu0 0
    %509 = vmatpush.bf16.msra.mxu0 0
    %510 = vmatpush.bf16.msra.mxu0 0
    %511 = vmatpush.bf16.msra.mxu0 %v490
    %512 = vmatpush.bf16.msra.mxu0 %v489
    %513 = vmatmul.bf16.gmra.mxu0 %v494
    %v514 = vpop.f32.mrf.mxu0
    %v515 = vadd.f32 %v479, %v514
    %v516 = vpop.f32.mrf.mxu0
    %v517 = vadd.f32 %v479, %v516
    %518 = vmatmul.bf16.gmra.mxu0 %v497
    %v519 = vpop.f32.mrf.mxu0
    %v520 = vadd.f32 %v479, %v519
    %v521 = vpop.f32.mrf.mxu0
    %v522 = vadd.f32 %v479, %v521
    %523 = vmatmul.bf16.gmra.mxu0 %v500
    %v524 = vpop.f32.mrf.mxu0
    %v525 = vadd.f32 %v479, %v524
    %v526 = vpop.f32.mrf.mxu0
    %v527 = vadd.f32 %v479, %v526
    %528 = vmatmul.bf16.gmra.mxu0 %v503
    %v529 = vpop.f32.mrf.mxu0
    %v530 = vadd.f32 %v479, %v529
    %v531 = vpop.f32.mrf.mxu0
    %v532 = vadd.f32 %v479, %v531
    %533 = vdwg.mxu0
    %v534 = vmul.f32 %v515, 0.25
    %v535 = vmul.f32 %v517, 0.25
    %v536 = vmul.f32 %v520, 0.25
    %v537 = vmul.f32 %v522, 0.25
    %v538 = vmul.f32 %v525, 0.25
    %v539 = vmul.f32 %v527, 0.25
    %v540 = vmul.f32 %v530, 0.25
    %v541 = vmul.f32 %v532, 0.25
    %v542 = vpack.c.bf16 %v534, %v534
    %v543 = vpack.c.bf16 %v535, %v535
    %v544 = vpack.c.bf16 %v536, %v536
    %v545 = vpack.c.bf16 %v537, %v537
    %v546 = vpack.c.bf16 %v538, %v538
    %v547 = vpack.c.bf16 %v539, %v539
    %v548 = vpack.c.bf16 %v540, %v540
    %v549 = vpack.c.bf16 %v541, %v541
    %v550 = vpack.c.bf16 %v515, %v515
    %v551 = vpack.c.bf16 %v517, %v517
    %v552 = vpack.c.bf16 %v520, %v520
    %v553 = vpack.c.bf16 %v522, %v522
    %v554 = vpack.c.bf16 %v525, %v525
    %v555 = vpack.c.bf16 %v527, %v527
    %v556 = vpack.c.bf16 %v530, %v530
    %v557 = vpack.c.bf16 %v532, %v532
    %v559 = vunpack.c.l.b16 %v550
    %v560 = vpack.c.b16 %v559, %v559
    %561 = vrot.lane.b32.xlu0 %v560, 96
    %v562 = vpop.permute.xlu0 %561
    %vm563 = vcmask 130048
    %v565 = vsel %vm563, %v542, 0
    %v568 = vsel %vm563, %v562, 0
    %570 = vmatpush.bf16.xpose.msra.mxu0 0
    %571 = vmatpush.bf16.xpose.msra.mxu0 0
    %572 = vmatpush.bf16.xpose.msra.mxu0 0
    %573 = vmatpush.bf16.xpose.msra.mxu0 0
    %574 = vmatpush.bf16.xpose.msra.mxu0 0
    %575 = vmatpush.bf16.xpose.msra.mxu0 0
    %576 = vmatpush.bf16.xpose.msra.mxu0 0
    %577 = vmatpush.bf16.xpose.msra.mxu0 %v568
    %578 = vmatmul.bf16.gmra.mxu0 %v565
    %v579 = vpop.f32.mrf.mxu0
    %v580 = vadd.f32 %v452, %v579
    %v581 = vpop.f32.mrf.mxu0
    %582 = vdwg.mxu0
    %v584 = vunpack.c.l.b16 %v551
    %v585 = vpack.c.b16 %v584, %v584
    %586 = vrot.lane.b32.xlu0 %v585, 96
    %v587 = vpop.permute.xlu0 %586
    %v589 = vsel %vm563, %v543, 0
    %v592 = vsel %vm563, %v587, 0
    %594 = vmatpush.bf16.xpose.msra.mxu0 0
    %595 = vmatpush.bf16.xpose.msra.mxu0 0
    %596 = vmatpush.bf16.xpose.msra.mxu0 0
    %597 = vmatpush.bf16.xpose.msra.mxu0 0
    %598 = vmatpush.bf16.xpose.msra.mxu0 0
    %599 = vmatpush.bf16.xpose.msra.mxu0 0
    %600 = vmatpush.bf16.xpose.msra.mxu0 0
    %601 = vmatpush.bf16.xpose.msra.mxu0 %v592
    %602 = vmatmul.bf16.gmra.mxu0 %v589
    %v603 = vpop.f32.mrf.mxu0
    %v604 = vadd.f32 %v453, %v603
    %v605 = vpop.f32.mrf.mxu0
    %606 = vdwg.mxu0
    %v608 = vunpack.c.l.b16 %v552
    %v609 = vpack.c.b16 %v608, %v608
    %610 = vrot.lane.b32.xlu0 %v609, 96
    %v611 = vpop.permute.xlu0 %610
    %v613 = vsel %vm563, %v544, 0
    %v616 = vsel %vm563, %v611, 0
    %618 = vmatpush.bf16.xpose.msra.mxu0 0
    %619 = vmatpush.bf16.xpose.msra.mxu0 0
    %620 = vmatpush.bf16.xpose.msra.mxu0 0
    %621 = vmatpush.bf16.xpose.msra.mxu0 0
    %622 = vmatpush.bf16.xpose.msra.mxu0 0
    %623 = vmatpush.bf16.xpose.msra.mxu0 0
    %624 = vmatpush.bf16.xpose.msra.mxu0 0
    %625 = vmatpush.bf16.xpose.msra.mxu0 %v616
    %626 = vmatmul.bf16.gmra.mxu0 %v613
    %v627 = vpop.f32.mrf.mxu0
    %v628 = vadd.f32 %v454, %v627
    %v629 = vpop.f32.mrf.mxu0
    %630 = vdwg.mxu0
    %v632 = vunpack.c.l.b16 %v553
    %v633 = vpack.c.b16 %v632, %v632
    %634 = vrot.lane.b32.xlu0 %v633, 96
    %v635 = vpop.permute.xlu0 %634
    %v637 = vsel %vm563, %v545, 0
    %v640 = vsel %vm563, %v635, 0
    %642 = vmatpush.bf16.xpose.msra.mxu0 0
    %643 = vmatpush.bf16.xpose.msra.mxu0 0
    %644 = vmatpush.bf16.xpose.msra.mxu0 0
    %645 = vmatpush.bf16.xpose.msra.mxu0 0
    %646 = vmatpush.bf16.xpose.msra.mxu0 0
    %647 = vmatpush.bf16.xpose.msra.mxu0 0
    %648 = vmatpush.bf16.xpose.msra.mxu0 0
    %649 = vmatpush.bf16.xpose.msra.mxu0 %v640
    %650 = vmatmul.bf16.gmra.mxu0 %v637
    %v651 = vpop.f32.mrf.mxu0
    %v652 = vadd.f32 %v455, %v651
    %v653 = vpop.f32.mrf.mxu0
    %654 = vdwg.mxu0
    %v656 = vunpack.c.l.b16 %v554
    %v657 = vpack.c.b16 %v656, %v656
    %658 = vrot.lane.b32.xlu0 %v657, 96
    %v659 = vpop.permute.xlu0 %658
    %v661 = vsel %vm563, %v546, 0
    %v664 = vsel %vm563, %v659, 0
    %666 = vmatpush.bf16.xpose.msra.mxu0 0
    %667 = vmatpush.bf16.xpose.msra.mxu0 0
    %668 = vmatpush.bf16.xpose.msra.mxu0 0
    %669 = vmatpush.bf16.xpose.msra.mxu0 0
    %670 = vmatpush.bf16.xpose.msra.mxu0 0
    %671 = vmatpush.bf16.xpose.msra.mxu0 0
    %672 = vmatpush.bf16.xpose.msra.mxu0 0
    %673 = vmatpush.bf16.xpose.msra.mxu0 %v664
    %674 = vmatmul.bf16.gmra.mxu0 %v661
    %v675 = vpop.f32.mrf.mxu0
    %v676 = vadd.f32 %v456, %v675
    %v677 = vpop.f32.mrf.mxu0
    %678 = vdwg.mxu0
    %v680 = vunpack.c.l.b16 %v555
    %v681 = vpack.c.b16 %v680, %v680
    %682 = vrot.lane.b32.xlu0 %v681, 96
    %v683 = vpop.permute.xlu0 %682
    %v685 = vsel %vm563, %v547, 0
    %v688 = vsel %vm563, %v683, 0
    %690 = vmatpush.bf16.xpose.msra.mxu0 0
    %691 = vmatpush.bf16.xpose.msra.mxu0 0
    %692 = vmatpush.bf16.xpose.msra.mxu0 0
    %693 = vmatpush.bf16.xpose.msra.mxu0 0
    %694 = vmatpush.bf16.xpose.msra.mxu0 0
    %695 = vmatpush.bf16.xpose.msra.mxu0 0
    %696 = vmatpush.bf16.xpose.msra.mxu0 0
    %697 = vmatpush.bf16.xpose.msra.mxu0 %v688
    %698 = vmatmul.bf16.gmra.mxu0 %v685
    %v699 = vpop.f32.mrf.mxu0
    %v700 = vadd.f32 %v457, %v699
    %v701 = vpop.f32.mrf.mxu0
    %702 = vdwg.mxu0
    %v704 = vunpack.c.l.b16 %v556
    %v705 = vpack.c.b16 %v704, %v704
    %706 = vrot.lane.b32.xlu0 %v705, 96
    %v707 = vpop.permute.xlu0 %706
    %v709 = vsel %vm563, %v548, 0
    %v712 = vsel %vm563, %v707, 0
    %714 = vmatpush.bf16.xpose.msra.mxu0 0
    %715 = vmatpush.bf16.xpose.msra.mxu0 0
    %716 = vmatpush.bf16.xpose.msra.mxu0 0
    %717 = vmatpush.bf16.xpose.msra.mxu0 0
    %718 = vmatpush.bf16.xpose.msra.mxu0 0
    %719 = vmatpush.bf16.xpose.msra.mxu0 0
    %720 = vmatpush.bf16.xpose.msra.mxu0 0
    %721 = vmatpush.bf16.xpose.msra.mxu0 %v712
    %722 = vmatmul.bf16.gmra.mxu0 %v709
    %v723 = vpop.f32.mrf.mxu0
    %v724 = vadd.f32 %v458, %v723
    %v725 = vpop.f32.mrf.mxu0
    %726 = vdwg.mxu0
    %v728 = vunpack.c.l.b16 %v557
    %v729 = vpack.c.b16 %v728, %v728
    %730 = vrot.lane.b32.xlu0 %v729, 96
    %v731 = vpop.permute.xlu0 %730
    %v733 = vsel %vm563, %v549, 0
    %v736 = vsel %vm563, %v731, 0
    %738 = vmatpush.bf16.xpose.msra.mxu0 0
    %739 = vmatpush.bf16.xpose.msra.mxu0 0
    %740 = vmatpush.bf16.xpose.msra.mxu0 0
    %741 = vmatpush.bf16.xpose.msra.mxu0 0
    %742 = vmatpush.bf16.xpose.msra.mxu0 0
    %743 = vmatpush.bf16.xpose.msra.mxu0 0
    %744 = vmatpush.bf16.xpose.msra.mxu0 0
    %745 = vmatpush.bf16.xpose.msra.mxu0 %v736
    %746 = vmatmul.bf16.gmra.mxu0 %v733
    %v747 = vpop.f32.mrf.mxu0
    %v748 = vadd.f32 %v459, %v747
    %v749 = vpop.f32.mrf.mxu0
    %750 = vdwg.mxu0
    %vm751 = vcmask 64512
    %v752 = vsel %vm751, %v580, -inf
    %753 = vmax.xlane.f32.xlu0 %v752
    %v754 = vpop.xlane.xlu0 %753
    %v755 = vsel %vm751, %v604, -inf
    %756 = vmax.xlane.f32.xlu0 %v755
    %v757 = vpop.xlane.xlu0 %756
    %v758 = vsel %vm751, %v628, -inf
    %759 = vmax.xlane.f32.xlu0 %v758
    %v760 = vpop.xlane.xlu0 %759
    %v761 = vsel %vm751, %v652, -inf
    %762 = vmax.xlane.f32.xlu0 %v761
    %v763 = vpop.xlane.xlu0 %762
    %v764 = vsel %vm751, %v676, -inf
    %765 = vmax.xlane.f32.xlu0 %v764
    %v766 = vpop.xlane.xlu0 %765
    %v767 = vsel %vm751, %v700, -inf
    %768 = vmax.xlane.f32.xlu0 %v767
    %v769 = vpop.xlane.xlu0 %768
    %v770 = vsel %vm751, %v724, -inf
    %771 = vmax.xlane.f32.xlu0 %v770
    %v772 = vpop.xlane.xlu0 %771
    %v773 = vsel %vm751, %v748, -inf
    %774 = vmax.xlane.f32.xlu0 %v773
    %v775 = vpop.xlane.xlu0 %774
    %v776 = vsub.f32 %v580, %v754
    %v777 = vsub.f32 %v604, %v757
    %v778 = vsub.f32 %v628, %v760
    %v779 = vsub.f32 %v652, %v763
    %v780 = vsub.f32 %v676, %v766
    %v781 = vsub.f32 %v700, %v769
    %v782 = vsub.f32 %v724, %v772
    %v783 = vsub.f32 %v748, %v775
    %v784 = vmul.f32 %v776, 1.442695
    %v785 = vpow.pop %v784
    %v786 = vmul.f32 %v777, 1.442695
    %v787 = vpow.pop %v786
    %v788 = vmul.f32 %v778, 1.442695
    %v789 = vpow.pop %v788
    %v790 = vmul.f32 %v779, 1.442695
    %v791 = vpow.pop %v790
    %v792 = vmul.f32 %v780, 1.442695
    %v793 = vpow.pop %v792
    %v794 = vmul.f32 %v781, 1.442695
    %v795 = vpow.pop %v794
    %v796 = vmul.f32 %v782, 1.442695
    %v797 = vpow.pop %v796
    %v798 = vmul.f32 %v783, 1.442695
    %v799 = vpow.pop %v798
    %v800 = vsel %vm751, %v785, 0.0
    %801 = vadd.xlane.f32.xlu0 %v800
    %v802 = vpop.xlane.xlu0 %801
    %v803 = vsel %vm751, %v787, 0.0
    %804 = vadd.xlane.f32.xlu0 %v803
    %v805 = vpop.xlane.xlu0 %804
    %v806 = vsel %vm751, %v789, 0.0
    %807 = vadd.xlane.f32.xlu0 %v806
    %v808 = vpop.xlane.xlu0 %807
    %v809 = vsel %vm751, %v791, 0.0
    %810 = vadd.xlane.f32.xlu0 %v809
    %v811 = vpop.xlane.xlu0 %810
    %v812 = vsel %vm751, %v793, 0.0
    %813 = vadd.xlane.f32.xlu0 %v812
    %v814 = vpop.xlane.xlu0 %813
    %v815 = vsel %vm751, %v795, 0.0
    %816 = vadd.xlane.f32.xlu0 %v815
    %v817 = vpop.xlane.xlu0 %816
    %v818 = vsel %vm751, %v797, 0.0
    %819 = vadd.xlane.f32.xlu0 %v818
    %v820 = vpop.xlane.xlu0 %819
    %v821 = vsel %vm751, %v799, 0.0
    %822 = vadd.xlane.f32.xlu0 %v821
    %v823 = vpop.xlane.xlu0 %822
    %v824 = vrcp.pop %v802
    %v825 = vrcp.pop %v805
    %v826 = vrcp.pop %v808
    %v827 = vrcp.pop %v811
    %v828 = vrcp.pop %v814
    %v829 = vrcp.pop %v817
    %v830 = vrcp.pop %v820
    %v831 = vrcp.pop %v823
    %v832 = vmul.f32 %v785, %v824
    %v833 = vmul.f32 %v787, %v825
    %v834 = vmul.f32 %v789, %v826
    %v835 = vmul.f32 %v791, %v827
    %v836 = vmul.f32 %v793, %v828
    %v837 = vmul.f32 %v795, %v829
    %v838 = vmul.f32 %v797, %v830
    %v839 = vmul.f32 %v799, %v831
    %v840 = vpack.c.bf16 %v832, %v832
    %v841 = vpack.c.bf16 %v833, %v833
    %v842 = vpack.c.bf16 %v834, %v834
    %v843 = vpack.c.bf16 %v835, %v835
    %v844 = vpack.c.bf16 %v836, %v836
    %v845 = vpack.c.bf16 %v837, %v837
    %v846 = vpack.c.bf16 %v838, %v838
    %v847 = vpack.c.bf16 %v839, %v839
    %848 = vrot.lane.b32.xlu0 %v560, 64
    %v849 = vpop.permute.xlu0 %848
    %v851 = vsel %vm751, %v840, 0
    %vm853 = vcmask 1043456
    %v855 = vsel %vm853, %v849, 0
    %857 = vmatpush.bf16.msra.mxu0 0
    %858 = vmatpush.bf16.msra.mxu0 0
    %859 = vmatpush.bf16.msra.mxu0 0
    %860 = vmatpush.bf16.msra.mxu0 0
    %861 = vmatpush.bf16.msra.mxu0 0
    %862 = vmatpush.bf16.msra.mxu0 0
    %863 = vmatpush.bf16.msra.mxu0 0
    %864 = vmatpush.bf16.msra.mxu0 %v855
    %865 = vmatmul.bf16.gmra.mxu0 %v851
    %v866 = vpop.f32.mrf.mxu0
    %v867 = vadd.f32 0.0, %v866
    %v868 = vpop.f32.mrf.mxu0
    %869 = vdwg.mxu0
    %870 = vrot.lane.b32.xlu0 %v585, 64
    %v871 = vpop.permute.xlu0 %870
    %v873 = vsel %vm751, %v841, 0
    %v876 = vsel %vm853, %v871, 0
    %878 = vmatpush.bf16.msra.mxu0 0
    %879 = vmatpush.bf16.msra.mxu0 0
    %880 = vmatpush.bf16.msra.mxu0 0
    %881 = vmatpush.bf16.msra.mxu0 0
    %882 = vmatpush.bf16.msra.mxu0 0
    %883 = vmatpush.bf16.msra.mxu0 0
    %884 = vmatpush.bf16.msra.mxu0 0
    %885 = vmatpush.bf16.msra.mxu0 %v876
    %886 = vmatmul.bf16.gmra.mxu0 %v873
    %v887 = vpop.f32.mrf.mxu0
    %v888 = vadd.f32 0.0, %v887
    %v889 = vpop.f32.mrf.mxu0
    %890 = vdwg.mxu0
    %891 = vrot.lane.b32.xlu0 %v609, 64
    %v892 = vpop.permute.xlu0 %891
    %v894 = vsel %vm751, %v842, 0
    %v897 = vsel %vm853, %v892, 0
    %899 = vmatpush.bf16.msra.mxu0 0
    %900 = vmatpush.bf16.msra.mxu0 0
    %901 = vmatpush.bf16.msra.mxu0 0
    %902 = vmatpush.bf16.msra.mxu0 0
    %903 = vmatpush.bf16.msra.mxu0 0
    %904 = vmatpush.bf16.msra.mxu0 0
    %905 = vmatpush.bf16.msra.mxu0 0
    %906 = vmatpush.bf16.msra.mxu0 %v897
    %907 = vmatmul.bf16.gmra.mxu0 %v894
    %v908 = vpop.f32.mrf.mxu0
    %v909 = vadd.f32 0.0, %v908
    %v910 = vpop.f32.mrf.mxu0
    %911 = vdwg.mxu0
    %912 = vrot.lane.b32.xlu0 %v633, 64
    %v913 = vpop.permute.xlu0 %912
    %v915 = vsel %vm751, %v843, 0
    %v918 = vsel %vm853, %v913, 0
    %920 = vmatpush.bf16.msra.mxu0 0
    %921 = vmatpush.bf16.msra.mxu0 0
    %922 = vmatpush.bf16.msra.mxu0 0
    %923 = vmatpush.bf16.msra.mxu0 0
    %924 = vmatpush.bf16.msra.mxu0 0
    %925 = vmatpush.bf16.msra.mxu0 0
    %926 = vmatpush.bf16.msra.mxu0 0
    %927 = vmatpush.bf16.msra.mxu0 %v918
    %928 = vmatmul.bf16.gmra.mxu0 %v915
    %v929 = vpop.f32.mrf.mxu0
    %v930 = vadd.f32 0.0, %v929
    %v931 = vpop.f32.mrf.mxu0
    %932 = vdwg.mxu0
    %933 = vrot.lane.b32.xlu0 %v657, 64
    %v934 = vpop.permute.xlu0 %933
    %v936 = vsel %vm751, %v844, 0
    %v939 = vsel %vm853, %v934, 0
    %941 = vmatpush.bf16.msra.mxu0 0
    %942 = vmatpush.bf16.msra.mxu0 0
    %943 = vmatpush.bf16.msra.mxu0 0
    %944 = vmatpush.bf16.msra.mxu0 0
    %945 = vmatpush.bf16.msra.mxu0 0
    %946 = vmatpush.bf16.msra.mxu0 0
    %947 = vmatpush.bf16.msra.mxu0 0
    %948 = vmatpush.bf16.msra.mxu0 %v939
    %949 = vmatmul.bf16.gmra.mxu0 %v936
    %v950 = vpop.f32.mrf.mxu0
    %v951 = vadd.f32 0.0, %v950
    %v952 = vpop.f32.mrf.mxu0
    %953 = vdwg.mxu0
    %954 = vrot.lane.b32.xlu0 %v681, 64
    %v955 = vpop.permute.xlu0 %954
    %v957 = vsel %vm751, %v845, 0
    %v960 = vsel %vm853, %v955, 0
    %962 = vmatpush.bf16.msra.mxu0 0
    %963 = vmatpush.bf16.msra.mxu0 0
    %964 = vmatpush.bf16.msra.mxu0 0
    %965 = vmatpush.bf16.msra.mxu0 0
    %966 = vmatpush.bf16.msra.mxu0 0
    %967 = vmatpush.bf16.msra.mxu0 0
    %968 = vmatpush.bf16.msra.mxu0 0
    %969 = vmatpush.bf16.msra.mxu0 %v960
    %970 = vmatmul.bf16.gmra.mxu0 %v957
    %v971 = vpop.f32.mrf.mxu0
    %v972 = vadd.f32 0.0, %v971
    %v973 = vpop.f32.mrf.mxu0
    %974 = vdwg.mxu0
    %975 = vrot.lane.b32.xlu0 %v705, 64
    %v976 = vpop.permute.xlu0 %975
    %v978 = vsel %vm751, %v846, 0
    %v981 = vsel %vm853, %v976, 0
    %983 = vmatpush.bf16.msra.mxu0 0
    %984 = vmatpush.bf16.msra.mxu0 0
    %985 = vmatpush.bf16.msra.mxu0 0
    %986 = vmatpush.bf16.msra.mxu0 0
    %987 = vmatpush.bf16.msra.mxu0 0
    %988 = vmatpush.bf16.msra.mxu0 0
    %989 = vmatpush.bf16.msra.mxu0 0
    %990 = vmatpush.bf16.msra.mxu0 %v981
    %991 = vmatmul.bf16.gmra.mxu0 %v978
    %v992 = vpop.f32.mrf.mxu0
    %v993 = vadd.f32 0.0, %v992
    %v994 = vpop.f32.mrf.mxu0
    %995 = vdwg.mxu0
    %996 = vrot.lane.b32.xlu0 %v729, 64
    %v997 = vpop.permute.xlu0 %996
    %v999 = vsel %vm751, %v847, 0
    %v1002 = vsel %vm853, %v997, 0
    %1004 = vmatpush.bf16.msra.mxu0 0
    %1005 = vmatpush.bf16.msra.mxu0 0
    %1006 = vmatpush.bf16.msra.mxu0 0
    %1007 = vmatpush.bf16.msra.mxu0 0
    %1008 = vmatpush.bf16.msra.mxu0 0
    %1009 = vmatpush.bf16.msra.mxu0 0
    %1010 = vmatpush.bf16.msra.mxu0 0
    %1011 = vmatpush.bf16.msra.mxu0 %v1002
    %1012 = vmatmul.bf16.gmra.mxu0 %v999
    %v1013 = vpop.f32.mrf.mxu0
    %v1014 = vadd.f32 0.0, %v1013
    %v1015 = vpop.f32.mrf.mxu0
    %1016 = vdwg.mxu0
    %v1018 = vunpack.c.l.b16 %v542
    %v1019 = vpack.c.b16 %v1018, %v1018
    %1020 = vrot.lane.b32.xlu0 %v1019, 112
    %v1021 = vpop.permute.xlu0 %1020
    %1022 = vrot.lane.b32.xlu0 %v560, 80
    %v1023 = vpop.permute.xlu0 %1022
    %v1025 = vsel %vm563, %v1021, 0
    %v1028 = vsel %vm563, %v1023, 0
    %1030 = vmatpush.bf16.xpose.msra.mxu0 0
    %1031 = vmatpush.bf16.xpose.msra.mxu0 0
    %1032 = vmatpush.bf16.xpose.msra.mxu0 0
    %1033 = vmatpush.bf16.xpose.msra.mxu0 0
    %1034 = vmatpush.bf16.xpose.msra.mxu0 0
    %1035 = vmatpush.bf16.xpose.msra.mxu0 0
    %1036 = vmatpush.bf16.xpose.msra.mxu0 0
    %1037 = vmatpush.bf16.xpose.msra.mxu0 %v1028
    %1038 = vmatmul.bf16.gmra.mxu0 %v1025
    %v1039 = vpop.f32.mrf.mxu0
    %v1040 = vadd.f32 %v452, %v1039
    %v1041 = vpop.f32.mrf.mxu0
    %1042 = vdwg.mxu0
    %v1044 = vunpack.c.l.b16 %v543
    %v1045 = vpack.c.b16 %v1044, %v1044
    %1046 = vrot.lane.b32.xlu0 %v1045, 112
    %v1047 = vpop.permute.xlu0 %1046
    %1048 = vrot.lane.b32.xlu0 %v585, 80
    %v1049 = vpop.permute.xlu0 %1048
    %v1051 = vsel %vm563, %v1047, 0
    %v1054 = vsel %vm563, %v1049, 0
    %1056 = vmatpush.bf16.xpose.msra.mxu0 0
    %1057 = vmatpush.bf16.xpose.msra.mxu0 0
    %1058 = vmatpush.bf16.xpose.msra.mxu0 0
    %1059 = vmatpush.bf16.xpose.msra.mxu0 0
    %1060 = vmatpush.bf16.xpose.msra.mxu0 0
    %1061 = vmatpush.bf16.xpose.msra.mxu0 0
    %1062 = vmatpush.bf16.xpose.msra.mxu0 0
    %1063 = vmatpush.bf16.xpose.msra.mxu0 %v1054
    %1064 = vmatmul.bf16.gmra.mxu0 %v1051
    %v1065 = vpop.f32.mrf.mxu0
    %v1066 = vadd.f32 %v453, %v1065
    %v1067 = vpop.f32.mrf.mxu0
    %1068 = vdwg.mxu0
    %v1070 = vunpack.c.l.b16 %v544
    %v1071 = vpack.c.b16 %v1070, %v1070
    %1072 = vrot.lane.b32.xlu0 %v1071, 112
    %v1073 = vpop.permute.xlu0 %1072
    %1074 = vrot.lane.b32.xlu0 %v609, 80
    %v1075 = vpop.permute.xlu0 %1074
    %v1077 = vsel %vm563, %v1073, 0
    %v1080 = vsel %vm563, %v1075, 0
    %1082 = vmatpush.bf16.xpose.msra.mxu0 0
    %1083 = vmatpush.bf16.xpose.msra.mxu0 0
    %1084 = vmatpush.bf16.xpose.msra.mxu0 0
    %1085 = vmatpush.bf16.xpose.msra.mxu0 0
    %1086 = vmatpush.bf16.xpose.msra.mxu0 0
    %1087 = vmatpush.bf16.xpose.msra.mxu0 0
    %1088 = vmatpush.bf16.xpose.msra.mxu0 0
    %1089 = vmatpush.bf16.xpose.msra.mxu0 %v1080
    %1090 = vmatmul.bf16.gmra.mxu0 %v1077
    %v1091 = vpop.f32.mrf.mxu0
    %v1092 = vadd.f32 %v454, %v1091
    %v1093 = vpop.f32.mrf.mxu0
    %1094 = vdwg.mxu0
    %v1096 = vunpack.c.l.b16 %v545
    %v1097 = vpack.c.b16 %v1096, %v1096
    %1098 = vrot.lane.b32.xlu0 %v1097, 112
    %v1099 = vpop.permute.xlu0 %1098
    %1100 = vrot.lane.b32.xlu0 %v633, 80
    %v1101 = vpop.permute.xlu0 %1100
    %v1103 = vsel %vm563, %v1099, 0
    %v1106 = vsel %vm563, %v1101, 0
    %1108 = vmatpush.bf16.xpose.msra.mxu0 0
    %1109 = vmatpush.bf16.xpose.msra.mxu0 0
    %1110 = vmatpush.bf16.xpose.msra.mxu0 0
    %1111 = vmatpush.bf16.xpose.msra.mxu0 0
    %1112 = vmatpush.bf16.xpose.msra.mxu0 0
    %1113 = vmatpush.bf16.xpose.msra.mxu0 0
    %1114 = vmatpush.bf16.xpose.msra.mxu0 0
    %1115 = vmatpush.bf16.xpose.msra.mxu0 %v1106
    %1116 = vmatmul.bf16.gmra.mxu0 %v1103
    %v1117 = vpop.f32.mrf.mxu0
    %v1118 = vadd.f32 %v455, %v1117
    %v1119 = vpop.f32.mrf.mxu0
    %1120 = vdwg.mxu0
    %v1122 = vunpack.c.l.b16 %v546
    %v1123 = vpack.c.b16 %v1122, %v1122
    %1124 = vrot.lane.b32.xlu0 %v1123, 112
    %v1125 = vpop.permute.xlu0 %1124
    %1126 = vrot.lane.b32.xlu0 %v657, 80
    %v1127 = vpop.permute.xlu0 %1126
    %v1129 = vsel %vm563, %v1125, 0
    %v1132 = vsel %vm563, %v1127, 0
    %1134 = vmatpush.bf16.xpose.msra.mxu0 0
    %1135 = vmatpush.bf16.xpose.msra.mxu0 0
    %1136 = vmatpush.bf16.xpose.msra.mxu0 0
    %1137 = vmatpush.bf16.xpose.msra.mxu0 0
    %1138 = vmatpush.bf16.xpose.msra.mxu0 0
    %1139 = vmatpush.bf16.xpose.msra.mxu0 0
    %1140 = vmatpush.bf16.xpose.msra.mxu0 0
    %1141 = vmatpush.bf16.xpose.msra.mxu0 %v1132
    %1142 = vmatmul.bf16.gmra.mxu0 %v1129
    %v1143 = vpop.f32.mrf.mxu0
    %v1144 = vadd.f32 %v456, %v1143
    %v1145 = vpop.f32.mrf.mxu0
    %1146 = vdwg.mxu0
    %v1148 = vunpack.c.l.b16 %v547
    %v1149 = vpack.c.b16 %v1148, %v1148
    %1150 = vrot.lane.b32.xlu0 %v1149, 112
    %v1151 = vpop.permute.xlu0 %1150
    %1152 = vrot.lane.b32.xlu0 %v681, 80
    %v1153 = vpop.permute.xlu0 %1152
    %v1155 = vsel %vm563, %v1151, 0
    %v1158 = vsel %vm563, %v1153, 0
    %1160 = vmatpush.bf16.xpose.msra.mxu0 0
    %1161 = vmatpush.bf16.xpose.msra.mxu0 0
    %1162 = vmatpush.bf16.xpose.msra.mxu0 0
    %1163 = vmatpush.bf16.xpose.msra.mxu0 0
    %1164 = vmatpush.bf16.xpose.msra.mxu0 0
    %1165 = vmatpush.bf16.xpose.msra.mxu0 0
    %1166 = vmatpush.bf16.xpose.msra.mxu0 0
    %1167 = vmatpush.bf16.xpose.msra.mxu0 %v1158
    %1168 = vmatmul.bf16.gmra.mxu0 %v1155
    %v1169 = vpop.f32.mrf.mxu0
    %v1170 = vadd.f32 %v457, %v1169
    %v1171 = vpop.f32.mrf.mxu0
    %1172 = vdwg.mxu0
    %v1174 = vunpack.c.l.b16 %v548
    %v1175 = vpack.c.b16 %v1174, %v1174
    %1176 = vrot.lane.b32.xlu0 %v1175, 112
    %v1177 = vpop.permute.xlu0 %1176
    %1178 = vrot.lane.b32.xlu0 %v705, 80
    %v1179 = vpop.permute.xlu0 %1178
    %v1181 = vsel %vm563, %v1177, 0
    %v1184 = vsel %vm563, %v1179, 0
    %1186 = vmatpush.bf16.xpose.msra.mxu0 0
    %1187 = vmatpush.bf16.xpose.msra.mxu0 0
    %1188 = vmatpush.bf16.xpose.msra.mxu0 0
    %1189 = vmatpush.bf16.xpose.msra.mxu0 0
    %1190 = vmatpush.bf16.xpose.msra.mxu0 0
    %1191 = vmatpush.bf16.xpose.msra.mxu0 0
    %1192 = vmatpush.bf16.xpose.msra.mxu0 0
    %1193 = vmatpush.bf16.xpose.msra.mxu0 %v1184
    %1194 = vmatmul.bf16.gmra.mxu0 %v1181
    %v1195 = vpop.f32.mrf.mxu0
    %v1196 = vadd.f32 %v458, %v1195
    %v1197 = vpop.f32.mrf.mxu0
    %1198 = vdwg.mxu0
    %v1200 = vunpack.c.l.b16 %v549
    %v1201 = vpack.c.b16 %v1200, %v1200
    %1202 = vrot.lane.b32.xlu0 %v1201, 112
    %v1203 = vpop.permute.xlu0 %1202
    %1204 = vrot.lane.b32.xlu0 %v729, 80
    %v1205 = vpop.permute.xlu0 %1204
    %v1207 = vsel %vm563, %v1203, 0
    %v1210 = vsel %vm563, %v1205, 0
    %1212 = vmatpush.bf16.xpose.msra.mxu0 0
    %1213 = vmatpush.bf16.xpose.msra.mxu0 0
    %1214 = vmatpush.bf16.xpose.msra.mxu0 0
    %1215 = vmatpush.bf16.xpose.msra.mxu0 0
    %1216 = vmatpush.bf16.xpose.msra.mxu0 0
    %1217 = vmatpush.bf16.xpose.msra.mxu0 0
    %1218 = vmatpush.bf16.xpose.msra.mxu0 0
    %1219 = vmatpush.bf16.xpose.msra.mxu0 %v1210
    %1220 = vmatmul.bf16.gmra.mxu0 %v1207
    %v1221 = vpop.f32.mrf.mxu0
    %v1222 = vadd.f32 %v459, %v1221
    %v1223 = vpop.f32.mrf.mxu0
    %1224 = vdwg.mxu0
    %v1225 = vsel %vm751, %v1040, -inf
    %1226 = vmax.xlane.f32.xlu0 %v1225
    %v1227 = vpop.xlane.xlu0 %1226
    %v1228 = vsel %vm751, %v1066, -inf
    %1229 = vmax.xlane.f32.xlu0 %v1228
    %v1230 = vpop.xlane.xlu0 %1229
    %v1231 = vsel %vm751, %v1092, -inf
    %1232 = vmax.xlane.f32.xlu0 %v1231
    %v1233 = vpop.xlane.xlu0 %1232
    %v1234 = vsel %vm751, %v1118, -inf
    %1235 = vmax.xlane.f32.xlu0 %v1234
    %v1236 = vpop.xlane.xlu0 %1235
    %v1237 = vsel %vm751, %v1144, -inf
    %1238 = vmax.xlane.f32.xlu0 %v1237
    %v1239 = vpop.xlane.xlu0 %1238
    %v1240 = vsel %vm751, %v1170, -inf
    %1241 = vmax.xlane.f32.xlu0 %v1240
    %v1242 = vpop.xlane.xlu0 %1241
    %v1243 = vsel %vm751, %v1196, -inf
    %1244 = vmax.xlane.f32.xlu0 %v1243
    %v1245 = vpop.xlane.xlu0 %1244
    %v1246 = vsel %vm751, %v1222, -inf
    %1247 = vmax.xlane.f32.xlu0 %v1246
    %v1248 = vpop.xlane.xlu0 %1247
    %v1249 = vsub.f32 %v1040, %v1227
    %v1250 = vsub.f32 %v1066, %v1230
    %v1251 = vsub.f32 %v1092, %v1233
    %v1252 = vsub.f32 %v1118, %v1236
    %v1253 = vsub.f32 %v1144, %v1239
    %v1254 = vsub.f32 %v1170, %v1242
    %v1255 = vsub.f32 %v1196, %v1245
    %v1256 = vsub.f32 %v1222, %v1248
    %v1257 = vmul.f32 %v1249, 1.442695
    %v1258 = vpow.pop %v1257
    %v1259 = vmul.f32 %v1250, 1.442695
    %v1260 = vpow.pop %v1259
    %v1261 = vmul.f32 %v1251, 1.442695
    %v1262 = vpow.pop %v1261
    %v1263 = vmul.f32 %v1252, 1.442695
    %v1264 = vpow.pop %v1263
    %v1265 = vmul.f32 %v1253, 1.442695
    %v1266 = vpow.pop %v1265
    %v1267 = vmul.f32 %v1254, 1.442695
    %v1268 = vpow.pop %v1267
    %v1269 = vmul.f32 %v1255, 1.442695
    %v1270 = vpow.pop %v1269
    %v1271 = vmul.f32 %v1256, 1.442695
    %v1272 = vpow.pop %v1271
    %v1273 = vsel %vm751, %v1258, 0.0
    %1274 = vadd.xlane.f32.xlu0 %v1273
    %v1275 = vpop.xlane.xlu0 %1274
    %v1276 = vsel %vm751, %v1260, 0.0
    %1277 = vadd.xlane.f32.xlu0 %v1276
    %v1278 = vpop.xlane.xlu0 %1277
    %v1279 = vsel %vm751, %v1262, 0.0
    %1280 = vadd.xlane.f32.xlu0 %v1279
    %v1281 = vpop.xlane.xlu0 %1280
    %v1282 = vsel %vm751, %v1264, 0.0
    %1283 = vadd.xlane.f32.xlu0 %v1282
    %v1284 = vpop.xlane.xlu0 %1283
    %v1285 = vsel %vm751, %v1266, 0.0
    %1286 = vadd.xlane.f32.xlu0 %v1285
    %v1287 = vpop.xlane.xlu0 %1286
    %v1288 = vsel %vm751, %v1268, 0.0
    %1289 = vadd.xlane.f32.xlu0 %v1288
    %v1290 = vpop.xlane.xlu0 %1289
    %v1291 = vsel %vm751, %v1270, 0.0
    %1292 = vadd.xlane.f32.xlu0 %v1291
    %v1293 = vpop.xlane.xlu0 %1292
    %v1294 = vsel %vm751, %v1272, 0.0
    %1295 = vadd.xlane.f32.xlu0 %v1294
    %v1296 = vpop.xlane.xlu0 %1295
    %v1297 = vrcp.pop %v1275
    %v1298 = vrcp.pop %v1278
    %v1299 = vrcp.pop %v1281
    %v1300 = vrcp.pop %v1284
    %v1301 = vrcp.pop %v1287
    %v1302 = vrcp.pop %v1290
    %v1303 = vrcp.pop %v1293
    %v1304 = vrcp.pop %v1296
    %v1305 = vmul.f32 %v1258, %v1297
    %v1306 = vmul.f32 %v1260, %v1298
    %v1307 = vmul.f32 %v1262, %v1299
    %v1308 = vmul.f32 %v1264, %v1300
    %v1309 = vmul.f32 %v1266, %v1301
    %v1310 = vmul.f32 %v1268, %v1302
    %v1311 = vmul.f32 %v1270, %v1303
    %v1312 = vmul.f32 %v1272, %v1304
    %v1313 = vpack.c.bf16 %v1305, %v1305
    %v1314 = vpack.c.bf16 %v1306, %v1306
    %v1315 = vpack.c.bf16 %v1307, %v1307
    %v1316 = vpack.c.bf16 %v1308, %v1308
    %v1317 = vpack.c.bf16 %v1309, %v1309
    %v1318 = vpack.c.bf16 %v1310, %v1310
    %v1319 = vpack.c.bf16 %v1311, %v1311
    %v1320 = vpack.c.bf16 %v1312, %v1312
    %1321 = vrot.lane.b32.xlu0 %v560, 48
    %v1322 = vpop.permute.xlu0 %1321
    %v1324 = vsel %vm751, %v1313, 0
    %v1327 = vsel %vm853, %v1322, 0
    %1329 = vmatpush.bf16.msra.mxu0 0
    %1330 = vmatpush.bf16.msra.mxu0 0
    %1331 = vmatpush.bf16.msra.mxu0 0
    %1332 = vmatpush.bf16.msra.mxu0 0
    %1333 = vmatpush.bf16.msra.mxu0 0
    %1334 = vmatpush.bf16.msra.mxu0 0
    %1335 = vmatpush.bf16.msra.mxu0 0
    %1336 = vmatpush.bf16.msra.mxu0 %v1327
    %1337 = vmatmul.bf16.gmra.mxu0 %v1324
    %v1338 = vpop.f32.mrf.mxu0
    %v1339 = vadd.f32 0.0, %v1338
    %v1340 = vpop.f32.mrf.mxu0
    %1341 = vdwg.mxu0
    %1342 = vrot.lane.b32.xlu0 %v585, 48
    %v1343 = vpop.permute.xlu0 %1342
    %v1345 = vsel %vm751, %v1314, 0
    %v1348 = vsel %vm853, %v1343, 0
    %1350 = vmatpush.bf16.msra.mxu0 0
    %1351 = vmatpush.bf16.msra.mxu0 0
    %1352 = vmatpush.bf16.msra.mxu0 0
    %1353 = vmatpush.bf16.msra.mxu0 0
    %1354 = vmatpush.bf16.msra.mxu0 0
    %1355 = vmatpush.bf16.msra.mxu0 0
    %1356 = vmatpush.bf16.msra.mxu0 0
    %1357 = vmatpush.bf16.msra.mxu0 %v1348
    %1358 = vmatmul.bf16.gmra.mxu0 %v1345
    %v1359 = vpop.f32.mrf.mxu0
    %v1360 = vadd.f32 0.0, %v1359
    %v1361 = vpop.f32.mrf.mxu0
    %1362 = vdwg.mxu0
    %1363 = vrot.lane.b32.xlu0 %v609, 48
    %v1364 = vpop.permute.xlu0 %1363
    %v1366 = vsel %vm751, %v1315, 0
    %v1369 = vsel %vm853, %v1364, 0
    %1371 = vmatpush.bf16.msra.mxu0 0
    %1372 = vmatpush.bf16.msra.mxu0 0
    %1373 = vmatpush.bf16.msra.mxu0 0
    %1374 = vmatpush.bf16.msra.mxu0 0
    %1375 = vmatpush.bf16.msra.mxu0 0
    %1376 = vmatpush.bf16.msra.mxu0 0
    %1377 = vmatpush.bf16.msra.mxu0 0
    %1378 = vmatpush.bf16.msra.mxu0 %v1369
    %1379 = vmatmul.bf16.gmra.mxu0 %v1366
    %v1380 = vpop.f32.mrf.mxu0
    %v1381 = vadd.f32 0.0, %v1380
    %v1382 = vpop.f32.mrf.mxu0
    %1383 = vdwg.mxu0
    %1384 = vrot.lane.b32.xlu0 %v633, 48
    %v1385 = vpop.permute.xlu0 %1384
    %v1387 = vsel %vm751, %v1316, 0
    %v1390 = vsel %vm853, %v1385, 0
    %1392 = vmatpush.bf16.msra.mxu0 0
    %1393 = vmatpush.bf16.msra.mxu0 0
    %1394 = vmatpush.bf16.msra.mxu0 0
    %1395 = vmatpush.bf16.msra.mxu0 0
    %1396 = vmatpush.bf16.msra.mxu0 0
    %1397 = vmatpush.bf16.msra.mxu0 0
    %1398 = vmatpush.bf16.msra.mxu0 0
    %1399 = vmatpush.bf16.msra.mxu0 %v1390
    %1400 = vmatmul.bf16.gmra.mxu0 %v1387
    %v1401 = vpop.f32.mrf.mxu0
    %v1402 = vadd.f32 0.0, %v1401
    %v1403 = vpop.f32.mrf.mxu0
    %1404 = vdwg.mxu0
    %1405 = vrot.lane.b32.xlu0 %v657, 48
    %v1406 = vpop.permute.xlu0 %1405
    %v1408 = vsel %vm751, %v1317, 0
    %v1411 = vsel %vm853, %v1406, 0
    %1413 = vmatpush.bf16.msra.mxu0 0
    %1414 = vmatpush.bf16.msra.mxu0 0
    %1415 = vmatpush.bf16.msra.mxu0 0
    %1416 = vmatpush.bf16.msra.mxu0 0
    %1417 = vmatpush.bf16.msra.mxu0 0
    %1418 = vmatpush.bf16.msra.mxu0 0
    %1419 = vmatpush.bf16.msra.mxu0 0
    %1420 = vmatpush.bf16.msra.mxu0 %v1411
    %1421 = vmatmul.bf16.gmra.mxu0 %v1408
    %v1422 = vpop.f32.mrf.mxu0
    %v1423 = vadd.f32 0.0, %v1422
    %v1424 = vpop.f32.mrf.mxu0
    %1425 = vdwg.mxu0
    %1426 = vrot.lane.b32.xlu0 %v681, 48
    %v1427 = vpop.permute.xlu0 %1426
    %v1429 = vsel %vm751, %v1318, 0
    %v1432 = vsel %vm853, %v1427, 0
    %1434 = vmatpush.bf16.msra.mxu0 0
    %1435 = vmatpush.bf16.msra.mxu0 0
    %1436 = vmatpush.bf16.msra.mxu0 0
    %1437 = vmatpush.bf16.msra.mxu0 0
    %1438 = vmatpush.bf16.msra.mxu0 0
    %1439 = vmatpush.bf16.msra.mxu0 0
    %1440 = vmatpush.bf16.msra.mxu0 0
    %1441 = vmatpush.bf16.msra.mxu0 %v1432
    %1442 = vmatmul.bf16.gmra.mxu0 %v1429
    %v1443 = vpop.f32.mrf.mxu0
    %v1444 = vadd.f32 0.0, %v1443
    %v1445 = vpop.f32.mrf.mxu0
    %1446 = vdwg.mxu0
    %1447 = vrot.lane.b32.xlu0 %v705, 48
    %v1448 = vpop.permute.xlu0 %1447
    %v1450 = vsel %vm751, %v1319, 0
    %v1453 = vsel %vm853, %v1448, 0
    %1455 = vmatpush.bf16.msra.mxu0 0
    %1456 = vmatpush.bf16.msra.mxu0 0
    %1457 = vmatpush.bf16.msra.mxu0 0
    %1458 = vmatpush.bf16.msra.mxu0 0
    %1459 = vmatpush.bf16.msra.mxu0 0
    %1460 = vmatpush.bf16.msra.mxu0 0
    %1461 = vmatpush.bf16.msra.mxu0 0
    %1462 = vmatpush.bf16.msra.mxu0 %v1453
    %1463 = vmatmul.bf16.gmra.mxu0 %v1450
    %v1464 = vpop.f32.mrf.mxu0
    %v1465 = vadd.f32 0.0, %v1464
    %v1466 = vpop.f32.mrf.mxu0
    %1467 = vdwg.mxu0
    %1468 = vrot.lane.b32.xlu0 %v729, 48
    %v1469 = vpop.permute.xlu0 %1468
    %v1471 = vsel %vm751, %v1320, 0
    %v1474 = vsel %vm853, %v1469, 0
    %1476 = vmatpush.bf16.msra.mxu0 0
    %1477 = vmatpush.bf16.msra.mxu0 0
    %1478 = vmatpush.bf16.msra.mxu0 0
    %1479 = vmatpush.bf16.msra.mxu0 0
    %1480 = vmatpush.bf16.msra.mxu0 0
    %1481 = vmatpush.bf16.msra.mxu0 0
    %1482 = vmatpush.bf16.msra.mxu0 0
    %1483 = vmatpush.bf16.msra.mxu0 %v1474
    %1484 = vmatmul.bf16.gmra.mxu0 %v1471
    %v1485 = vpop.f32.mrf.mxu0
    %v1486 = vadd.f32 0.0, %v1485
    %v1487 = vpop.f32.mrf.mxu0
    %1488 = vdwg.mxu0
    %1497 = vrot.lane.b32.xlu0 %v1339, 16
    %v1498 = vpop.permute.xlu0 %1497
    %1499 = vrot.lane.b32.xlu0 %v1360, 16
    %v1500 = vpop.permute.xlu0 %1499
    %1501 = vrot.lane.b32.xlu0 %v1381, 16
    %v1502 = vpop.permute.xlu0 %1501
    %1503 = vrot.lane.b32.xlu0 %v1402, 16
    %v1504 = vpop.permute.xlu0 %1503
    %1505 = vrot.lane.b32.xlu0 %v1423, 16
    %v1506 = vpop.permute.xlu0 %1505
    %1507 = vrot.lane.b32.xlu0 %v1444, 16
    %v1508 = vpop.permute.xlu0 %1507
    %1509 = vrot.lane.b32.xlu0 %v1465, 16
    %v1510 = vpop.permute.xlu0 %1509
    %1511 = vrot.lane.b32.xlu0 %v1486, 16
    %v1512 = vpop.permute.xlu0 %1511
    %v1521 = vsel %vm563, %v867, %v1498
    %v1522 = vsel %vm563, %v888, %v1500
    %v1523 = vsel %vm563, %v909, %v1502
    %v1524 = vsel %vm563, %v930, %v1504
    %v1525 = vsel %vm563, %v951, %v1506
    %v1526 = vsel %vm563, %v972, %v1508
    %v1527 = vsel %vm563, %v993, %v1510
    %v1528 = vsel %vm563, %v1014, %v1512
    %v1529 = vpack.c.bf16 %v1522, %v1521
    %v1530 = vpack.c.bf16 %v1524, %v1523
    %v1531 = vpack.c.bf16 %v1526, %v1525
    %v1532 = vpack.c.bf16 %v1528, %v1527
    %v1533 = vld [vmem:[#allocation5] sm:$0xf]
    %v1534 = vld [vmem:[#allocation5 + $0x4] sm:$0xf]
    %v1535 = vld [vmem:[#allocation5 + $0x8] sm:$0xf]
    %v1536 = vld [vmem:[#allocation5 + $0xc] sm:$0xf]
    %v1537 = vperm.slane %v468, 0
    %v1542 = vunpack.c.l.b16 %v1533
    %v1543 = vunpack.c.l.b16 %v1534
    %v1544 = vunpack.c.l.b16 %v1535
    %v1545 = vunpack.c.l.b16 %v1536
    %v1546 = vpack.c.b16 %v1543, %v1542
    %v1547 = vpack.c.b16 %v1545, %v1544
    %v1551 = vsel %vm239, %v1529, 0
    %v1554 = vsel %vm239, %v1530, 0
    %v1557 = vsel %vm239, %v1531, 0
    %v1560 = vsel %vm239, %v1532, 0
    %1562 = vmatpush.bf16.msra.mxu0 0
    %1563 = vmatpush.bf16.msra.mxu0 0
    %1564 = vmatpush.bf16.msra.mxu0 0
    %1565 = vmatpush.bf16.msra.mxu0 0
    %1566 = vmatpush.bf16.msra.mxu0 0
    %1567 = vmatpush.bf16.msra.mxu0 0
    %1568 = vmatpush.bf16.msra.mxu0 %v1547
    %1569 = vmatpush.bf16.msra.mxu0 %v1546
    %1570 = vmatmul.bf16.gmra.mxu0 %v1551
    %v1571 = vpop.f32.mrf.mxu0
    %v1572 = vadd.f32 %v1537, %v1571
    %v1573 = vpop.f32.mrf.mxu0
    %v1574 = vadd.f32 %v1537, %v1573
    %1575 = vmatmul.bf16.gmra.mxu0 %v1554
    %v1576 = vpop.f32.mrf.mxu0
    %v1577 = vadd.f32 %v1537, %v1576
    %v1578 = vpop.f32.mrf.mxu0
    %v1579 = vadd.f32 %v1537, %v1578
    %1580 = vmatmul.bf16.gmra.mxu0 %v1557
    %v1581 = vpop.f32.mrf.mxu0
    %v1582 = vadd.f32 %v1537, %v1581
    %v1583 = vpop.f32.mrf.mxu0
    %v1584 = vadd.f32 %v1537, %v1583
    %1585 = vmatmul.bf16.gmra.mxu0 %v1560
    %v1586 = vpop.f32.mrf.mxu0
    %v1587 = vadd.f32 %v1537, %v1586
    %v1588 = vpop.f32.mrf.mxu0
    %v1589 = vadd.f32 %v1537, %v1588
    %1590 = vdwg.mxu0
    %v1591 = vadd.f32 %v433, %v1572
    %v1592 = vadd.f32 %v434, %v1574
    %v1593 = vadd.f32 %v435, %v1577
    %v1594 = vadd.f32 %v436, %v1579
    %v1595 = vadd.f32 %v437, %v1582
    %v1596 = vadd.f32 %v438, %v1584
    %v1597 = vadd.f32 %v439, %v1587
    %v1598 = vadd.f32 %v440, %v1589
    %v1599 = vsel %vm239, %v1591, 0.0
    %1600 = vadd.xlane.f32.xlu0 %v1599
    %v1601 = vpop.xlane.xlu0 %1600
    %v1602 = vsel %vm239, %v1592, 0.0
    %1603 = vadd.xlane.f32.xlu0 %v1602
    %v1604 = vpop.xlane.xlu0 %1603
    %v1605 = vsel %vm239, %v1593, 0.0
    %1606 = vadd.xlane.f32.xlu0 %v1605
    %v1607 = vpop.xlane.xlu0 %1606
    %v1608 = vsel %vm239, %v1594, 0.0
    %1609 = vadd.xlane.f32.xlu0 %v1608
    %v1610 = vpop.xlane.xlu0 %1609
    %v1611 = vsel %vm239, %v1595, 0.0
    %1612 = vadd.xlane.f32.xlu0 %v1611
    %v1613 = vpop.xlane.xlu0 %1612
    %v1614 = vsel %vm239, %v1596, 0.0
    %1615 = vadd.xlane.f32.xlu0 %v1614
    %v1616 = vpop.xlane.xlu0 %1615
    %v1617 = vsel %vm239, %v1597, 0.0
    %1618 = vadd.xlane.f32.xlu0 %v1617
    %v1619 = vpop.xlane.xlu0 %1618
    %v1620 = vsel %vm239, %v1598, 0.0
    %1621 = vadd.xlane.f32.xlu0 %v1620
    %v1622 = vpop.xlane.xlu0 %1621
    %v1623 = vmul.f32 %v1601, %v270
    %v1624 = vmul.f32 %v1604, %v270
    %v1625 = vmul.f32 %v1607, %v270
    %v1626 = vmul.f32 %v1610, %v270
    %v1627 = vmul.f32 %v1613, %v270
    %v1628 = vmul.f32 %v1616, %v270
    %v1629 = vmul.f32 %v1619, %v270
    %v1630 = vmul.f32 %v1622, %v270
    %v1631 = vsub.f32 %v1591, %v1623
    %v1632 = vsub.f32 %v1592, %v1624
    %v1633 = vsub.f32 %v1593, %v1625
    %v1634 = vsub.f32 %v1594, %v1626
    %v1635 = vsub.f32 %v1595, %v1627
    %v1636 = vsub.f32 %v1596, %v1628
    %v1637 = vsub.f32 %v1597, %v1629
    %v1638 = vsub.f32 %v1598, %v1630
    %v1639 = vmul.f32 %v1631, %v1631
    %v1640 = vmul.f32 %v1632, %v1632
    %v1641 = vmul.f32 %v1633, %v1633
    %v1642 = vmul.f32 %v1634, %v1634
    %v1643 = vmul.f32 %v1635, %v1635
    %v1644 = vmul.f32 %v1636, %v1636
    %v1645 = vmul.f32 %v1637, %v1637
    %v1646 = vmul.f32 %v1638, %v1638
    %v1647 = vsel %vm239, %v1639, 0.0
    %1648 = vadd.xlane.f32.xlu0 %v1647
    %v1649 = vpop.xlane.xlu0 %1648
    %v1650 = vsel %vm239, %v1640, 0.0
    %1651 = vadd.xlane.f32.xlu0 %v1650
    %v1652 = vpop.xlane.xlu0 %1651
    %v1653 = vsel %vm239, %v1641, 0.0
    %1654 = vadd.xlane.f32.xlu0 %v1653
    %v1655 = vpop.xlane.xlu0 %1654
    %v1656 = vsel %vm239, %v1642, 0.0
    %1657 = vadd.xlane.f32.xlu0 %v1656
    %v1658 = vpop.xlane.xlu0 %1657
    %v1659 = vsel %vm239, %v1643, 0.0
    %1660 = vadd.xlane.f32.xlu0 %v1659
    %v1661 = vpop.xlane.xlu0 %1660
    %v1662 = vsel %vm239, %v1644, 0.0
    %1663 = vadd.xlane.f32.xlu0 %v1662
    %v1664 = vpop.xlane.xlu0 %1663
    %v1665 = vsel %vm239, %v1645, 0.0
    %1666 = vadd.xlane.f32.xlu0 %v1665
    %v1667 = vpop.xlane.xlu0 %1666
    %v1668 = vsel %vm239, %v1646, 0.0
    %1669 = vadd.xlane.f32.xlu0 %v1668
    %v1670 = vpop.xlane.xlu0 %1669
    %v1671 = vmul.f32 %v1649, %v270
    %v1672 = vmul.f32 %v1652, %v270
    %v1673 = vmul.f32 %v1655, %v270
    %v1674 = vmul.f32 %v1658, %v270
    %v1675 = vmul.f32 %v1661, %v270
    %v1676 = vmul.f32 %v1664, %v270
    %v1677 = vmul.f32 %v1667, %v270
    %v1678 = vmul.f32 %v1670, %v270
    %v1679 = vadd.f32 %v1671, 1e-12
    %v1680 = vadd.f32 %v1672, 1e-12
    %v1681 = vadd.f32 %v1673, 1e-12
    %v1682 = vadd.f32 %v1674, 1e-12
    %v1683 = vadd.f32 %v1675, 1e-12
    %v1684 = vadd.f32 %v1676, 1e-12
    %v1685 = vadd.f32 %v1677, 1e-12
    %v1686 = vadd.f32 %v1678, 1e-12
    %v1687 = vrsqrt.pop %v1679
    %v1688 = vmul.f32 %v1687, %v1679
    %v1689 = vmul.f32 %v1688, %v1687
    %v1690 = vmul.f32 0.5, %v1689
    %v1691 = vsub.f32 1.5, %v1690
    %v1692 = vmul.f32 %v1687, %v1691
    %vm1693 = vweird.f32 %v1679
    %vm1694 = vweird.f32 %v1687
    %vm1695 = vmor %vm1693, %vm1694
    %v1696 = vsel %vm1695, %v1687, %v1692
    %v1697 = vrsqrt.pop %v1680
    %v1698 = vmul.f32 %v1697, %v1680
    %v1699 = vmul.f32 %v1698, %v1697
    %v1700 = vmul.f32 0.5, %v1699
    %v1701 = vsub.f32 1.5, %v1700
    %v1702 = vmul.f32 %v1697, %v1701
    %vm1703 = vweird.f32 %v1680
    %vm1704 = vweird.f32 %v1697
    %vm1705 = vmor %vm1703, %vm1704
    %v1706 = vsel %vm1705, %v1697, %v1702
    %v1707 = vrsqrt.pop %v1681
    %v1708 = vmul.f32 %v1707, %v1681
    %v1709 = vmul.f32 %v1708, %v1707
    %v1710 = vmul.f32 0.5, %v1709
    %v1711 = vsub.f32 1.5, %v1710
    %v1712 = vmul.f32 %v1707, %v1711
    %vm1713 = vweird.f32 %v1681
    %vm1714 = vweird.f32 %v1707
    %vm1715 = vmor %vm1713, %vm1714
    %v1716 = vsel %vm1715, %v1707, %v1712
    %v1717 = vrsqrt.pop %v1682
    %v1718 = vmul.f32 %v1717, %v1682
    %v1719 = vmul.f32 %v1718, %v1717
    %v1720 = vmul.f32 0.5, %v1719
    %v1721 = vsub.f32 1.5, %v1720
    %v1722 = vmul.f32 %v1717, %v1721
    %vm1723 = vweird.f32 %v1682
    %vm1724 = vweird.f32 %v1717
    %vm1725 = vmor %vm1723, %vm1724
    %v1726 = vsel %vm1725, %v1717, %v1722
    %v1727 = vrsqrt.pop %v1683
    %v1728 = vmul.f32 %v1727, %v1683
    %v1729 = vmul.f32 %v1728, %v1727
    %v1730 = vmul.f32 0.5, %v1729
    %v1731 = vsub.f32 1.5, %v1730
    %v1732 = vmul.f32 %v1727, %v1731
    %vm1733 = vweird.f32 %v1683
    %vm1734 = vweird.f32 %v1727
    %vm1735 = vmor %vm1733, %vm1734
    %v1736 = vsel %vm1735, %v1727, %v1732
    %v1737 = vrsqrt.pop %v1684
    %v1738 = vmul.f32 %v1737, %v1684
    %v1739 = vmul.f32 %v1738, %v1737
    %v1740 = vmul.f32 0.5, %v1739
    %v1741 = vsub.f32 1.5, %v1740
    %v1742 = vmul.f32 %v1737, %v1741
    %vm1743 = vweird.f32 %v1684
    %vm1744 = vweird.f32 %v1737
    %vm1745 = vmor %vm1743, %vm1744
    %v1746 = vsel %vm1745, %v1737, %v1742
    %v1747 = vrsqrt.pop %v1685
    %v1748 = vmul.f32 %v1747, %v1685
    %v1749 = vmul.f32 %v1748, %v1747
    %v1750 = vmul.f32 0.5, %v1749
    %v1751 = vsub.f32 1.5, %v1750
    %v1752 = vmul.f32 %v1747, %v1751
    %vm1753 = vweird.f32 %v1685
    %vm1754 = vweird.f32 %v1747
    %vm1755 = vmor %vm1753, %vm1754
    %v1756 = vsel %vm1755, %v1747, %v1752
    %v1757 = vrsqrt.pop %v1686
    %v1758 = vmul.f32 %v1757, %v1686
    %v1759 = vmul.f32 %v1758, %v1757
    %v1760 = vmul.f32 0.5, %v1759
    %v1761 = vsub.f32 1.5, %v1760
    %v1762 = vmul.f32 %v1757, %v1761
    %vm1763 = vweird.f32 %v1686
    %vm1764 = vweird.f32 %v1757
    %vm1765 = vmor %vm1763, %vm1764
    %v1766 = vsel %vm1765, %v1757, %v1762
    %v1767 = vmul.f32 %v1631, %v1696
    %v1768 = vmul.f32 %v1632, %v1706
    %v1769 = vmul.f32 %v1633, %v1716
    %v1770 = vmul.f32 %v1634, %v1726
    %v1771 = vmul.f32 %v1635, %v1736
    %v1772 = vmul.f32 %v1636, %v1746
    %v1773 = vmul.f32 %v1637, %v1756
    %v1774 = vmul.f32 %v1638, %v1766
    %v1775 = vperm.slane %v468, 1
    %v1776 = vmul.f32 %v1767, %v1775
    %v1777 = vmul.f32 %v1768, %v1775
    %v1778 = vmul.f32 %v1769, %v1775
    %v1779 = vmul.f32 %v1770, %v1775
    %v1780 = vmul.f32 %v1771, %v1775
    %v1781 = vmul.f32 %v1772, %v1775
    %v1782 = vmul.f32 %v1773, %v1775
    %v1783 = vmul.f32 %v1774, %v1775
    %v1784 = vperm.slane %v468, 2
    %v1785 = vadd.f32 %v1776, %v1784
    %v1786 = vadd.f32 %v1777, %v1784
    %v1787 = vadd.f32 %v1778, %v1784
    %v1788 = vadd.f32 %v1779, %v1784
    %v1789 = vadd.f32 %v1780, %v1784
    %v1790 = vadd.f32 %v1781, %v1784
    %v1791 = vadd.f32 %v1782, %v1784
    %v1792 = vadd.f32 %v1783, %v1784
    %v1793 = vpack.c.bf16 %v1786, %v1785
    %v1794 = vpack.c.bf16 %v1788, %v1787
    %v1795 = vpack.c.bf16 %v1790, %v1789
    %v1796 = vpack.c.bf16 %v1792, %v1791
    %v1797 = vld [vmem:[#allocation7] sm:$0xf]
    %v1798 = vld [vmem:[#allocation7 + $0x4] sm:$0xf]
    %v1799 = vld [vmem:[#allocation7 + $0x8] sm:$0xf]
    %v1800 = vld [vmem:[#allocation7 + $0xc] sm:$0xf]
    %v1801 = vld [vmem:[%s10] sm:$0x1]
    %v1803 = vperm.slane %v1801, 0
    %v1809 = vunpack.c.l.b16 %v1797
    %v1810 = vunpack.c.l.b16 %v1798
    %v1811 = vunpack.c.l.b16 %v1799
    %v1812 = vunpack.c.l.b16 %v1800
    %v1813 = vpack.c.b16 %v1810, %v1809
    %v1814 = vpack.c.b16 %v1812, %v1811
    %v1818 = vsel %vm239, %v1793, 0
    %v1821 = vsel %vm239, %v1794, 0
    %v1824 = vsel %vm239, %v1795, 0
    %v1827 = vsel %vm239, %v1796, 0
    %1829 = vmatpush.bf16.msra.mxu0 0
    %1830 = vmatpush.bf16.msra.mxu0 0
    %1831 = vmatpush.bf16.msra.mxu0 0
    %1832 = vmatpush.bf16.msra.mxu0 0
    %1833 = vmatpush.bf16.msra.mxu0 0
    %1834 = vmatpush.bf16.msra.mxu0 0
    %1835 = vmatpush.bf16.msra.mxu0 %v1814
    %1836 = vmatpush.bf16.msra.mxu0 %v1813
    %1837 = vmatmul.bf16.gmra.mxu0 %v1818
    %v1838 = vpop.f32.mrf.mxu0
    %v1839 = vadd.f32 %v1803, %v1838
    %v1840 = vpop.f32.mrf.mxu0
    %v1841 = vadd.f32 %v1803, %v1840
    %1842 = vmatmul.bf16.gmra.mxu0 %v1821
    %v1843 = vpop.f32.mrf.mxu0
    %v1844 = vadd.f32 %v1803, %v1843
    %v1845 = vpop.f32.mrf.mxu0
    %v1846 = vadd.f32 %v1803, %v1845
    %1847 = vmatmul.bf16.gmra.mxu0 %v1824
    %v1848 = vpop.f32.mrf.mxu0
    %v1849 = vadd.f32 %v1803, %v1848
    %v1850 = vpop.f32.mrf.mxu0
    %v1851 = vadd.f32 %v1803, %v1850
    %1852 = vmatmul.bf16.gmra.mxu0 %v1827
    %v1853 = vpop.f32.mrf.mxu0
    %v1854 = vadd.f32 %v1803, %v1853
    %v1855 = vpop.f32.mrf.mxu0
    %v1856 = vadd.f32 %v1803, %v1855
    %1857 = vdwg.mxu0
    %v1858 = vmul.f32 %v1839, %v1839
    %v1859 = vmul.f32 %v1841, %v1841
    %v1860 = vmul.f32 %v1844, %v1844
    %v1861 = vmul.f32 %v1846, %v1846
    %v1862 = vmul.f32 %v1849, %v1849
    %v1863 = vmul.f32 %v1851, %v1851
    %v1864 = vmul.f32 %v1854, %v1854
    %v1865 = vmul.f32 %v1856, %v1856
    %v1866 = vmul.f32 %v1839, %v1858
    %v1867 = vmul.f32 %v1841, %v1859
    %v1868 = vmul.f32 %v1844, %v1860
    %v1869 = vmul.f32 %v1846, %v1861
    %v1870 = vmul.f32 %v1849, %v1862
    %v1871 = vmul.f32 %v1851, %v1863
    %v1872 = vmul.f32 %v1854, %v1864
    %v1873 = vmul.f32 %v1856, %v1865
    %v1874 = vmul.f32 %v1866, 0.044715
    %v1875 = vmul.f32 %v1867, 0.044715
    %v1876 = vmul.f32 %v1868, 0.044715
    %v1877 = vmul.f32 %v1869, 0.044715
    %v1878 = vmul.f32 %v1870, 0.044715
    %v1879 = vmul.f32 %v1871, 0.044715
    %v1880 = vmul.f32 %v1872, 0.044715
    %v1881 = vmul.f32 %v1873, 0.044715
    %v1882 = vadd.f32 %v1839, %v1874
    %v1883 = vadd.f32 %v1841, %v1875
    %v1884 = vadd.f32 %v1844, %v1876
    %v1885 = vadd.f32 %v1846, %v1877
    %v1886 = vadd.f32 %v1849, %v1878
    %v1887 = vadd.f32 %v1851, %v1879
    %v1888 = vadd.f32 %v1854, %v1880
    %v1889 = vadd.f32 %v1856, %v1881
    %v1890 = vmul.f32 %v1882, 0.7978846
    %v1891 = vmul.f32 %v1883, 0.7978846
    %v1892 = vmul.f32 %v1884, 0.7978846
    %v1893 = vmul.f32 %v1885, 0.7978846
    %v1894 = vmul.f32 %v1886, 0.7978846
    %v1895 = vmul.f32 %v1887, 0.7978846
    %v1896 = vmul.f32 %v1888, 0.7978846
    %v1897 = vmul.f32 %v1889, 0.7978846
    %v1898 = vtanh.pop %v1890
    %v1899 = vtanh.pop %v1891
    %v1900 = vtanh.pop %v1892
    %v1901 = vtanh.pop %v1893
    %v1902 = vtanh.pop %v1894
    %v1903 = vtanh.pop %v1895
    %v1904 = vtanh.pop %v1896
    %v1905 = vtanh.pop %v1897
    %v1906 = vadd.f32 %v1898, 1.0
    %v1907 = vadd.f32 %v1899, 1.0
    %v1908 = vadd.f32 %v1900, 1.0
    %v1909 = vadd.f32 %v1901, 1.0
    %v1910 = vadd.f32 %v1902, 1.0
    %v1911 = vadd.f32 %v1903, 1.0
    %v1912 = vadd.f32 %v1904, 1.0
    %v1913 = vadd.f32 %v1905, 1.0
    %v1914 = vmul.f32 %v1906, 0.5
    %v1915 = vmul.f32 %v1907, 0.5
    %v1916 = vmul.f32 %v1908, 0.5
    %v1917 = vmul.f32 %v1909, 0.5
    %v1918 = vmul.f32 %v1910, 0.5
    %v1919 = vmul.f32 %v1911, 0.5
    %v1920 = vmul.f32 %v1912, 0.5
    %v1921 = vmul.f32 %v1913, 0.5
    %v1922 = vmul.f32 %v1839, %v1914
    %v1923 = vmul.f32 %v1841, %v1915
    %v1924 = vmul.f32 %v1844, %v1916
    %v1925 = vmul.f32 %v1846, %v1917
    %v1926 = vmul.f32 %v1849, %v1918
    %v1927 = vmul.f32 %v1851, %v1919
    %v1928 = vmul.f32 %v1854, %v1920
    %v1929 = vmul.f32 %v1856, %v1921
    %v1930 = vpack.c.bf16 %v1923, %v1922
    %v1931 = vpack.c.bf16 %v1925, %v1924
    %v1932 = vpack.c.bf16 %v1927, %v1926
    %v1933 = vpack.c.bf16 %v1929, %v1928
    %v1934 = vld [vmem:[%s11] sm:$0xf]
    %v1935 = vld [vmem:[%s11 + $0x4] sm:$0xf]
    %v1936 = vld [vmem:[%s11 + $0x8] sm:$0xf]
    %v1937 = vld [vmem:[%s11 + $0xc] sm:$0xf]
    %v1938 = vld [vmem:[%s11 + $0x10] sm:$0xf]
    %v1939 = vld [vmem:[%s11 + $0x14] sm:$0xf]
    %v1940 = vld [vmem:[%s11 + $0x18] sm:$0xf]
    %v1941 = vld [vmem:[%s11 + $0x1c] sm:$0xf]
    %v1942 = vperm.slane %v468, 3
    %v1951 = vunpack.c.l.b16 %v1934
    %v1952 = vunpack.c.l.b16 %v1935
    %v1953 = vunpack.c.l.b16 %v1936
    %v1954 = vunpack.c.l.b16 %v1937
    %v1955 = vunpack.c.l.b16 %v1938
    %v1956 = vunpack.c.l.b16 %v1939
    %v1957 = vunpack.c.l.b16 %v1940
    %v1958 = vunpack.c.l.b16 %v1941
    %v1959 = vpack.c.b16 %v1952, %v1951
    %v1960 = vpack.c.b16 %v1954, %v1953
    %v1961 = vpack.c.b16 %v1956, %v1955
    %v1962 = vpack.c.b16 %v1958, %v1957
    %v1968 = vsel %vm171, %v1930, 0
    %v1971 = vsel %vm171, %v1931, 0
    %v1974 = vsel %vm171, %v1932, 0
    %v1977 = vsel %vm171, %v1933, 0
    %1979 = vmatpush.bf16.msra.mxu0 0
    %1980 = vmatpush.bf16.msra.mxu0 0
    %1981 = vmatpush.bf16.msra.mxu0 0
    %1982 = vmatpush.bf16.msra.mxu0 0
    %1983 = vmatpush.bf16.msra.mxu0 %v1962
    %1984 = vmatpush.bf16.msra.mxu0 %v1961
    %1985 = vmatpush.bf16.msra.mxu0 %v1960
    %1986 = vmatpush.bf16.msra.mxu0 %v1959
    %1987 = vmatmul.bf16.gmra.mxu0 %v1968
    %v1988 = vpop.f32.mrf.mxu0
    %v1989 = vadd.f32 %v1942, %v1988
    %v1990 = vpop.f32.mrf.mxu0
    %v1991 = vadd.f32 %v1942, %v1990
    %1992 = vmatmul.bf16.gmra.mxu0 %v1971
    %v1993 = vpop.f32.mrf.mxu0
    %v1994 = vadd.f32 %v1942, %v1993
    %v1995 = vpop.f32.mrf.mxu0
    %v1996 = vadd.f32 %v1942, %v1995
    %1997 = vmatmul.bf16.gmra.mxu0 %v1974
    %v1998 = vpop.f32.mrf.mxu0
    %v1999 = vadd.f32 %v1942, %v1998
    %v2000 = vpop.f32.mrf.mxu0
    %v2001 = vadd.f32 %v1942, %v2000
    %2002 = vmatmul.bf16.gmra.mxu0 %v1977
    %v2003 = vpop.f32.mrf.mxu0
    %v2004 = vadd.f32 %v1942, %v2003
    %v2005 = vpop.f32.mrf.mxu0
    %v2006 = vadd.f32 %v1942, %v2005
    %2007 = vdwg.mxu0
    %v2008 = vadd.f32 %v1785, %v1989
    %v2009 = vadd.f32 %v1786, %v1991
    %v2010 = vadd.f32 %v1787, %v1994
    %v2011 = vadd.f32 %v1788, %v1996
    %v2012 = vadd.f32 %v1789, %v1999
    %v2013 = vadd.f32 %v1790, %v2001
    %v2014 = vadd.f32 %v1791, %v2004
    %v2015 = vadd.f32 %v1792, %v2006
    %v2016 = vsel %vm239, %v2008, 0.0
    %2017 = vadd.xlane.f32.xlu0 %v2016
    %v2018 = vpop.xlane.xlu0 %2017
    %v2019 = vsel %vm239, %v2009, 0.0
    %2020 = vadd.xlane.f32.xlu0 %v2019
    %v2021 = vpop.xlane.xlu0 %2020
    %v2022 = vsel %vm239, %v2010, 0.0
    %2023 = vadd.xlane.f32.xlu0 %v2022
    %v2024 = vpop.xlane.xlu0 %2023
    %v2025 = vsel %vm239, %v2011, 0.0
    %2026 = vadd.xlane.f32.xlu0 %v2025
    %v2027 = vpop.xlane.xlu0 %2026
    %v2028 = vsel %vm239, %v2012, 0.0
    %2029 = vadd.xlane.f32.xlu0 %v2028
    %v2030 = vpop.xlane.xlu0 %2029
    %v2031 = vsel %vm239, %v2013, 0.0
    %2032 = vadd.xlane.f32.xlu0 %v2031
    %v2033 = vpop.xlane.xlu0 %2032
    %v2034 = vsel %vm239, %v2014, 0.0
    %2035 = vadd.xlane.f32.xlu0 %v2034
    %v2036 = vpop.xlane.xlu0 %2035
    %v2037 = vsel %vm239, %v2015, 0.0
    %2038 = vadd.xlane.f32.xlu0 %v2037
    %v2039 = vpop.xlane.xlu0 %2038
    %v2040 = vmul.f32 %v2018, %v270
    %v2041 = vmul.f32 %v2021, %v270
    %v2042 = vmul.f32 %v2024, %v270
    %v2043 = vmul.f32 %v2027, %v270
    %v2044 = vmul.f32 %v2030, %v270
    %v2045 = vmul.f32 %v2033, %v270
    %v2046 = vmul.f32 %v2036, %v270
    %v2047 = vmul.f32 %v2039, %v270
    %v2048 = vsub.f32 %v2008, %v2040
    %v2049 = vsub.f32 %v2009, %v2041
    %v2050 = vsub.f32 %v2010, %v2042
    %v2051 = vsub.f32 %v2011, %v2043
    %v2052 = vsub.f32 %v2012, %v2044
    %v2053 = vsub.f32 %v2013, %v2045
    %v2054 = vsub.f32 %v2014, %v2046
    %v2055 = vsub.f32 %v2015, %v2047
    %v2056 = vmul.f32 %v2048, %v2048
    %v2057 = vmul.f32 %v2049, %v2049
    %v2058 = vmul.f32 %v2050, %v2050
    %v2059 = vmul.f32 %v2051, %v2051
    %v2060 = vmul.f32 %v2052, %v2052
    %v2061 = vmul.f32 %v2053, %v2053
    %v2062 = vmul.f32 %v2054, %v2054
    %v2063 = vmul.f32 %v2055, %v2055
    %v2064 = vsel %vm239, %v2056, 0.0
    %2065 = vadd.xlane.f32.xlu0 %v2064
    %v2066 = vpop.xlane.xlu0 %2065
    %v2067 = vsel %vm239, %v2057, 0.0
    %2068 = vadd.xlane.f32.xlu0 %v2067
    %v2069 = vpop.xlane.xlu0 %2068
    %v2070 = vsel %vm239, %v2058, 0.0
    %2071 = vadd.xlane.f32.xlu0 %v2070
    %v2072 = vpop.xlane.xlu0 %2071
    %v2073 = vsel %vm239, %v2059, 0.0
    %2074 = vadd.xlane.f32.xlu0 %v2073
    %v2075 = vpop.xlane.xlu0 %2074
    %v2076 = vsel %vm239, %v2060, 0.0
    %2077 = vadd.xlane.f32.xlu0 %v2076
    %v2078 = vpop.xlane.xlu0 %2077
    %v2079 = vsel %vm239, %v2061, 0.0
    %2080 = vadd.xlane.f32.xlu0 %v2079
    %v2081 = vpop.xlane.xlu0 %2080
    %v2082 = vsel %vm239, %v2062, 0.0
    %2083 = vadd.xlane.f32.xlu0 %v2082
    %v2084 = vpop.xlane.xlu0 %2083
    %v2085 = vsel %vm239, %v2063, 0.0
    %2086 = vadd.xlane.f32.xlu0 %v2085
    %v2087 = vpop.xlane.xlu0 %2086
    %v2088 = vmul.f32 %v2066, %v270
    %v2089 = vmul.f32 %v2069, %v270
    %v2090 = vmul.f32 %v2072, %v270
    %v2091 = vmul.f32 %v2075, %v270
    %v2092 = vmul.f32 %v2078, %v270
    %v2093 = vmul.f32 %v2081, %v270
    %v2094 = vmul.f32 %v2084, %v270
    %v2095 = vmul.f32 %v2087, %v270
    %v2096 = vadd.f32 %v2088, 1e-12
    %v2097 = vadd.f32 %v2089, 1e-12
    %v2098 = vadd.f32 %v2090, 1e-12
    %v2099 = vadd.f32 %v2091, 1e-12
    %v2100 = vadd.f32 %v2092, 1e-12
    %v2101 = vadd.f32 %v2093, 1e-12
    %v2102 = vadd.f32 %v2094, 1e-12
    %v2103 = vadd.f32 %v2095, 1e-12
    %v2104 = vrsqrt.pop %v2096
    %v2105 = vmul.f32 %v2104, %v2096
    %v2106 = vmul.f32 %v2105, %v2104
    %v2107 = vmul.f32 0.5, %v2106
    %v2108 = vsub.f32 1.5, %v2107
    %v2109 = vmul.f32 %v2104, %v2108
    %vm2110 = vweird.f32 %v2096
    %vm2111 = vweird.f32 %v2104
    %vm2112 = vmor %vm2110, %vm2111
    %v2113 = vsel %vm2112, %v2104, %v2109
    %v2114 = vrsqrt.pop %v2097
    %v2115 = vmul.f32 %v2114, %v2097
    %v2116 = vmul.f32 %v2115, %v2114
    %v2117 = vmul.f32 0.5, %v2116
    %v2118 = vsub.f32 1.5, %v2117
    %v2119 = vmul.f32 %v2114, %v2118
    %vm2120 = vweird.f32 %v2097
    %vm2121 = vweird.f32 %v2114
    %vm2122 = vmor %vm2120, %vm2121
    %v2123 = vsel %vm2122, %v2114, %v2119
    %v2124 = vrsqrt.pop %v2098
    %v2125 = vmul.f32 %v2124, %v2098
    %v2126 = vmul.f32 %v2125, %v2124
    %v2127 = vmul.f32 0.5, %v2126
    %v2128 = vsub.f32 1.5, %v2127
    %v2129 = vmul.f32 %v2124, %v2128
    %vm2130 = vweird.f32 %v2098
    %vm2131 = vweird.f32 %v2124
    %vm2132 = vmor %vm2130, %vm2131
    %v2133 = vsel %vm2132, %v2124, %v2129
    %v2134 = vrsqrt.pop %v2099
    %v2135 = vmul.f32 %v2134, %v2099
    %v2136 = vmul.f32 %v2135, %v2134
    %v2137 = vmul.f32 0.5, %v2136
    %v2138 = vsub.f32 1.5, %v2137
    %v2139 = vmul.f32 %v2134, %v2138
    %vm2140 = vweird.f32 %v2099
    %vm2141 = vweird.f32 %v2134
    %vm2142 = vmor %vm2140, %vm2141
    %v2143 = vsel %vm2142, %v2134, %v2139
    %v2144 = vrsqrt.pop %v2100
    %v2145 = vmul.f32 %v2144, %v2100
    %v2146 = vmul.f32 %v2145, %v2144
    %v2147 = vmul.f32 0.5, %v2146
    %v2148 = vsub.f32 1.5, %v2147
    %v2149 = vmul.f32 %v2144, %v2148
    %vm2150 = vweird.f32 %v2100
    %vm2151 = vweird.f32 %v2144
    %vm2152 = vmor %vm2150, %vm2151
    %v2153 = vsel %vm2152, %v2144, %v2149
    %v2154 = vrsqrt.pop %v2101
    %v2155 = vmul.f32 %v2154, %v2101
    %v2156 = vmul.f32 %v2155, %v2154
    %v2157 = vmul.f32 0.5, %v2156
    %v2158 = vsub.f32 1.5, %v2157
    %v2159 = vmul.f32 %v2154, %v2158
    %vm2160 = vweird.f32 %v2101
    %vm2161 = vweird.f32 %v2154
    %vm2162 = vmor %vm2160, %vm2161
    %v2163 = vsel %vm2162, %v2154, %v2159
    %v2164 = vrsqrt.pop %v2102
    %v2165 = vmul.f32 %v2164, %v2102
    %v2166 = vmul.f32 %v2165, %v2164
    %v2167 = vmul.f32 0.5, %v2166
    %v2168 = vsub.f32 1.5, %v2167
    %v2169 = vmul.f32 %v2164, %v2168
    %vm2170 = vweird.f32 %v2102
    %vm2171 = vweird.f32 %v2164
    %vm2172 = vmor %vm2170, %vm2171
    %v2173 = vsel %vm2172, %v2164, %v2169
    %v2174 = vrsqrt.pop %v2103
    %v2175 = vmul.f32 %v2174, %v2103
    %v2176 = vmul.f32 %v2175, %v2174
    %v2177 = vmul.f32 0.5, %v2176
    %v2178 = vsub.f32 1.5, %v2177
    %v2179 = vmul.f32 %v2174, %v2178
    %vm2180 = vweird.f32 %v2103
    %vm2181 = vweird.f32 %v2174
    %vm2182 = vmor %vm2180, %vm2181
    %v2183 = vsel %vm2182, %v2174, %v2179
    %v2184 = vmul.f32 %v2048, %v2113
    %v2185 = vmul.f32 %v2049, %v2123
    %v2186 = vmul.f32 %v2050, %v2133
    %v2187 = vmul.f32 %v2051, %v2143
    %v2188 = vmul.f32 %v2052, %v2153
    %v2189 = vmul.f32 %v2053, %v2163
    %v2190 = vmul.f32 %v2054, %v2173
    %v2191 = vmul.f32 %v2055, %v2183
    %v2192 = vperm.slane %v468, 4
    %v2193 = vmul.f32 %v2184, %v2192
    %v2194 = vmul.f32 %v2185, %v2192
    %v2195 = vmul.f32 %v2186, %v2192
    %v2196 = vmul.f32 %v2187, %v2192
    %v2197 = vmul.f32 %v2188, %v2192
    %v2198 = vmul.f32 %v2189, %v2192
    %v2199 = vmul.f32 %v2190, %v2192
    %v2200 = vmul.f32 %v2191, %v2192
    %v2201 = vperm.slane %v468, 5
    %v2202 = vadd.f32 %v2193, %v2201
    %v2203 = vadd.f32 %v2194, %v2201
    %v2204 = vadd.f32 %v2195, %v2201
    %v2205 = vadd.f32 %v2196, %v2201
    %v2206 = vadd.f32 %v2197, %v2201
    %v2207 = vadd.f32 %v2198, %v2201
    %v2208 = vadd.f32 %v2199, %v2201
    %v2209 = vadd.f32 %v2200, %v2201
    %s2210 = scalar_lea.vmem %s8, 8
    %v2211 = vld [vmem:[%s2210] sm:$0x3f]
    %v2212 = vpack.c.bf16 %v2203, %v2202
    %v2213 = vpack.c.bf16 %v2205, %v2204
    %v2214 = vpack.c.bf16 %v2207, %v2206
    %v2215 = vpack.c.bf16 %v2209, %v2208
    %s2216 = scalar_lea.vmem [#allocation3], 16
    %v2217 = vld [vmem:[%s2216] sm:$0xf]
    %v2218 = vld [vmem:[%s2216 + $0x4] sm:$0xf]
    %v2219 = vld [vmem:[%s2216 + $0x8] sm:$0xf]
    %v2220 = vld [vmem:[%s2216 + $0xc] sm:$0xf]
    %s2221 = scalar_lea.vmem %s6, 1
    %v2222 = vld [vmem:[%s2221] sm:$0x1]
    %v2224 = vperm.slane %v2222, 0
    %v2230 = vunpack.c.l.b16 %v2217
    %v2231 = vunpack.c.l.b16 %v2218
    %v2232 = vunpack.c.l.b16 %v2219
    %v2233 = vunpack.c.l.b16 %v2220
    %v2234 = vpack.c.b16 %v2231, %v2230
    %v2235 = vpack.c.b16 %v2233, %v2232
    %v2239 = vsel %vm239, %v2212, 0
    %v2242 = vsel %vm239, %v2213, 0
    %v2245 = vsel %vm239, %v2214, 0
    %v2248 = vsel %vm239, %v2215, 0
    %2250 = vmatpush.bf16.msra.mxu0 0
    %2251 = vmatpush.bf16.msra.mxu0 0
    %2252 = vmatpush.bf16.msra.mxu0 0
    %2253 = vmatpush.bf16.msra.mxu0 0
    %2254 = vmatpush.bf16.msra.mxu0 0
    %2255 = vmatpush.bf16.msra.mxu0 0
    %2256 = vmatpush.bf16.msra.mxu0 %v2235
    %2257 = vmatpush.bf16.msra.mxu0 %v2234
    %2258 = vmatmul.bf16.gmra.mxu0 %v2239
    %v2259 = vpop.f32.mrf.mxu0
    %v2260 = vadd.f32 %v2224, %v2259
    %v2261 = vpop.f32.mrf.mxu0
    %v2262 = vadd.f32 %v2224, %v2261
    %2263 = vmatmul.bf16.gmra.mxu0 %v2242
    %v2264 = vpop.f32.mrf.mxu0
    %v2265 = vadd.f32 %v2224, %v2264
    %v2266 = vpop.f32.mrf.mxu0
    %v2267 = vadd.f32 %v2224, %v2266
    %2268 = vmatmul.bf16.gmra.mxu0 %v2245
    %v2269 = vpop.f32.mrf.mxu0
    %v2270 = vadd.f32 %v2224, %v2269
    %v2271 = vpop.f32.mrf.mxu0
    %v2272 = vadd.f32 %v2224, %v2271
    %2273 = vmatmul.bf16.gmra.mxu0 %v2248
    %v2274 = vpop.f32.mrf.mxu0
    %v2275 = vadd.f32 %v2224, %v2274
    %v2276 = vpop.f32.mrf.mxu0
    %v2277 = vadd.f32 %v2224, %v2276
    %2278 = vdwg.mxu0
    %v2279 = vmul.f32 %v2260, 0.25
    %v2280 = vmul.f32 %v2262, 0.25
    %v2281 = vmul.f32 %v2265, 0.25
    %v2282 = vmul.f32 %v2267, 0.25
    %v2283 = vmul.f32 %v2270, 0.25
    %v2284 = vmul.f32 %v2272, 0.25
    %v2285 = vmul.f32 %v2275, 0.25
    %v2286 = vmul.f32 %v2277, 0.25
    %v2287 = vpack.c.bf16 %v2279, %v2279
    %v2288 = vpack.c.bf16 %v2280, %v2280
    %v2289 = vpack.c.bf16 %v2281, %v2281
    %v2290 = vpack.c.bf16 %v2282, %v2282
    %v2291 = vpack.c.bf16 %v2283, %v2283
    %v2292 = vpack.c.bf16 %v2284, %v2284
    %v2293 = vpack.c.bf16 %v2285, %v2285
    %v2294 = vpack.c.bf16 %v2286, %v2286
    %v2295 = vpack.c.bf16 %v2260, %v2260
    %v2296 = vpack.c.bf16 %v2262, %v2262
    %v2297 = vpack.c.bf16 %v2265, %v2265
    %v2298 = vpack.c.bf16 %v2267, %v2267
    %v2299 = vpack.c.bf16 %v2270, %v2270
    %v2300 = vpack.c.bf16 %v2272, %v2272
    %v2301 = vpack.c.bf16 %v2275, %v2275
    %v2302 = vpack.c.bf16 %v2277, %v2277
    %v2304 = vunpack.c.l.b16 %v2295
    %v2305 = vpack.c.b16 %v2304, %v2304
    %2306 = vrot.lane.b32.xlu0 %v2305, 96
    %v2307 = vpop.permute.xlu0 %2306
    %v2309 = vsel %vm563, %v2287, 0
    %v2312 = vsel %vm563, %v2307, 0
    %2314 = vmatpush.bf16.xpose.msra.mxu0 0
    %2315 = vmatpush.bf16.xpose.msra.mxu0 0
    %2316 = vmatpush.bf16.xpose.msra.mxu0 0
    %2317 = vmatpush.bf16.xpose.msra.mxu0 0
    %2318 = vmatpush.bf16.xpose.msra.mxu0 0
    %2319 = vmatpush.bf16.xpose.msra.mxu0 0
    %2320 = vmatpush.bf16.xpose.msra.mxu0 0
    %2321 = vmatpush.bf16.xpose.msra.mxu0 %v2312
    %2322 = vmatmul.bf16.gmra.mxu0 %v2309
    %v2323 = vpop.f32.mrf.mxu0
    %v2324 = vadd.f32 %v452, %v2323
    %v2325 = vpop.f32.mrf.mxu0
    %2326 = vdwg.mxu0
    %v2328 = vunpack.c.l.b16 %v2296
    %v2329 = vpack.c.b16 %v2328, %v2328
    %2330 = vrot.lane.b32.xlu0 %v2329, 96
    %v2331 = vpop.permute.xlu0 %2330
    %v2333 = vsel %vm563, %v2288, 0
    %v2336 = vsel %vm563, %v2331, 0
    %2338 = vmatpush.bf16.xpose.msra.mxu0 0
    %2339 = vmatpush.bf16.xpose.msra.mxu0 0
    %2340 = vmatpush.bf16.xpose.msra.mxu0 0
    %2341 = vmatpush.bf16.xpose.msra.mxu0 0
    %2342 = vmatpush.bf16.xpose.msra.mxu0 0
    %2343 = vmatpush.bf16.xpose.msra.mxu0 0
    %2344 = vmatpush.bf16.xpose.msra.mxu0 0
    %2345 = vmatpush.bf16.xpose.msra.mxu0 %v2336
    %2346 = vmatmul.bf16.gmra.mxu0 %v2333
    %v2347 = vpop.f32.mrf.mxu0
    %v2348 = vadd.f32 %v453, %v2347
    %v2349 = vpop.f32.mrf.mxu0
    %2350 = vdwg.mxu0
    %v2352 = vunpack.c.l.b16 %v2297
    %v2353 = vpack.c.b16 %v2352, %v2352
    %2354 = vrot.lane.b32.xlu0 %v2353, 96
    %v2355 = vpop.permute.xlu0 %2354
    %v2357 = vsel %vm563, %v2289, 0
    %v2360 = vsel %vm563, %v2355, 0
    %2362 = vmatpush.bf16.xpose.msra.mxu0 0
    %2363 = vmatpush.bf16.xpose.msra.mxu0 0
    %2364 = vmatpush.bf16.xpose.msra.mxu0 0
    %2365 = vmatpush.bf16.xpose.msra.mxu0 0
    %2366 = vmatpush.bf16.xpose.msra.mxu0 0
    %2367 = vmatpush.bf16.xpose.msra.mxu0 0
    %2368 = vmatpush.bf16.xpose.msra.mxu0 0
    %2369 = vmatpush.bf16.xpose.msra.mxu0 %v2360
    %2370 = vmatmul.bf16.gmra.mxu0 %v2357
    %v2371 = vpop.f32.mrf.mxu0
    %v2372 = vadd.f32 %v454, %v2371
    %v2373 = vpop.f32.mrf.mxu0
    %2374 = vdwg.mxu0
    %v2376 = vunpack.c.l.b16 %v2298
    %v2377 = vpack.c.b16 %v2376, %v2376
    %2378 = vrot.lane.b32.xlu0 %v2377, 96
    %v2379 = vpop.permute.xlu0 %2378
    %v2381 = vsel %vm563, %v2290, 0
    %v2384 = vsel %vm563, %v2379, 0
    %2386 = vmatpush.bf16.xpose.msra.mxu0 0
    %2387 = vmatpush.bf16.xpose.msra.mxu0 0
    %2388 = vmatpush.bf16.xpose.msra.mxu0 0
    %2389 = vmatpush.bf16.xpose.msra.mxu0 0
    %2390 = vmatpush.bf16.xpose.msra.mxu0 0
    %2391 = vmatpush.bf16.xpose.msra.mxu0 0
    %2392 = vmatpush.bf16.xpose.msra.mxu0 0
    %2393 = vmatpush.bf16.xpose.msra.mxu0 %v2384
    %2394 = vmatmul.bf16.gmra.mxu0 %v2381
    %v2395 = vpop.f32.mrf.mxu0
    %v2396 = vadd.f32 %v455, %v2395
    %v2397 = vpop.f32.mrf.mxu0
    %2398 = vdwg.mxu0
    %v2400 = vunpack.c.l.b16 %v2299
    %v2401 = vpack.c.b16 %v2400, %v2400
    %2402 = vrot.lane.b32.xlu0 %v2401, 96
    %v2403 = vpop.permute.xlu0 %2402
    %v2405 = vsel %vm563, %v2291, 0
    %v2408 = vsel %vm563, %v2403, 0
    %2410 = vmatpush.bf16.xpose.msra.mxu0 0
    %2411 = vmatpush.bf16.xpose.msra.mxu0 0
    %2412 = vmatpush.bf16.xpose.msra.mxu0 0
    %2413 = vmatpush.bf16.xpose.msra.mxu0 0
    %2414 = vmatpush.bf16.xpose.msra.mxu0 0
    %2415 = vmatpush.bf16.xpose.msra.mxu0 0
    %2416 = vmatpush.bf16.xpose.msra.mxu0 0
    %2417 = vmatpush.bf16.xpose.msra.mxu0 %v2408
    %2418 = vmatmul.bf16.gmra.mxu0 %v2405
    %v2419 = vpop.f32.mrf.mxu0
    %v2420 = vadd.f32 %v456, %v2419
    %v2421 = vpop.f32.mrf.mxu0
    %2422 = vdwg.mxu0
    %v2424 = vunpack.c.l.b16 %v2300
    %v2425 = vpack.c.b16 %v2424, %v2424
    %2426 = vrot.lane.b32.xlu0 %v2425, 96
    %v2427 = vpop.permute.xlu0 %2426
    %v2429 = vsel %vm563, %v2292, 0
    %v2432 = vsel %vm563, %v2427, 0
    %2434 = vmatpush.bf16.xpose.msra.mxu0 0
    %2435 = vmatpush.bf16.xpose.msra.mxu0 0
    %2436 = vmatpush.bf16.xpose.msra.mxu0 0
    %2437 = vmatpush.bf16.xpose.msra.mxu0 0
    %2438 = vmatpush.bf16.xpose.msra.mxu0 0
    %2439 = vmatpush.bf16.xpose.msra.mxu0 0
    %2440 = vmatpush.bf16.xpose.msra.mxu0 0
    %2441 = vmatpush.bf16.xpose.msra.mxu0 %v2432
    %2442 = vmatmul.bf16.gmra.mxu0 %v2429
    %v2443 = vpop.f32.mrf.mxu0
    %v2444 = vadd.f32 %v457, %v2443
    %v2445 = vpop.f32.mrf.mxu0
    %2446 = vdwg.mxu0
    %v2448 = vunpack.c.l.b16 %v2301
    %v2449 = vpack.c.b16 %v2448, %v2448
    %2450 = vrot.lane.b32.xlu0 %v2449, 96
    %v2451 = vpop.permute.xlu0 %2450
    %v2453 = vsel %vm563, %v2293, 0
    %v2456 = vsel %vm563, %v2451, 0
    %2458 = vmatpush.bf16.xpose.msra.mxu0 0
    %2459 = vmatpush.bf16.xpose.msra.mxu0 0
    %2460 = vmatpush.bf16.xpose.msra.mxu0 0
    %2461 = vmatpush.bf16.xpose.msra.mxu0 0
    %2462 = vmatpush.bf16.xpose.msra.mxu0 0
    %2463 = vmatpush.bf16.xpose.msra.mxu0 0
    %2464 = vmatpush.bf16.xpose.msra.mxu0 0
    %2465 = vmatpush.bf16.xpose.msra.mxu0 %v2456
    %2466 = vmatmul.bf16.gmra.mxu0 %v2453
    %v2467 = vpop.f32.mrf.mxu0
    %v2468 = vadd.f32 %v458, %v2467
    %v2469 = vpop.f32.mrf.mxu0
    %2470 = vdwg.mxu0
    %v2472 = vunpack.c.l.b16 %v2302
    %v2473 = vpack.c.b16 %v2472, %v2472
    %2474 = vrot.lane.b32.xlu0 %v2473, 96
    %v2475 = vpop.permute.xlu0 %2474
    %v2477 = vsel %vm563, %v2294, 0
    %v2480 = vsel %vm563, %v2475, 0
    %2482 = vmatpush.bf16.xpose.msra.mxu0 0
    %2483 = vmatpush.bf16.xpose.msra.mxu0 0
    %2484 = vmatpush.bf16.xpose.msra.mxu0 0
    %2485 = vmatpush.bf16.xpose.msra.mxu0 0
    %2486 = vmatpush.bf16.xpose.msra.mxu0 0
    %2487 = vmatpush.bf16.xpose.msra.mxu0 0
    %2488 = vmatpush.bf16.xpose.msra.mxu0 0
    %2489 = vmatpush.bf16.xpose.msra.mxu0 %v2480
    %2490 = vmatmul.bf16.gmra.mxu0 %v2477
    %v2491 = vpop.f32.mrf.mxu0
    %v2492 = vadd.f32 %v459, %v2491
    %v2493 = vpop.f32.mrf.mxu0
    %2494 = vdwg.mxu0
    %v2495 = vsel %vm751, %v2324, -inf
    %2496 = vmax.xlane.f32.xlu0 %v2495
    %v2497 = vpop.xlane.xlu0 %2496
    %v2498 = vsel %vm751, %v2348, -inf
    %2499 = vmax.xlane.f32.xlu0 %v2498
    %v2500 = vpop.xlane.xlu0 %2499
    %v2501 = vsel %vm751, %v2372, -inf
    %2502 = vmax.xlane.f32.xlu0 %v2501
    %v2503 = vpop.xlane.xlu0 %2502
    %v2504 = vsel %vm751, %v2396, -inf
    %2505 = vmax.xlane.f32.xlu0 %v2504
    %v2506 = vpop.xlane.xlu0 %2505
    %v2507 = vsel %vm751, %v2420, -inf
    %2508 = vmax.xlane.f32.xlu0 %v2507
    %v2509 = vpop.xlane.xlu0 %2508
    %v2510 = vsel %vm751, %v2444, -inf
    %2511 = vmax.xlane.f32.xlu0 %v2510
    %v2512 = vpop.xlane.xlu0 %2511
    %v2513 = vsel %vm751, %v2468, -inf
    %2514 = vmax.xlane.f32.xlu0 %v2513
    %v2515 = vpop.xlane.xlu0 %2514
    %v2516 = vsel %vm751, %v2492, -inf
    %2517 = vmax.xlane.f32.xlu0 %v2516
    %v2518 = vpop.xlane.xlu0 %2517
    %v2519 = vsub.f32 %v2324, %v2497
    %v2520 = vsub.f32 %v2348, %v2500
    %v2521 = vsub.f32 %v2372, %v2503
    %v2522 = vsub.f32 %v2396, %v2506
    %v2523 = vsub.f32 %v2420, %v2509
    %v2524 = vsub.f32 %v2444, %v2512
    %v2525 = vsub.f32 %v2468, %v2515
    %v2526 = vsub.f32 %v2492, %v2518
    %v2527 = vmul.f32 %v2519, 1.442695
    %v2528 = vpow.pop %v2527
    %v2529 = vmul.f32 %v2520, 1.442695
    %v2530 = vpow.pop %v2529
    %v2531 = vmul.f32 %v2521, 1.442695
    %v2532 = vpow.pop %v2531
    %v2533 = vmul.f32 %v2522, 1.442695
    %v2534 = vpow.pop %v2533
    %v2535 = vmul.f32 %v2523, 1.442695
    %v2536 = vpow.pop %v2535
    %v2537 = vmul.f32 %v2524, 1.442695
    %v2538 = vpow.pop %v2537
    %v2539 = vmul.f32 %v2525, 1.442695
    %v2540 = vpow.pop %v2539
    %v2541 = vmul.f32 %v2526, 1.442695
    %v2542 = vpow.pop %v2541
    %v2543 = vsel %vm751, %v2528, 0.0
    %2544 = vadd.xlane.f32.xlu0 %v2543
    %v2545 = vpop.xlane.xlu0 %2544
    %v2546 = vsel %vm751, %v2530, 0.0
    %2547 = vadd.xlane.f32.xlu0 %v2546
    %v2548 = vpop.xlane.xlu0 %2547
    %v2549 = vsel %vm751, %v2532, 0.0
    %2550 = vadd.xlane.f32.xlu0 %v2549
    %v2551 = vpop.xlane.xlu0 %2550
    %v2552 = vsel %vm751, %v2534, 0.0
    %2553 = vadd.xlane.f32.xlu0 %v2552
    %v2554 = vpop.xlane.xlu0 %2553
    %v2555 = vsel %vm751, %v2536, 0.0
    %2556 = vadd.xlane.f32.xlu0 %v2555
    %v2557 = vpop.xlane.xlu0 %2556
    %v2558 = vsel %vm751, %v2538, 0.0
    %2559 = vadd.xlane.f32.xlu0 %v2558
    %v2560 = vpop.xlane.xlu0 %2559
    %v2561 = vsel %vm751, %v2540, 0.0
    %2562 = vadd.xlane.f32.xlu0 %v2561
    %v2563 = vpop.xlane.xlu0 %2562
    %v2564 = vsel %vm751, %v2542, 0.0
    %2565 = vadd.xlane.f32.xlu0 %v2564
    %v2566 = vpop.xlane.xlu0 %2565
    %v2567 = vrcp.pop %v2545
    %v2568 = vrcp.pop %v2548
    %v2569 = vrcp.pop %v2551
    %v2570 = vrcp.pop %v2554
    %v2571 = vrcp.pop %v2557
    %v2572 = vrcp.pop %v2560
    %v2573 = vrcp.pop %v2563
    %v2574 = vrcp.pop %v2566
    %v2575 = vmul.f32 %v2528, %v2567
    %v2576 = vmul.f32 %v2530, %v2568
    %v2577 = vmul.f32 %v2532, %v2569
    %v2578 = vmul.f32 %v2534, %v2570
    %v2579 = vmul.f32 %v2536, %v2571
    %v2580 = vmul.f32 %v2538, %v2572
    %v2581 = vmul.f32 %v2540, %v2573
    %v2582 = vmul.f32 %v2542, %v2574
    %v2583 = vpack.c.bf16 %v2575, %v2575
    %v2584 = vpack.c.bf16 %v2576, %v2576
    %v2585 = vpack.c.bf16 %v2577, %v2577
    %v2586 = vpack.c.bf16 %v2578, %v2578
    %v2587 = vpack.c.bf16 %v2579, %v2579
    %v2588 = vpack.c.bf16 %v2580, %v2580
    %v2589 = vpack.c.bf16 %v2581, %v2581
    %v2590 = vpack.c.bf16 %v2582, %v2582
    %2591 = vrot.lane.b32.xlu0 %v2305, 64
    %v2592 = vpop.permute.xlu0 %2591
    %v2594 = vsel %vm751, %v2583, 0
    %v2597 = vsel %vm853, %v2592, 0
    %2599 = vmatpush.bf16.msra.mxu0 0
    %2600 = vmatpush.bf16.msra.mxu0 0
    %2601 = vmatpush.bf16.msra.mxu0 0
    %2602 = vmatpush.bf16.msra.mxu0 0
    %2603 = vmatpush.bf16.msra.mxu0 0
    %2604 = vmatpush.bf16.msra.mxu0 0
    %2605 = vmatpush.bf16.msra.mxu0 0
    %2606 = vmatpush.bf16.msra.mxu0 %v2597
    %2607 = vmatmul.bf16.gmra.mxu0 %v2594
    %v2608 = vpop.f32.mrf.mxu0
    %v2609 = vadd.f32 0.0, %v2608
    %v2610 = vpop.f32.mrf.mxu0
    %2611 = vdwg.mxu0
    %2612 = vrot.lane.b32.xlu0 %v2329, 64
    %v2613 = vpop.permute.xlu0 %2612
    %v2615 = vsel %vm751, %v2584, 0
    %v2618 = vsel %vm853, %v2613, 0
    %2620 = vmatpush.bf16.msra.mxu0 0
    %2621 = vmatpush.bf16.msra.mxu0 0
    %2622 = vmatpush.bf16.msra.mxu0 0
    %2623 = vmatpush.bf16.msra.mxu0 0
    %2624 = vmatpush.bf16.msra.mxu0 0
    %2625 = vmatpush.bf16.msra.mxu0 0
    %2626 = vmatpush.bf16.msra.mxu0 0
    %2627 = vmatpush.bf16.msra.mxu0 %v2618
    %2628 = vmatmul.bf16.gmra.mxu0 %v2615
    %v2629 = vpop.f32.mrf.mxu0
    %v2630 = vadd.f32 0.0, %v2629
    %v2631 = vpop.f32.mrf.mxu0
    %2632 = vdwg.mxu0
    %2633 = vrot.lane.b32.xlu0 %v2353, 64
    %v2634 = vpop.permute.xlu0 %2633
    %v2636 = vsel %vm751, %v2585, 0
    %v2639 = vsel %vm853, %v2634, 0
    %2641 = vmatpush.bf16.msra.mxu0 0
    %2642 = vmatpush.bf16.msra.mxu0 0
    %2643 = vmatpush.bf16.msra.mxu0 0
    %2644 = vmatpush.bf16.msra.mxu0 0
    %2645 = vmatpush.bf16.msra.mxu0 0
    %2646 = vmatpush.bf16.msra.mxu0 0
    %2647 = vmatpush.bf16.msra.mxu0 0
    %2648 = vmatpush.bf16.msra.mxu0 %v2639
    %2649 = vmatmul.bf16.gmra.mxu0 %v2636
    %v2650 = vpop.f32.mrf.mxu0
    %v2651 = vadd.f32 0.0, %v2650
    %v2652 = vpop.f32.mrf.mxu0
    %2653 = vdwg.mxu0
    %2654 = vrot.lane.b32.xlu0 %v2377, 64
    %v2655 = vpop.permute.xlu0 %2654
    %v2657 = vsel %vm751, %v2586, 0
    %v2660 = vsel %vm853, %v2655, 0
    %2662 = vmatpush.bf16.msra.mxu0 0
    %2663 = vmatpush.bf16.msra.mxu0 0
    %2664 = vmatpush.bf16.msra.mxu0 0
    %2665 = vmatpush.bf16.msra.mxu0 0
    %2666 = vmatpush.bf16.msra.mxu0 0
    %2667 = vmatpush.bf16.msra.mxu0 0
    %2668 = vmatpush.bf16.msra.mxu0 0
    %2669 = vmatpush.bf16.msra.mxu0 %v2660
    %2670 = vmatmul.bf16.gmra.mxu0 %v2657
    %v2671 = vpop.f32.mrf.mxu0
    %v2672 = vadd.f32 0.0, %v2671
    %v2673 = vpop.f32.mrf.mxu0
    %2674 = vdwg.mxu0
    %2675 = vrot.lane.b32.xlu0 %v2401, 64
    %v2676 = vpop.permute.xlu0 %2675
    %v2678 = vsel %vm751, %v2587, 0
    %v2681 = vsel %vm853, %v2676, 0
    %2683 = vmatpush.bf16.msra.mxu0 0
    %2684 = vmatpush.bf16.msra.mxu0 0
    %2685 = vmatpush.bf16.msra.mxu0 0
    %2686 = vmatpush.bf16.msra.mxu0 0
    %2687 = vmatpush.bf16.msra.mxu0 0
    %2688 = vmatpush.bf16.msra.mxu0 0
    %2689 = vmatpush.bf16.msra.mxu0 0
    %2690 = vmatpush.bf16.msra.mxu0 %v2681
    %2691 = vmatmul.bf16.gmra.mxu0 %v2678
    %v2692 = vpop.f32.mrf.mxu0
    %v2693 = vadd.f32 0.0, %v2692
    %v2694 = vpop.f32.mrf.mxu0
    %2695 = vdwg.mxu0
    %2696 = vrot.lane.b32.xlu0 %v2425, 64
    %v2697 = vpop.permute.xlu0 %2696
    %v2699 = vsel %vm751, %v2588, 0
    %v2702 = vsel %vm853, %v2697, 0
    %2704 = vmatpush.bf16.msra.mxu0 0
    %2705 = vmatpush.bf16.msra.mxu0 0
    %2706 = vmatpush.bf16.msra.mxu0 0
    %2707 = vmatpush.bf16.msra.mxu0 0
    %2708 = vmatpush.bf16.msra.mxu0 0
    %2709 = vmatpush.bf16.msra.mxu0 0
    %2710 = vmatpush.bf16.msra.mxu0 0
    %2711 = vmatpush.bf16.msra.mxu0 %v2702
    %2712 = vmatmul.bf16.gmra.mxu0 %v2699
    %v2713 = vpop.f32.mrf.mxu0
    %v2714 = vadd.f32 0.0, %v2713
    %v2715 = vpop.f32.mrf.mxu0
    %2716 = vdwg.mxu0
    %2717 = vrot.lane.b32.xlu0 %v2449, 64
    %v2718 = vpop.permute.xlu0 %2717
    %v2720 = vsel %vm751, %v2589, 0
    %v2723 = vsel %vm853, %v2718, 0
    %2725 = vmatpush.bf16.msra.mxu0 0
    %2726 = vmatpush.bf16.msra.mxu0 0
    %2727 = vmatpush.bf16.msra.mxu0 0
    %2728 = vmatpush.bf16.msra.mxu0 0
    %2729 = vmatpush.bf16.msra.mxu0 0
    %2730 = vmatpush.bf16.msra.mxu0 0
    %2731 = vmatpush.bf16.msra.mxu0 0
    %2732 = vmatpush.bf16.msra.mxu0 %v2723
    %2733 = vmatmul.bf16.gmra.mxu0 %v2720
    %v2734 = vpop.f32.mrf.mxu0
    %v2735 = vadd.f32 0.0, %v2734
    %v2736 = vpop.f32.mrf.mxu0
    %2737 = vdwg.mxu0
    %2738 = vrot.lane.b32.xlu0 %v2473, 64
    %v2739 = vpop.permute.xlu0 %2738
    %v2741 = vsel %vm751, %v2590, 0
    %v2744 = vsel %vm853, %v2739, 0
    %2746 = vmatpush.bf16.msra.mxu0 0
    %2747 = vmatpush.bf16.msra.mxu0 0
    %2748 = vmatpush.bf16.msra.mxu0 0
    %2749 = vmatpush.bf16.msra.mxu0 0
    %2750 = vmatpush.bf16.msra.mxu0 0
    %2751 = vmatpush.bf16.msra.mxu0 0
    %2752 = vmatpush.bf16.msra.mxu0 0
    %2753 = vmatpush.bf16.msra.mxu0 %v2744
    %2754 = vmatmul.bf16.gmra.mxu0 %v2741
    %v2755 = vpop.f32.mrf.mxu0
    %v2756 = vadd.f32 0.0, %v2755
    %v2757 = vpop.f32.mrf.mxu0
    %2758 = vdwg.mxu0
    %v2760 = vunpack.c.l.b16 %v2287
    %v2761 = vpack.c.b16 %v2760, %v2760
    %2762 = vrot.lane.b32.xlu0 %v2761, 112
    %v2763 = vpop.permute.xlu0 %2762
    %2764 = vrot.lane.b32.xlu0 %v2305, 80
    %v2765 = vpop.permute.xlu0 %2764
    %v2767 = vsel %vm563, %v2763, 0
    %v2770 = vsel %vm563, %v2765, 0
    %2772 = vmatpush.bf16.xpose.msra.mxu0 0
    %2773 = vmatpush.bf16.xpose.msra.mxu0 0
    %2774 = vmatpush.bf16.xpose.msra.mxu0 0
    %2775 = vmatpush.bf16.xpose.msra.mxu0 0
    %2776 = vmatpush.bf16.xpose.msra.mxu0 0
    %2777 = vmatpush.bf16.xpose.msra.mxu0 0
    %2778 = vmatpush.bf16.xpose.msra.mxu0 0
    %2779 = vmatpush.bf16.xpose.msra.mxu0 %v2770
    %2780 = vmatmul.bf16.gmra.mxu0 %v2767
    %v2781 = vpop.f32.mrf.mxu0
    %v2782 = vadd.f32 %v452, %v2781
    %v2783 = vpop.f32.mrf.mxu0
    %2784 = vdwg.mxu0
    %v2786 = vunpack.c.l.b16 %v2288
    %v2787 = vpack.c.b16 %v2786, %v2786
    %2788 = vrot.lane.b32.xlu0 %v2787, 112
    %v2789 = vpop.permute.xlu0 %2788
    %2790 = vrot.lane.b32.xlu0 %v2329, 80
    %v2791 = vpop.permute.xlu0 %2790
    %v2793 = vsel %vm563, %v2789, 0
    %v2796 = vsel %vm563, %v2791, 0
    %2798 = vmatpush.bf16.xpose.msra.mxu0 0
    %2799 = vmatpush.bf16.xpose.msra.mxu0 0
    %2800 = vmatpush.bf16.xpose.msra.mxu0 0
    %2801 = vmatpush.bf16.xpose.msra.mxu0 0
    %2802 = vmatpush.bf16.xpose.msra.mxu0 0
    %2803 = vmatpush.bf16.xpose.msra.mxu0 0
    %2804 = vmatpush.bf16.xpose.msra.mxu0 0
    %2805 = vmatpush.bf16.xpose.msra.mxu0 %v2796
    %2806 = vmatmul.bf16.gmra.mxu0 %v2793
    %v2807 = vpop.f32.mrf.mxu0
    %v2808 = vadd.f32 %v453, %v2807
    %v2809 = vpop.f32.mrf.mxu0
    %2810 = vdwg.mxu0
    %v2812 = vunpack.c.l.b16 %v2289
    %v2813 = vpack.c.b16 %v2812, %v2812
    %2814 = vrot.lane.b32.xlu0 %v2813, 112
    %v2815 = vpop.permute.xlu0 %2814
    %2816 = vrot.lane.b32.xlu0 %v2353, 80
    %v2817 = vpop.permute.xlu0 %2816
    %v2819 = vsel %vm563, %v2815, 0
    %v2822 = vsel %vm563, %v2817, 0
    %2824 = vmatpush.bf16.xpose.msra.mxu0 0
    %2825 = vmatpush.bf16.xpose.msra.mxu0 0
    %2826 = vmatpush.bf16.xpose.msra.mxu0 0
    %2827 = vmatpush.bf16.xpose.msra.mxu0 0
    %2828 = vmatpush.bf16.xpose.msra.mxu0 0
    %2829 = vmatpush.bf16.xpose.msra.mxu0 0
    %2830 = vmatpush.bf16.xpose.msra.mxu0 0
    %2831 = vmatpush.bf16.xpose.msra.mxu0 %v2822
    %2832 = vmatmul.bf16.gmra.mxu0 %v2819
    %v2833 = vpop.f32.mrf.mxu0
    %v2834 = vadd.f32 %v454, %v2833
    %v2835 = vpop.f32.mrf.mxu0
    %2836 = vdwg.mxu0
    %v2838 = vunpack.c.l.b16 %v2290
    %v2839 = vpack.c.b16 %v2838, %v2838
    %2840 = vrot.lane.b32.xlu0 %v2839, 112
    %v2841 = vpop.permute.xlu0 %2840
    %2842 = vrot.lane.b32.xlu0 %v2377, 80
    %v2843 = vpop.permute.xlu0 %2842
    %v2845 = vsel %vm563, %v2841, 0
    %v2848 = vsel %vm563, %v2843, 0
    %2850 = vmatpush.bf16.xpose.msra.mxu0 0
    %2851 = vmatpush.bf16.xpose.msra.mxu0 0
    %2852 = vmatpush.bf16.xpose.msra.mxu0 0
    %2853 = vmatpush.bf16.xpose.msra.mxu0 0
    %2854 = vmatpush.bf16.xpose.msra.mxu0 0
    %2855 = vmatpush.bf16.xpose.msra.mxu0 0
    %2856 = vmatpush.bf16.xpose.msra.mxu0 0
    %2857 = vmatpush.bf16.xpose.msra.mxu0 %v2848
    %2858 = vmatmul.bf16.gmra.mxu0 %v2845
    %v2859 = vpop.f32.mrf.mxu0
    %v2860 = vadd.f32 %v455, %v2859
    %v2861 = vpop.f32.mrf.mxu0
    %2862 = vdwg.mxu0
    %v2864 = vunpack.c.l.b16 %v2291
    %v2865 = vpack.c.b16 %v2864, %v2864
    %2866 = vrot.lane.b32.xlu0 %v2865, 112
    %v2867 = vpop.permute.xlu0 %2866
    %2868 = vrot.lane.b32.xlu0 %v2401, 80
    %v2869 = vpop.permute.xlu0 %2868
    %v2871 = vsel %vm563, %v2867, 0
    %v2874 = vsel %vm563, %v2869, 0
    %2876 = vmatpush.bf16.xpose.msra.mxu0 0
    %2877 = vmatpush.bf16.xpose.msra.mxu0 0
    %2878 = vmatpush.bf16.xpose.msra.mxu0 0
    %2879 = vmatpush.bf16.xpose.msra.mxu0 0
    %2880 = vmatpush.bf16.xpose.msra.mxu0 0
    %2881 = vmatpush.bf16.xpose.msra.mxu0 0
    %2882 = vmatpush.bf16.xpose.msra.mxu0 0
    %2883 = vmatpush.bf16.xpose.msra.mxu0 %v2874
    %2884 = vmatmul.bf16.gmra.mxu0 %v2871
    %v2885 = vpop.f32.mrf.mxu0
    %v2886 = vadd.f32 %v456, %v2885
    %v2887 = vpop.f32.mrf.mxu0
    %2888 = vdwg.mxu0
    %v2890 = vunpack.c.l.b16 %v2292
    %v2891 = vpack.c.b16 %v2890, %v2890
    %2892 = vrot.lane.b32.xlu0 %v2891, 112
    %v2893 = vpop.permute.xlu0 %2892
    %2894 = vrot.lane.b32.xlu0 %v2425, 80
    %v2895 = vpop.permute.xlu0 %2894
    %v2897 = vsel %vm563, %v2893, 0
    %v2900 = vsel %vm563, %v2895, 0
    %2902 = vmatpush.bf16.xpose.msra.mxu0 0
    %2903 = vmatpush.bf16.xpose.msra.mxu0 0
    %2904 = vmatpush.bf16.xpose.msra.mxu0 0
    %2905 = vmatpush.bf16.xpose.msra.mxu0 0
    %2906 = vmatpush.bf16.xpose.msra.mxu0 0
    %2907 = vmatpush.bf16.xpose.msra.mxu0 0
    %2908 = vmatpush.bf16.xpose.msra.mxu0 0
    %2909 = vmatpush.bf16.xpose.msra.mxu0 %v2900
    %2910 = vmatmul.bf16.gmra.mxu0 %v2897
    %v2911 = vpop.f32.mrf.mxu0
    %v2912 = vadd.f32 %v457, %v2911
    %v2913 = vpop.f32.mrf.mxu0
    %2914 = vdwg.mxu0
    %v2916 = vunpack.c.l.b16 %v2293
    %v2917 = vpack.c.b16 %v2916, %v2916
    %2918 = vrot.lane.b32.xlu0 %v2917, 112
    %v2919 = vpop.permute.xlu0 %2918
    %2920 = vrot.lane.b32.xlu0 %v2449, 80
    %v2921 = vpop.permute.xlu0 %2920
    %v2923 = vsel %vm563, %v2919, 0
    %v2926 = vsel %vm563, %v2921, 0
    %2928 = vmatpush.bf16.xpose.msra.mxu0 0
    %2929 = vmatpush.bf16.xpose.msra.mxu0 0
    %2930 = vmatpush.bf16.xpose.msra.mxu0 0
    %2931 = vmatpush.bf16.xpose.msra.mxu0 0
    %2932 = vmatpush.bf16.xpose.msra.mxu0 0
    %2933 = vmatpush.bf16.xpose.msra.mxu0 0
    %2934 = vmatpush.bf16.xpose.msra.mxu0 0
    %2935 = vmatpush.bf16.xpose.msra.mxu0 %v2926
    %2936 = vmatmul.bf16.gmra.mxu0 %v2923
    %v2937 = vpop.f32.mrf.mxu0
    %v2938 = vadd.f32 %v458, %v2937
    %v2939 = vpop.f32.mrf.mxu0
    %2940 = vdwg.mxu0
    %v2942 = vunpack.c.l.b16 %v2294
    %v2943 = vpack.c.b16 %v2942, %v2942
    %2944 = vrot.lane.b32.xlu0 %v2943, 112
    %v2945 = vpop.permute.xlu0 %2944
    %2946 = vrot.lane.b32.xlu0 %v2473, 80
    %v2947 = vpop.permute.xlu0 %2946
    %v2949 = vsel %vm563, %v2945, 0
    %v2952 = vsel %vm563, %v2947, 0
    %2954 = vmatpush.bf16.xpose.msra.mxu0 0
    %2955 = vmatpush.bf16.xpose.msra.mxu0 0
    %2956 = vmatpush.bf16.xpose.msra.mxu0 0
    %2957 = vmatpush.bf16.xpose.msra.mxu0 0
    %2958 = vmatpush.bf16.xpose.msra.mxu0 0
    %2959 = vmatpush.bf16.xpose.msra.mxu0 0
    %2960 = vmatpush.bf16.xpose.msra.mxu0 0
    %2961 = vmatpush.bf16.xpose.msra.mxu0 %v2952
    %2962 = vmatmul.bf16.gmra.mxu0 %v2949
    %v2963 = vpop.f32.mrf.mxu0
    %v2964 = vadd.f32 %v459, %v2963
    %v2965 = vpop.f32.mrf.mxu0
    %2966 = vdwg.mxu0
    %v2967 = vsel %vm751, %v2782, -inf
    %2968 = vmax.xlane.f32.xlu0 %v2967
    %v2969 = vpop.xlane.xlu0 %2968
    %v2970 = vsel %vm751, %v2808, -inf
    %2971 = vmax.xlane.f32.xlu0 %v2970
    %v2972 = vpop.xlane.xlu0 %2971
    %v2973 = vsel %vm751, %v2834, -inf
    %2974 = vmax.xlane.f32.xlu0 %v2973
    %v2975 = vpop.xlane.xlu0 %2974
    %v2976 = vsel %vm751, %v2860, -inf
    %2977 = vmax.xlane.f32.xlu0 %v2976
    %v2978 = vpop.xlane.xlu0 %2977
    %v2979 = vsel %vm751, %v2886, -inf
    %2980 = vmax.xlane.f32.xlu0 %v2979
    %v2981 = vpop.xlane.xlu0 %2980
    %v2982 = vsel %vm751, %v2912, -inf
    %2983 = vmax.xlane.f32.xlu0 %v2982
    %v2984 = vpop.xlane.xlu0 %2983
    %v2985 = vsel %vm751, %v2938, -inf
    %2986 = vmax.xlane.f32.xlu0 %v2985
    %v2987 = vpop.xlane.xlu0 %2986
    %v2988 = vsel %vm751, %v2964, -inf
    %2989 = vmax.xlane.f32.xlu0 %v2988
    %v2990 = vpop.xlane.xlu0 %2989
    %v2991 = vsub.f32 %v2782, %v2969
    %v2992 = vsub.f32 %v2808, %v2972
    %v2993 = vsub.f32 %v2834, %v2975
    %v2994 = vsub.f32 %v2860, %v2978
    %v2995 = vsub.f32 %v2886, %v2981
    %v2996 = vsub.f32 %v2912, %v2984
    %v2997 = vsub.f32 %v2938, %v2987
    %v2998 = vsub.f32 %v2964, %v2990
    %v2999 = vmul.f32 %v2991, 1.442695
    %v3000 = vpow.pop %v2999
    %v3001 = vmul.f32 %v2992, 1.442695
    %v3002 = vpow.pop %v3001
    %v3003 = vmul.f32 %v2993, 1.442695
    %v3004 = vpow.pop %v3003
    %v3005 = vmul.f32 %v2994, 1.442695
    %v3006 = vpow.pop %v3005
    %v3007 = vmul.f32 %v2995, 1.442695
    %v3008 = vpow.pop %v3007
    %v3009 = vmul.f32 %v2996, 1.442695
    %v3010 = vpow.pop %v3009
    %v3011 = vmul.f32 %v2997, 1.442695
    %v3012 = vpow.pop %v3011
    %v3013 = vmul.f32 %v2998, 1.442695
    %v3014 = vpow.pop %v3013
    %v3015 = vsel %vm751, %v3000, 0.0
    %3016 = vadd.xlane.f32.xlu0 %v3015
    %v3017 = vpop.xlane.xlu0 %3016
    %v3018 = vsel %vm751, %v3002, 0.0
    %3019 = vadd.xlane.f32.xlu0 %v3018
    %v3020 = vpop.xlane.xlu0 %3019
    %v3021 = vsel %vm751, %v3004, 0.0
    %3022 = vadd.xlane.f32.xlu0 %v3021
    %v3023 = vpop.xlane.xlu0 %3022
    %v3024 = vsel %vm751, %v3006, 0.0
    %3025 = vadd.xlane.f32.xlu0 %v3024
    %v3026 = vpop.xlane.xlu0 %3025
    %v3027 = vsel %vm751, %v3008, 0.0
    %3028 = vadd.xlane.f32.xlu0 %v3027
    %v3029 = vpop.xlane.xlu0 %3028
    %v3030 = vsel %vm751, %v3010, 0.0
    %3031 = vadd.xlane.f32.xlu0 %v3030
    %v3032 = vpop.xlane.xlu0 %3031
    %v3033 = vsel %vm751, %v3012, 0.0
    %3034 = vadd.xlane.f32.xlu0 %v3033
    %v3035 = vpop.xlane.xlu0 %3034
    %v3036 = vsel %vm751, %v3014, 0.0
    %3037 = vadd.xlane.f32.xlu0 %v3036
    %v3038 = vpop.xlane.xlu0 %3037
    %v3039 = vrcp.pop %v3017
    %v3040 = vrcp.pop %v3020
    %v3041 = vrcp.pop %v3023
    %v3042 = vrcp.pop %v3026
    %v3043 = vrcp.pop %v3029
    %v3044 = vrcp.pop %v3032
    %v3045 = vrcp.pop %v3035
    %v3046 = vrcp.pop %v3038
    %v3047 = vmul.f32 %v3000, %v3039
    %v3048 = vmul.f32 %v3002, %v3040
    %v3049 = vmul.f32 %v3004, %v3041
    %v3050 = vmul.f32 %v3006, %v3042
    %v3051 = vmul.f32 %v3008, %v3043
    %v3052 = vmul.f32 %v3010, %v3044
    %v3053 = vmul.f32 %v3012, %v3045
    %v3054 = vmul.f32 %v3014, %v3046
    %v3055 = vpack.c.bf16 %v3047, %v3047
    %v3056 = vpack.c.bf16 %v3048, %v3048
    %v3057 = vpack.c.bf16 %v3049, %v3049
    %v3058 = vpack.c.bf16 %v3050, %v3050
    %v3059 = vpack.c.bf16 %v3051, %v3051
    %v3060 = vpack.c.bf16 %v3052, %v3052
    %v3061 = vpack.c.bf16 %v3053, %v3053
    %v3062 = vpack.c.bf16 %v3054, %v3054
    %3063 = vrot.lane.b32.xlu0 %v2305, 48
    %v3064 = vpop.permute.xlu0 %3063
    %v3066 = vsel %vm751, %v3055, 0
    %v3069 = vsel %vm853, %v3064, 0
    %3071 = vmatpush.bf16.msra.mxu0 0
    %3072 = vmatpush.bf16.msra.mxu0 0
    %3073 = vmatpush.bf16.msra.mxu0 0
    %3074 = vmatpush.bf16.msra.mxu0 0
    %3075 = vmatpush.bf16.msra.mxu0 0
    %3076 = vmatpush.bf16.msra.mxu0 0
    %3077 = vmatpush.bf16.msra.mxu0 0
    %3078 = vmatpush.bf16.msra.mxu0 %v3069
    %3079 = vmatmul.bf16.gmra.mxu0 %v3066
    %v3080 = vpop.f32.mrf.mxu0
    %v3081 = vadd.f32 0.0, %v3080
    %v3082 = vpop.f32.mrf.mxu0
    %3083 = vdwg.mxu0
    %3084 = vrot.lane.b32.xlu0 %v2329, 48
    %v3085 = vpop.permute.xlu0 %3084
    %v3087 = vsel %vm751, %v3056, 0
    %v3090 = vsel %vm853, %v3085, 0
    %3092 = vmatpush.bf16.msra.mxu0 0
    %3093 = vmatpush.bf16.msra.mxu0 0
    %3094 = vmatpush.bf16.msra.mxu0 0
    %3095 = vmatpush.bf16.msra.mxu0 0
    %3096 = vmatpush.bf16.msra.mxu0 0
    %3097 = vmatpush.bf16.msra.mxu0 0
    %3098 = vmatpush.bf16.msra.mxu0 0
    %3099 = vmatpush.bf16.msra.mxu0 %v3090
    %3100 = vmatmul.bf16.gmra.mxu0 %v3087
    %v3101 = vpop.f32.mrf.mxu0
    %v3102 = vadd.f32 0.0, %v3101
    %v3103 = vpop.f32.mrf.mxu0
    %3104 = vdwg.mxu0
    %3105 = vrot.lane.b32.xlu0 %v2353, 48
    %v3106 = vpop.permute.xlu0 %3105
    %v3108 = vsel %vm751, %v3057, 0
    %v3111 = vsel %vm853, %v3106, 0
    %3113 = vmatpush.bf16.msra.mxu0 0
    %3114 = vmatpush.bf16.msra.mxu0 0
    %3115 = vmatpush.bf16.msra.mxu0 0
    %3116 = vmatpush.bf16.msra.mxu0 0
    %3117 = vmatpush.bf16.msra.mxu0 0
    %3118 = vmatpush.bf16.msra.mxu0 0
    %3119 = vmatpush.bf16.msra.mxu0 0
    %3120 = vmatpush.bf16.msra.mxu0 %v3111
    %3121 = vmatmul.bf16.gmra.mxu0 %v3108
    %v3122 = vpop.f32.mrf.mxu0
    %v3123 = vadd.f32 0.0, %v3122
    %v3124 = vpop.f32.mrf.mxu0
    %3125 = vdwg.mxu0
    %3126 = vrot.lane.b32.xlu0 %v2377, 48
    %v3127 = vpop.permute.xlu0 %3126
    %v3129 = vsel %vm751, %v3058, 0
    %v3132 = vsel %vm853, %v3127, 0
    %3134 = vmatpush.bf16.msra.mxu0 0
    %3135 = vmatpush.bf16.msra.mxu0 0
    %3136 = vmatpush.bf16.msra.mxu0 0
    %3137 = vmatpush.bf16.msra.mxu0 0
    %3138 = vmatpush.bf16.msra.mxu0 0
    %3139 = vmatpush.bf16.msra.mxu0 0
    %3140 = vmatpush.bf16.msra.mxu0 0
    %3141 = vmatpush.bf16.msra.mxu0 %v3132
    %3142 = vmatmul.bf16.gmra.mxu0 %v3129
    %v3143 = vpop.f32.mrf.mxu0
    %v3144 = vadd.f32 0.0, %v3143
    %v3145 = vpop.f32.mrf.mxu0
    %3146 = vdwg.mxu0
    %3147 = vrot.lane.b32.xlu0 %v2401, 48
    %v3148 = vpop.permute.xlu0 %3147
    %v3150 = vsel %vm751, %v3059, 0
    %v3153 = vsel %vm853, %v3148, 0
    %3155 = vmatpush.bf16.msra.mxu0 0
    %3156 = vmatpush.bf16.msra.mxu0 0
    %3157 = vmatpush.bf16.msra.mxu0 0
    %3158 = vmatpush.bf16.msra.mxu0 0
    %3159 = vmatpush.bf16.msra.mxu0 0
    %3160 = vmatpush.bf16.msra.mxu0 0
    %3161 = vmatpush.bf16.msra.mxu0 0
    %3162 = vmatpush.bf16.msra.mxu0 %v3153
    %3163 = vmatmul.bf16.gmra.mxu0 %v3150
    %v3164 = vpop.f32.mrf.mxu0
    %v3165 = vadd.f32 0.0, %v3164
    %v3166 = vpop.f32.mrf.mxu0
    %3167 = vdwg.mxu0
    %3168 = vrot.lane.b32.xlu0 %v2425, 48
    %v3169 = vpop.permute.xlu0 %3168
    %v3171 = vsel %vm751, %v3060, 0
    %v3174 = vsel %vm853, %v3169, 0
    %3176 = vmatpush.bf16.msra.mxu0 0
    %3177 = vmatpush.bf16.msra.mxu0 0
    %3178 = vmatpush.bf16.msra.mxu0 0
    %3179 = vmatpush.bf16.msra.mxu0 0
    %3180 = vmatpush.bf16.msra.mxu0 0
    %3181 = vmatpush.bf16.msra.mxu0 0
    %3182 = vmatpush.bf16.msra.mxu0 0
    %3183 = vmatpush.bf16.msra.mxu0 %v3174
    %3184 = vmatmul.bf16.gmra.mxu0 %v3171
    %v3185 = vpop.f32.mrf.mxu0
    %v3186 = vadd.f32 0.0, %v3185
    %v3187 = vpop.f32.mrf.mxu0
    %3188 = vdwg.mxu0
    %3189 = vrot.lane.b32.xlu0 %v2449, 48
    %v3190 = vpop.permute.xlu0 %3189
    %v3192 = vsel %vm751, %v3061, 0
    %v3195 = vsel %vm853, %v3190, 0
    %3197 = vmatpush.bf16.msra.mxu0 0
    %3198 = vmatpush.bf16.msra.mxu0 0
    %3199 = vmatpush.bf16.msra.mxu0 0
    %3200 = vmatpush.bf16.msra.mxu0 0
    %3201 = vmatpush.bf16.msra.mxu0 0
    %3202 = vmatpush.bf16.msra.mxu0 0
    %3203 = vmatpush.bf16.msra.mxu0 0
    %3204 = vmatpush.bf16.msra.mxu0 %v3195
    %3205 = vmatmul.bf16.gmra.mxu0 %v3192
    %v3206 = vpop.f32.mrf.mxu0
    %v3207 = vadd.f32 0.0, %v3206
    %v3208 = vpop.f32.mrf.mxu0
    %3209 = vdwg.mxu0
    %3210 = vrot.lane.b32.xlu0 %v2473, 48
    %v3211 = vpop.permute.xlu0 %3210
    %v3213 = vsel %vm751, %v3062, 0
    %v3216 = vsel %vm853, %v3211, 0
    %3218 = vmatpush.bf16.msra.mxu0 0
    %3219 = vmatpush.bf16.msra.mxu0 0
    %3220 = vmatpush.bf16.msra.mxu0 0
    %3221 = vmatpush.bf16.msra.mxu0 0
    %3222 = vmatpush.bf16.msra.mxu0 0
    %3223 = vmatpush.bf16.msra.mxu0 0
    %3224 = vmatpush.bf16.msra.mxu0 0
    %3225 = vmatpush.bf16.msra.mxu0 %v3216
    %3226 = vmatmul.bf16.gmra.mxu0 %v3213
    %v3227 = vpop.f32.mrf.mxu0
    %v3228 = vadd.f32 0.0, %v3227
    %v3229 = vpop.f32.mrf.mxu0
    %3230 = vdwg.mxu0
    %3239 = vrot.lane.b32.xlu0 %v3081, 16
    %v3240 = vpop.permute.xlu0 %3239
    %3241 = vrot.lane.b32.xlu0 %v3102, 16
    %v3242 = vpop.permute.xlu0 %3241
    %3243 = vrot.lane.b32.xlu0 %v3123, 16
    %v3244 = vpop.permute.xlu0 %3243
    %3245 = vrot.lane.b32.xlu0 %v3144, 16
    %v3246 = vpop.permute.xlu0 %3245
    %3247 = vrot.lane.b32.xlu0 %v3165, 16
    %v3248 = vpop.permute.xlu0 %3247
    %3249 = vrot.lane.b32.xlu0 %v3186, 16
    %v3250 = vpop.permute.xlu0 %3249
    %3251 = vrot.lane.b32.xlu0 %v3207, 16
    %v3252 = vpop.permute.xlu0 %3251
    %3253 = vrot.lane.b32.xlu0 %v3228, 16
    %v3254 = vpop.permute.xlu0 %3253
    %v3263 = vsel %vm563, %v2609, %v3240
    %v3264 = vsel %vm563, %v2630, %v3242
    %v3265 = vsel %vm563, %v2651, %v3244
    %v3266 = vsel %vm563, %v2672, %v3246
    %v3267 = vsel %vm563, %v2693, %v3248
    %v3268 = vsel %vm563, %v2714, %v3250
    %v3269 = vsel %vm563, %v2735, %v3252
    %v3270 = vsel %vm563, %v2756, %v3254
    %v3271 = vpack.c.bf16 %v3264, %v3263
    %v3272 = vpack.c.bf16 %v3266, %v3265
    %v3273 = vpack.c.bf16 %v3268, %v3267
    %v3274 = vpack.c.bf16 %v3270, %v3269
    %s3275 = scalar_lea.vmem [#allocation5], 16
    %v3276 = vld [vmem:[%s3275] sm:$0xf]
    %v3277 = vld [vmem:[%s3275 + $0x4] sm:$0xf]
    %v3278 = vld [vmem:[%s3275 + $0x8] sm:$0xf]
    %v3279 = vld [vmem:[%s3275 + $0xc] sm:$0xf]
    %v3280 = vperm.slane %v2211, 0
    %v3285 = vunpack.c.l.b16 %v3276
    %v3286 = vunpack.c.l.b16 %v3277
    %v3287 = vunpack.c.l.b16 %v3278
    %v3288 = vunpack.c.l.b16 %v3279
    %v3289 = vpack.c.b16 %v3286, %v3285
    %v3290 = vpack.c.b16 %v3288, %v3287
    %v3294 = vsel %vm239, %v3271, 0
    %v3297 = vsel %vm239, %v3272, 0
    %v3300 = vsel %vm239, %v3273, 0
    %v3303 = vsel %vm239, %v3274, 0
    %3305 = vmatpush.bf16.msra.mxu0 0
    %3306 = vmatpush.bf16.msra.mxu0 0
    %3307 = vmatpush.bf16.msra.mxu0 0
    %3308 = vmatpush.bf16.msra.mxu0 0
    %3309 = vmatpush.bf16.msra.mxu0 0
    %3310 = vmatpush.bf16.msra.mxu0 0
    %3311 = vmatpush.bf16.msra.mxu0 %v3290
    %3312 = vmatpush.bf16.msra.mxu0 %v3289
    %3313 = vmatmul.bf16.gmra.mxu0 %v3294
    %v3314 = vpop.f32.mrf.mxu0
    %v3315 = vadd.f32 %v3280, %v3314
    %v3316 = vpop.f32.mrf.mxu0
    %v3317 = vadd.f32 %v3280, %v3316
    %3318 = vmatmul.bf16.gmra.mxu0 %v3297
    %v3319 = vpop.f32.mrf.mxu0
    %v3320 = vadd.f32 %v3280, %v3319
    %v3321 = vpop.f32.mrf.mxu0
    %v3322 = vadd.f32 %v3280, %v3321
    %3323 = vmatmul.bf16.gmra.mxu0 %v3300
    %v3324 = vpop.f32.mrf.mxu0
    %v3325 = vadd.f32 %v3280, %v3324
    %v3326 = vpop.f32.mrf.mxu0
    %v3327 = vadd.f32 %v3280, %v3326
    %3328 = vmatmul.bf16.gmra.mxu0 %v3303
    %v3329 = vpop.f32.mrf.mxu0
    %v3330 = vadd.f32 %v3280, %v3329
    %v3331 = vpop.f32.mrf.mxu0
    %v3332 = vadd.f32 %v3280, %v3331
    %3333 = vdwg.mxu0
    %v3334 = vadd.f32 %v2202, %v3315
    %v3335 = vadd.f32 %v2203, %v3317
    %v3336 = vadd.f32 %v2204, %v3320
    %v3337 = vadd.f32 %v2205, %v3322
    %v3338 = vadd.f32 %v2206, %v3325
    %v3339 = vadd.f32 %v2207, %v3327
    %v3340 = vadd.f32 %v2208, %v3330
    %v3341 = vadd.f32 %v2209, %v3332
    %v3342 = vsel %vm239, %v3334, 0.0
    %3343 = vadd.xlane.f32.xlu0 %v3342
    %v3344 = vpop.xlane.xlu0 %3343
    %v3345 = vsel %vm239, %v3335, 0.0
    %3346 = vadd.xlane.f32.xlu0 %v3345
    %v3347 = vpop.xlane.xlu0 %3346
    %v3348 = vsel %vm239, %v3336, 0.0
    %3349 = vadd.xlane.f32.xlu0 %v3348
    %v3350 = vpop.xlane.xlu0 %3349
    %v3351 = vsel %vm239, %v3337, 0.0
    %3352 = vadd.xlane.f32.xlu0 %v3351
    %v3353 = vpop.xlane.xlu0 %3352
    %v3354 = vsel %vm239, %v3338, 0.0
    %3355 = vadd.xlane.f32.xlu0 %v3354
    %v3356 = vpop.xlane.xlu0 %3355
    %v3357 = vsel %vm239, %v3339, 0.0
    %3358 = vadd.xlane.f32.xlu0 %v3357
    %v3359 = vpop.xlane.xlu0 %3358
    %v3360 = vsel %vm239, %v3340, 0.0
    %3361 = vadd.xlane.f32.xlu0 %v3360
    %v3362 = vpop.xlane.xlu0 %3361
    %v3363 = vsel %vm239, %v3341, 0.0
    %3364 = vadd.xlane.f32.xlu0 %v3363
    %v3365 = vpop.xlane.xlu0 %3364
    %v3366 = vmul.f32 %v3344, %v270
    %v3367 = vmul.f32 %v3347, %v270
    %v3368 = vmul.f32 %v3350, %v270
    %v3369 = vmul.f32 %v3353, %v270
    %v3370 = vmul.f32 %v3356, %v270
    %v3371 = vmul.f32 %v3359, %v270
    %v3372 = vmul.f32 %v3362, %v270
    %v3373 = vmul.f32 %v3365, %v270
    %v3374 = vsub.f32 %v3334, %v3366
    %v3375 = vsub.f32 %v3335, %v3367
    %v3376 = vsub.f32 %v3336, %v3368
    %v3377 = vsub.f32 %v3337, %v3369
    %v3378 = vsub.f32 %v3338, %v3370
    %v3379 = vsub.f32 %v3339, %v3371
    %v3380 = vsub.f32 %v3340, %v3372
    %v3381 = vsub.f32 %v3341, %v3373
    %v3382 = vmul.f32 %v3374, %v3374
    %v3383 = vmul.f32 %v3375, %v3375
    %v3384 = vmul.f32 %v3376, %v3376
    %v3385 = vmul.f32 %v3377, %v3377
    %v3386 = vmul.f32 %v3378, %v3378
    %v3387 = vmul.f32 %v3379, %v3379
    %v3388 = vmul.f32 %v3380, %v3380
    %v3389 = vmul.f32 %v3381, %v3381
    %v3390 = vsel %vm239, %v3382, 0.0
    %3391 = vadd.xlane.f32.xlu0 %v3390
    %v3392 = vpop.xlane.xlu0 %3391
    %v3393 = vsel %vm239, %v3383, 0.0
    %3394 = vadd.xlane.f32.xlu0 %v3393
    %v3395 = vpop.xlane.xlu0 %3394
    %v3396 = vsel %vm239, %v3384, 0.0
    %3397 = vadd.xlane.f32.xlu0 %v3396
    %v3398 = vpop.xlane.xlu0 %3397
    %v3399 = vsel %vm239, %v3385, 0.0
    %3400 = vadd.xlane.f32.xlu0 %v3399
    %v3401 = vpop.xlane.xlu0 %3400
    %v3402 = vsel %vm239, %v3386, 0.0
    %3403 = vadd.xlane.f32.xlu0 %v3402
    %v3404 = vpop.xlane.xlu0 %3403
    %v3405 = vsel %vm239, %v3387, 0.0
    %3406 = vadd.xlane.f32.xlu0 %v3405
    %v3407 = vpop.xlane.xlu0 %3406
    %v3408 = vsel %vm239, %v3388, 0.0
    %3409 = vadd.xlane.f32.xlu0 %v3408
    %v3410 = vpop.xlane.xlu0 %3409
    %v3411 = vsel %vm239, %v3389, 0.0
    %3412 = vadd.xlane.f32.xlu0 %v3411
    %v3413 = vpop.xlane.xlu0 %3412
    %v3414 = vmul.f32 %v3392, %v270
    %v3415 = vmul.f32 %v3395, %v270
    %v3416 = vmul.f32 %v3398, %v270
    %v3417 = vmul.f32 %v3401, %v270
    %v3418 = vmul.f32 %v3404, %v270
    %v3419 = vmul.f32 %v3407, %v270
    %v3420 = vmul.f32 %v3410, %v270
    %v3421 = vmul.f32 %v3413, %v270
    %v3422 = vadd.f32 %v3414, 1e-12
    %v3423 = vadd.f32 %v3415, 1e-12
    %v3424 = vadd.f32 %v3416, 1e-12
    %v3425 = vadd.f32 %v3417, 1e-12
    %v3426 = vadd.f32 %v3418, 1e-12
    %v3427 = vadd.f32 %v3419, 1e-12
    %v3428 = vadd.f32 %v3420, 1e-12
    %v3429 = vadd.f32 %v3421, 1e-12
    %v3430 = vrsqrt.pop %v3422
    %v3431 = vmul.f32 %v3430, %v3422
    %v3432 = vmul.f32 %v3431, %v3430
    %v3433 = vmul.f32 0.5, %v3432
    %v3434 = vsub.f32 1.5, %v3433
    %v3435 = vmul.f32 %v3430, %v3434
    %vm3436 = vweird.f32 %v3422
    %vm3437 = vweird.f32 %v3430
    %vm3438 = vmor %vm3436, %vm3437
    %v3439 = vsel %vm3438, %v3430, %v3435
    %v3440 = vrsqrt.pop %v3423
    %v3441 = vmul.f32 %v3440, %v3423
    %v3442 = vmul.f32 %v3441, %v3440
    %v3443 = vmul.f32 0.5, %v3442
    %v3444 = vsub.f32 1.5, %v3443
    %v3445 = vmul.f32 %v3440, %v3444
    %vm3446 = vweird.f32 %v3423
    %vm3447 = vweird.f32 %v3440
    %vm3448 = vmor %vm3446, %vm3447
    %v3449 = vsel %vm3448, %v3440, %v3445
    %v3450 = vrsqrt.pop %v3424
    %v3451 = vmul.f32 %v3450, %v3424
    %v3452 = vmul.f32 %v3451, %v3450
    %v3453 = vmul.f32 0.5, %v3452
    %v3454 = vsub.f32 1.5, %v3453
    %v3455 = vmul.f32 %v3450, %v3454
    %vm3456 = vweird.f32 %v3424
    %vm3457 = vweird.f32 %v3450
    %vm3458 = vmor %vm3456, %vm3457
    %v3459 = vsel %vm3458, %v3450, %v3455
    %v3460 = vrsqrt.pop %v3425
    %v3461 = vmul.f32 %v3460, %v3425
    %v3462 = vmul.f32 %v3461, %v3460
    %v3463 = vmul.f32 0.5, %v3462
    %v3464 = vsub.f32 1.5, %v3463
    %v3465 = vmul.f32 %v3460, %v3464
    %vm3466 = vweird.f32 %v3425
    %vm3467 = vweird.f32 %v3460
    %vm3468 = vmor %vm3466, %vm3467
    %v3469 = vsel %vm3468, %v3460, %v3465
    %v3470 = vrsqrt.pop %v3426
    %v3471 = vmul.f32 %v3470, %v3426
    %v3472 = vmul.f32 %v3471, %v3470
    %v3473 = vmul.f32 0.5, %v3472
    %v3474 = vsub.f32 1.5, %v3473
    %v3475 = vmul.f32 %v3470, %v3474
    %vm3476 = vweird.f32 %v3426
    %vm3477 = vweird.f32 %v3470
    %vm3478 = vmor %vm3476, %vm3477
    %v3479 = vsel %vm3478, %v3470, %v3475
    %v3480 = vrsqrt.pop %v3427
    %v3481 = vmul.f32 %v3480, %v3427
    %v3482 = vmul.f32 %v3481, %v3480
    %v3483 = vmul.f32 0.5, %v3482
    %v3484 = vsub.f32 1.5, %v3483
    %v3485 = vmul.f32 %v3480, %v3484
    %vm3486 = vweird.f32 %v3427
    %vm3487 = vweird.f32 %v3480
    %vm3488 = vmor %vm3486, %vm3487
    %v3489 = vsel %vm3488, %v3480, %v3485
    %v3490 = vrsqrt.pop %v3428
    %v3491 = vmul.f32 %v3490, %v3428
    %v3492 = vmul.f32 %v3491, %v3490
    %v3493 = vmul.f32 0.5, %v3492
    %v3494 = vsub.f32 1.5, %v3493
    %v3495 = vmul.f32 %v3490, %v3494
    %vm3496 = vweird.f32 %v3428
    %vm3497 = vweird.f32 %v3490
    %vm3498 = vmor %vm3496, %vm3497
    %v3499 = vsel %vm3498, %v3490, %v3495
    %v3500 = vrsqrt.pop %v3429
    %v3501 = vmul.f32 %v3500, %v3429
    %v3502 = vmul.f32 %v3501, %v3500
    %v3503 = vmul.f32 0.5, %v3502
    %v3504 = vsub.f32 1.5, %v3503
    %v3505 = vmul.f32 %v3500, %v3504
    %vm3506 = vweird.f32 %v3429
    %vm3507 = vweird.f32 %v3500
    %vm3508 = vmor %vm3506, %vm3507
    %v3509 = vsel %vm3508, %v3500, %v3505
    %v3510 = vmul.f32 %v3374, %v3439
    %v3511 = vmul.f32 %v3375, %v3449
    %v3512 = vmul.f32 %v3376, %v3459
    %v3513 = vmul.f32 %v3377, %v3469
    %v3514 = vmul.f32 %v3378, %v3479
    %v3515 = vmul.f32 %v3379, %v3489
    %v3516 = vmul.f32 %v3380, %v3499
    %v3517 = vmul.f32 %v3381, %v3509
    %v3518 = vperm.slane %v2211, 1
    %v3519 = vmul.f32 %v3510, %v3518
    %v3520 = vmul.f32 %v3511, %v3518
    %v3521 = vmul.f32 %v3512, %v3518
    %v3522 = vmul.f32 %v3513, %v3518
    %v3523 = vmul.f32 %v3514, %v3518
    %v3524 = vmul.f32 %v3515, %v3518
    %v3525 = vmul.f32 %v3516, %v3518
    %v3526 = vmul.f32 %v3517, %v3518
    %v3527 = vperm.slane %v2211, 2
    %v3528 = vadd.f32 %v3519, %v3527
    %v3529 = vadd.f32 %v3520, %v3527
    %v3530 = vadd.f32 %v3521, %v3527
    %v3531 = vadd.f32 %v3522, %v3527
    %v3532 = vadd.f32 %v3523, %v3527
    %v3533 = vadd.f32 %v3524, %v3527
    %v3534 = vadd.f32 %v3525, %v3527
    %v3535 = vadd.f32 %v3526, %v3527
    %v3536 = vpack.c.bf16 %v3529, %v3528
    %v3537 = vpack.c.bf16 %v3531, %v3530
    %v3538 = vpack.c.bf16 %v3533, %v3532
    %v3539 = vpack.c.bf16 %v3535, %v3534
    %s3540 = scalar_lea.vmem [#allocation7], 16
    %v3541 = vld [vmem:[%s3540] sm:$0xf]
    %v3542 = vld [vmem:[%s3540 + $0x4] sm:$0xf]
    %v3543 = vld [vmem:[%s3540 + $0x8] sm:$0xf]
    %v3544 = vld [vmem:[%s3540 + $0xc] sm:$0xf]
    %s3545 = scalar_lea.vmem %s10, 1
    %v3546 = vld [vmem:[%s3545] sm:$0x1]
    %v3548 = vperm.slane %v3546, 0
    %v3554 = vunpack.c.l.b16 %v3541
    %v3555 = vunpack.c.l.b16 %v3542
    %v3556 = vunpack.c.l.b16 %v3543
    %v3557 = vunpack.c.l.b16 %v3544
    %v3558 = vpack.c.b16 %v3555, %v3554
    %v3559 = vpack.c.b16 %v3557, %v3556
    %v3563 = vsel %vm239, %v3536, 0
    %v3566 = vsel %vm239, %v3537, 0
    %v3569 = vsel %vm239, %v3538, 0
    %v3572 = vsel %vm239, %v3539, 0
    %3574 = vmatpush.bf16.msra.mxu0 0
    %3575 = vmatpush.bf16.msra.mxu0 0
    %3576 = vmatpush.bf16.msra.mxu0 0
    %3577 = vmatpush.bf16.msra.mxu0 0
    %3578 = vmatpush.bf16.msra.mxu0 0
    %3579 = vmatpush.bf16.msra.mxu0 0
    %3580 = vmatpush.bf16.msra.mxu0 %v3559
    %3581 = vmatpush.bf16.msra.mxu0 %v3558
    %3582 = vmatmul.bf16.gmra.mxu0 %v3563
    %v3583 = vpop.f32.mrf.mxu0
    %v3584 = vadd.f32 %v3548, %v3583
    %v3585 = vpop.f32.mrf.mxu0
    %v3586 = vadd.f32 %v3548, %v3585
    %3587 = vmatmul.bf16.gmra.mxu0 %v3566
    %v3588 = vpop.f32.mrf.mxu0
    %v3589 = vadd.f32 %v3548, %v3588
    %v3590 = vpop.f32.mrf.mxu0
    %v3591 = vadd.f32 %v3548, %v3590
    %3592 = vmatmul.bf16.gmra.mxu0 %v3569
    %v3593 = vpop.f32.mrf.mxu0
    %v3594 = vadd.f32 %v3548, %v3593
    %v3595 = vpop.f32.mrf.mxu0
    %v3596 = vadd.f32 %v3548, %v3595
    %3597 = vmatmul.bf16.gmra.mxu0 %v3572
    %v3598 = vpop.f32.mrf.mxu0
    %v3599 = vadd.f32 %v3548, %v3598
    %v3600 = vpop.f32.mrf.mxu0
    %v3601 = vadd.f32 %v3548, %v3600
    %3602 = vdwg.mxu0
    %v3603 = vmul.f32 %v3584, %v3584
    %v3604 = vmul.f32 %v3586, %v3586
    %v3605 = vmul.f32 %v3589, %v3589
    %v3606 = vmul.f32 %v3591, %v3591
    %v3607 = vmul.f32 %v3594, %v3594
    %v3608 = vmul.f32 %v3596, %v3596
    %v3609 = vmul.f32 %v3599, %v3599
    %v3610 = vmul.f32 %v3601, %v3601
    %v3611 = vmul.f32 %v3584, %v3603
    %v3612 = vmul.f32 %v3586, %v3604
    %v3613 = vmul.f32 %v3589, %v3605
    %v3614 = vmul.f32 %v3591, %v3606
    %v3615 = vmul.f32 %v3594, %v3607
    %v3616 = vmul.f32 %v3596, %v3608
    %v3617 = vmul.f32 %v3599, %v3609
    %v3618 = vmul.f32 %v3601, %v3610
    %v3619 = vmul.f32 %v3611, 0.044715
    %v3620 = vmul.f32 %v3612, 0.044715
    %v3621 = vmul.f32 %v3613, 0.044715
    %v3622 = vmul.f32 %v3614, 0.044715
    %v3623 = vmul.f32 %v3615, 0.044715
    %v3624 = vmul.f32 %v3616, 0.044715
    %v3625 = vmul.f32 %v3617, 0.044715
    %v3626 = vmul.f32 %v3618, 0.044715
    %v3627 = vadd.f32 %v3584, %v3619
    %v3628 = vadd.f32 %v3586, %v3620
    %v3629 = vadd.f32 %v3589, %v3621
    %v3630 = vadd.f32 %v3591, %v3622
    %v3631 = vadd.f32 %v3594, %v3623
    %v3632 = vadd.f32 %v3596, %v3624
    %v3633 = vadd.f32 %v3599, %v3625
    %v3634 = vadd.f32 %v3601, %v3626
    %v3635 = vmul.f32 %v3627, 0.7978846
    %v3636 = vmul.f32 %v3628, 0.7978846
    %v3637 = vmul.f32 %v3629, 0.7978846
    %v3638 = vmul.f32 %v3630, 0.7978846
    %v3639 = vmul.f32 %v3631, 0.7978846
    %v3640 = vmul.f32 %v3632, 0.7978846
    %v3641 = vmul.f32 %v3633, 0.7978846
    %v3642 = vmul.f32 %v3634, 0.7978846
    %v3643 = vtanh.pop %v3635
    %v3644 = vtanh.pop %v3636
    %v3645 = vtanh.pop %v3637
    %v3646 = vtanh.pop %v3638
    %v3647 = vtanh.pop %v3639
    %v3648 = vtanh.pop %v3640
    %v3649 = vtanh.pop %v3641
    %v3650 = vtanh.pop %v3642
    %v3651 = vadd.f32 %v3643, 1.0
    %v3652 = vadd.f32 %v3644, 1.0
    %v3653 = vadd.f32 %v3645, 1.0
    %v3654 = vadd.f32 %v3646, 1.0
    %v3655 = vadd.f32 %v3647, 1.0
    %v3656 = vadd.f32 %v3648, 1.0
    %v3657 = vadd.f32 %v3649, 1.0
    %v3658 = vadd.f32 %v3650, 1.0
    %v3659 = vmul.f32 %v3651, 0.5
    %v3660 = vmul.f32 %v3652, 0.5
    %v3661 = vmul.f32 %v3653, 0.5
    %v3662 = vmul.f32 %v3654, 0.5
    %v3663 = vmul.f32 %v3655, 0.5
    %v3664 = vmul.f32 %v3656, 0.5
    %v3665 = vmul.f32 %v3657, 0.5
    %v3666 = vmul.f32 %v3658, 0.5
    %v3667 = vmul.f32 %v3584, %v3659
    %v3668 = vmul.f32 %v3586, %v3660
    %v3669 = vmul.f32 %v3589, %v3661
    %v3670 = vmul.f32 %v3591, %v3662
    %v3671 = vmul.f32 %v3594, %v3663
    %v3672 = vmul.f32 %v3596, %v3664
    %v3673 = vmul.f32 %v3599, %v3665
    %v3674 = vmul.f32 %v3601, %v3666
    %v3675 = vpack.c.bf16 %v3668, %v3667
    %v3676 = vpack.c.bf16 %v3670, %v3669
    %v3677 = vpack.c.bf16 %v3672, %v3671
    %v3678 = vpack.c.bf16 %v3674, %v3673
    %s3679 = scalar_lea.vmem %s11, 32
    %v3680 = vld [vmem:[%s3679] sm:$0xf]
    %v3681 = vld [vmem:[%s3679 + $0x4] sm:$0xf]
    %v3682 = vld [vmem:[%s3679 + $0x8] sm:$0xf]
    %v3683 = vld [vmem:[%s3679 + $0xc] sm:$0xf]
    %v3684 = vld [vmem:[%s3679 + $0x10] sm:$0xf]
    %v3685 = vld [vmem:[%s3679 + $0x14] sm:$0xf]
    %v3686 = vld [vmem:[%s3679 + $0x18] sm:$0xf]
    %v3687 = vld [vmem:[%s3679 + $0x1c] sm:$0xf]
    %v3688 = vperm.slane %v2211, 3
    %v3697 = vunpack.c.l.b16 %v3680
    %v3698 = vunpack.c.l.b16 %v3681
    %v3699 = vunpack.c.l.b16 %v3682
    %v3700 = vunpack.c.l.b16 %v3683
    %v3701 = vunpack.c.l.b16 %v3684
    %v3702 = vunpack.c.l.b16 %v3685
    %v3703 = vunpack.c.l.b16 %v3686
    %v3704 = vunpack.c.l.b16 %v3687
    %v3705 = vpack.c.b16 %v3698, %v3697
    %v3706 = vpack.c.b16 %v3700, %v3699
    %v3707 = vpack.c.b16 %v3702, %v3701
    %v3708 = vpack.c.b16 %v3704, %v3703
    %v3714 = vsel %vm171, %v3675, 0
    %v3717 = vsel %vm171, %v3676, 0
    %v3720 = vsel %vm171, %v3677, 0
    %v3723 = vsel %vm171, %v3678, 0
    %3725 = vmatpush.bf16.msra.mxu0 0
    %3726 = vmatpush.bf16.msra.mxu0 0
    %3727 = vmatpush.bf16.msra.mxu0 0
    %3728 = vmatpush.bf16.msra.mxu0 0
    %3729 = vmatpush.bf16.msra.mxu0 %v3708
    %3730 = vmatpush.bf16.msra.mxu0 %v3707
    %3731 = vmatpush.bf16.msra.mxu0 %v3706
    %3732 = vmatpush.bf16.msra.mxu0 %v3705
    %3733 = vmatmul.bf16.gmra.mxu0 %v3714
    %v3734 = vpop.f32.mrf.mxu0
    %v3735 = vadd.f32 %v3688, %v3734
    %v3736 = vpop.f32.mrf.mxu0
    %v3737 = vadd.f32 %v3688, %v3736
    %3738 = vmatmul.bf16.gmra.mxu0 %v3717
    %v3739 = vpop.f32.mrf.mxu0
    %v3740 = vadd.f32 %v3688, %v3739
    %v3741 = vpop.f32.mrf.mxu0
    %v3742 = vadd.f32 %v3688, %v3741
    %3743 = vmatmul.bf16.gmra.mxu0 %v3720
    %v3744 = vpop.f32.mrf.mxu0
    %v3745 = vadd.f32 %v3688, %v3744
    %v3746 = vpop.f32.mrf.mxu0
    %v3747 = vadd.f32 %v3688, %v3746
    %3748 = vmatmul.bf16.gmra.mxu0 %v3723
    %v3749 = vpop.f32.mrf.mxu0
    %v3750 = vadd.f32 %v3688, %v3749
    %v3751 = vpop.f32.mrf.mxu0
    %v3752 = vadd.f32 %v3688, %v3751
    %3753 = vdwg.mxu0
    %v3754 = vadd.f32 %v3528, %v3735
    %v3755 = vadd.f32 %v3529, %v3737
    %v3756 = vadd.f32 %v3530, %v3740
    %v3757 = vadd.f32 %v3531, %v3742
    %v3758 = vadd.f32 %v3532, %v3745
    %v3759 = vadd.f32 %v3533, %v3747
    %v3760 = vadd.f32 %v3534, %v3750
    %v3761 = vadd.f32 %v3535, %v3752
    %v3762 = vsel %vm239, %v3754, 0.0
    %3763 = vadd.xlane.f32.xlu0 %v3762
    %v3764 = vpop.xlane.xlu0 %3763
    %v3765 = vsel %vm239, %v3755, 0.0
    %3766 = vadd.xlane.f32.xlu0 %v3765
    %v3767 = vpop.xlane.xlu0 %3766
    %v3768 = vsel %vm239, %v3756, 0.0
    %3769 = vadd.xlane.f32.xlu0 %v3768
    %v3770 = vpop.xlane.xlu0 %3769
    %v3771 = vsel %vm239, %v3757, 0.0
    %3772 = vadd.xlane.f32.xlu0 %v3771
    %v3773 = vpop.xlane.xlu0 %3772
    %v3774 = vsel %vm239, %v3758, 0.0
    %3775 = vadd.xlane.f32.xlu0 %v3774
    %v3776 = vpop.xlane.xlu0 %3775
    %v3777 = vsel %vm239, %v3759, 0.0
    %3778 = vadd.xlane.f32.xlu0 %v3777
    %v3779 = vpop.xlane.xlu0 %3778
    %v3780 = vsel %vm239, %v3760, 0.0
    %3781 = vadd.xlane.f32.xlu0 %v3780
    %v3782 = vpop.xlane.xlu0 %3781
    %v3783 = vsel %vm239, %v3761, 0.0
    %3784 = vadd.xlane.f32.xlu0 %v3783
    %v3785 = vpop.xlane.xlu0 %3784
    %v3786 = vmul.f32 %v3764, %v270
    %v3787 = vmul.f32 %v3767, %v270
    %v3788 = vmul.f32 %v3770, %v270
    %v3789 = vmul.f32 %v3773, %v270
    %v3790 = vmul.f32 %v3776, %v270
    %v3791 = vmul.f32 %v3779, %v270
    %v3792 = vmul.f32 %v3782, %v270
    %v3793 = vmul.f32 %v3785, %v270
    %v3794 = vsub.f32 %v3754, %v3786
    %v3795 = vsub.f32 %v3755, %v3787
    %v3796 = vsub.f32 %v3756, %v3788
    %v3797 = vsub.f32 %v3757, %v3789
    %v3798 = vsub.f32 %v3758, %v3790
    %v3799 = vsub.f32 %v3759, %v3791
    %v3800 = vsub.f32 %v3760, %v3792
    %v3801 = vsub.f32 %v3761, %v3793
    %v3802 = vmul.f32 %v3794, %v3794
    %v3803 = vmul.f32 %v3795, %v3795
    %v3804 = vmul.f32 %v3796, %v3796
    %v3805 = vmul.f32 %v3797, %v3797
    %v3806 = vmul.f32 %v3798, %v3798
    %v3807 = vmul.f32 %v3799, %v3799
    %v3808 = vmul.f32 %v3800, %v3800
    %v3809 = vmul.f32 %v3801, %v3801
    %v3810 = vsel %vm239, %v3802, 0.0
    %3811 = vadd.xlane.f32.xlu0 %v3810
    %v3812 = vpop.xlane.xlu0 %3811
    %v3813 = vsel %vm239, %v3803, 0.0
    %3814 = vadd.xlane.f32.xlu0 %v3813
    %v3815 = vpop.xlane.xlu0 %3814
    %v3816 = vsel %vm239, %v3804, 0.0
    %3817 = vadd.xlane.f32.xlu0 %v3816
    %v3818 = vpop.xlane.xlu0 %3817
    %v3819 = vsel %vm239, %v3805, 0.0
    %3820 = vadd.xlane.f32.xlu0 %v3819
    %v3821 = vpop.xlane.xlu0 %3820
    %v3822 = vsel %vm239, %v3806, 0.0
    %3823 = vadd.xlane.f32.xlu0 %v3822
    %v3824 = vpop.xlane.xlu0 %3823
    %v3825 = vsel %vm239, %v3807, 0.0
    %3826 = vadd.xlane.f32.xlu0 %v3825
    %v3827 = vpop.xlane.xlu0 %3826
    %v3828 = vsel %vm239, %v3808, 0.0
    %3829 = vadd.xlane.f32.xlu0 %v3828
    %v3830 = vpop.xlane.xlu0 %3829
    %v3831 = vsel %vm239, %v3809, 0.0
    %3832 = vadd.xlane.f32.xlu0 %v3831
    %v3833 = vpop.xlane.xlu0 %3832
    %v3834 = vmul.f32 %v3812, %v270
    %v3835 = vmul.f32 %v3815, %v270
    %v3836 = vmul.f32 %v3818, %v270
    %v3837 = vmul.f32 %v3821, %v270
    %v3838 = vmul.f32 %v3824, %v270
    %v3839 = vmul.f32 %v3827, %v270
    %v3840 = vmul.f32 %v3830, %v270
    %v3841 = vmul.f32 %v3833, %v270
    %v3842 = vadd.f32 %v3834, 1e-12
    %v3843 = vadd.f32 %v3835, 1e-12
    %v3844 = vadd.f32 %v3836, 1e-12
    %v3845 = vadd.f32 %v3837, 1e-12
    %v3846 = vadd.f32 %v3838, 1e-12
    %v3847 = vadd.f32 %v3839, 1e-12
    %v3848 = vadd.f32 %v3840, 1e-12
    %v3849 = vadd.f32 %v3841, 1e-12
    %v3850 = vrsqrt.pop %v3842
    %v3851 = vmul.f32 %v3850, %v3842
    %v3852 = vmul.f32 %v3851, %v3850
    %v3853 = vmul.f32 0.5, %v3852
    %v3854 = vsub.f32 1.5, %v3853
    %v3855 = vmul.f32 %v3850, %v3854
    %vm3856 = vweird.f32 %v3842
    %vm3857 = vweird.f32 %v3850
    %vm3858 = vmor %vm3856, %vm3857
    %v3859 = vsel %vm3858, %v3850, %v3855
    %v3860 = vrsqrt.pop %v3843
    %v3861 = vmul.f32 %v3860, %v3843
    %v3862 = vmul.f32 %v3861, %v3860
    %v3863 = vmul.f32 0.5, %v3862
    %v3864 = vsub.f32 1.5, %v3863
    %v3865 = vmul.f32 %v3860, %v3864
    %vm3866 = vweird.f32 %v3843
    %vm3867 = vweird.f32 %v3860
    %vm3868 = vmor %vm3866, %vm3867
    %v3869 = vsel %vm3868, %v3860, %v3865
    %v3870 = vrsqrt.pop %v3844
    %v3871 = vmul.f32 %v3870, %v3844
    %v3872 = vmul.f32 %v3871, %v3870
    %v3873 = vmul.f32 0.5, %v3872
    %v3874 = vsub.f32 1.5, %v3873
    %v3875 = vmul.f32 %v3870, %v3874
    %vm3876 = vweird.f32 %v3844
    %vm3877 = vweird.f32 %v3870
    %vm3878 = vmor %vm3876, %vm3877
    %v3879 = vsel %vm3878, %v3870, %v3875
    %v3880 = vrsqrt.pop %v3845
    %v3881 = vmul.f32 %v3880, %v3845
    %v3882 = vmul.f32 %v3881, %v3880
    %v3883 = vmul.f32 0.5, %v3882
    %v3884 = vsub.f32 1.5, %v3883
    %v3885 = vmul.f32 %v3880, %v3884
    %vm3886 = vweird.f32 %v3845
    %vm3887 = vweird.f32 %v3880
    %vm3888 = vmor %vm3886, %vm3887
    %v3889 = vsel %vm3888, %v3880, %v3885
    %v3890 = vrsqrt.pop %v3846
    %v3891 = vmul.f32 %v3890, %v3846
    %v3892 = vmul.f32 %v3891, %v3890
    %v3893 = vmul.f32 0.5, %v3892
    %v3894 = vsub.f32 1.5, %v3893
    %v3895 = vmul.f32 %v3890, %v3894
    %vm3896 = vweird.f32 %v3846
    %vm3897 = vweird.f32 %v3890
    %vm3898 = vmor %vm3896, %vm3897
    %v3899 = vsel %vm3898, %v3890, %v3895
    %v3900 = vrsqrt.pop %v3847
    %v3901 = vmul.f32 %v3900, %v3847
    %v3902 = vmul.f32 %v3901, %v3900
    %v3903 = vmul.f32 0.5, %v3902
    %v3904 = vsub.f32 1.5, %v3903
    %v3905 = vmul.f32 %v3900, %v3904
    %vm3906 = vweird.f32 %v3847
    %vm3907 = vweird.f32 %v3900
    %vm3908 = vmor %vm3906, %vm3907
    %v3909 = vsel %vm3908, %v3900, %v3905
    %v3910 = vrsqrt.pop %v3848
    %v3911 = vmul.f32 %v3910, %v3848
    %v3912 = vmul.f32 %v3911, %v3910
    %v3913 = vmul.f32 0.5, %v3912
    %v3914 = vsub.f32 1.5, %v3913
    %v3915 = vmul.f32 %v3910, %v3914
    %vm3916 = vweird.f32 %v3848
    %vm3917 = vweird.f32 %v3910
    %vm3918 = vmor %vm3916, %vm3917
    %v3919 = vsel %vm3918, %v3910, %v3915
    %v3920 = vrsqrt.pop %v3849
    %v3921 = vmul.f32 %v3920, %v3849
    %v3922 = vmul.f32 %v3921, %v3920
    %v3923 = vmul.f32 0.5, %v3922
    %v3924 = vsub.f32 1.5, %v3923
    %v3925 = vmul.f32 %v3920, %v3924
    %vm3926 = vweird.f32 %v3849
    %vm3927 = vweird.f32 %v3920
    %vm3928 = vmor %vm3926, %vm3927
    %v3929 = vsel %vm3928, %v3920, %v3925
    %v3930 = vmul.f32 %v3794, %v3859
    %v3931 = vmul.f32 %v3795, %v3869
    %v3932 = vmul.f32 %v3796, %v3879
    %v3933 = vmul.f32 %v3797, %v3889
    %v3934 = vmul.f32 %v3798, %v3899
    %v3935 = vmul.f32 %v3799, %v3909
    %v3936 = vmul.f32 %v3800, %v3919
    %v3937 = vmul.f32 %v3801, %v3929
    %v3938 = vperm.slane %v2211, 4
    %v3939 = vmul.f32 %v3930, %v3938
    %v3940 = vmul.f32 %v3931, %v3938
    %v3941 = vmul.f32 %v3932, %v3938
    %v3942 = vmul.f32 %v3933, %v3938
    %v3943 = vmul.f32 %v3934, %v3938
    %v3944 = vmul.f32 %v3935, %v3938
    %v3945 = vmul.f32 %v3936, %v3938
    %v3946 = vmul.f32 %v3937, %v3938
    %v3947 = vperm.slane %v2211, 5
    %v3948 = vadd.f32 %v3939, %v3947
    %v3949 = vadd.f32 %v3940, %v3947
    %v3950 = vadd.f32 %v3941, %v3947
    %v3951 = vadd.f32 %v3942, %v3947
    %v3952 = vadd.f32 %v3943, %v3947
    %v3953 = vadd.f32 %v3944, %v3947
    %v3954 = vadd.f32 %v3945, %v3947
    %v3955 = vadd.f32 %v3946, %v3947
    %v3956 = vld [vmem:[%s12] sm:$0x1]
    %v3958 = vperm.slane %v3956, 0
    %v3960 = vmul.f32 %v3948, %v3958
    %v3961 = vmul.f32 %v3949, %v3958
    %v3962 = vmul.f32 %v3950, %v3958
    %v3963 = vmul.f32 %v3951, %v3958
    %v3964 = vmul.f32 %v3952, %v3958
    %v3965 = vmul.f32 %v3953, %v3958
    %v3966 = vmul.f32 %v3954, %v3958
    %v3967 = vmul.f32 %v3955, %v3958
    %v3976 = vrot.slane %v3961, 7
    %vm3977 = vcmask 1041409
    %v3978 = vsel %vm3977, %v3976, %v3960
    %v3979 = vrot.slane %v3962, 6
    %vm3980 = vcmask 1042434
    %v3981 = vsel %vm3980, %v3979, %v3978
    %v3982 = vrot.slane %v3963, 5
    %vm3983 = vcmask 1043459
    %v3984 = vsel %vm3983, %v3982, %v3981
    %v3985 = vrot.slane %v3964, 4
    %vm3986 = vcmask 1044484
    %v3987 = vsel %vm3986, %v3985, %v3984
    %v3988 = vrot.slane %v3965, 3
    %vm3989 = vcmask 1045509
    %v3990 = vsel %vm3989, %v3988, %v3987
    %v3991 = vrot.slane %v3966, 2
    %vm3992 = vcmask 1046534
    %v3993 = vsel %vm3992, %v3991, %v3990
    %v3994 = vrot.slane %v3967, 1
    %vm3995 = vcmask 1047559
    %v3996 = vsel %vm3995, %v3994, %v3993
    %v3998 = vsel %vm239, %v3996, 0.0
    %3999 = vadd.xlane.f32.xlu0 %v3998
    %v4000 = vpop.xlane.xlu0 %3999
    %v4001 = vld [vmem:[#allocation2] sm:$0x1]
    %v4003 = vperm.slane %v4001, 0
    %v4005 = vadd.f32 %v4000, %v4003
    %4007 = vset.pattern.permute.xlu0 0
    %4008 = vperm.xlu0 %4007, %v4005
    %v4009 = vpop.permute.xlu0 %4008
    %4011 = vst [vmem:[%s14] sm:$0xff] %v4009
    // Predicated region
    $region70: #{_lambda_.1} parent=1 // pred_check
      _
    $region71: #{_lambda_.1} parent=1 // pred_check_branch
      %4013 = sbr.rel (0) target = $region73
    $region72: #{_lambda_.1} parent=1 // pred_region
      _
    $region73: #{_lambda_.1} parent=1 // pred_fallthru
      _
    // Predicated region
    $region74: #{_lambda_.1} parent=1 // pred_check
      _
    $region75: #{_lambda_.1} parent=1 // pred_check_branch
      %4015 = sbr.rel (0) target = $region77
    $region76: #{_lambda_.1} parent=1 // pred_region
      _
    $region77: #{_lambda_.1} parent=1 // pred_fallthru
      _
    %4016 = vsyncpa [#allocation4], 1
    %4017 = vsyncpa [#allocation6], 1

</llo_original>
